<compile_context>
chip_gen: v5e
topology: v5e:2x2
jax: 0.10.0
libtpu: 0.0.40
codegen_flags: <defaults>
</compile_context>

<pallas_src>
import jax
import jax.numpy as jnp
from jax.experimental import pallas as pl
from jax.experimental.pallas import tpu as pltpu

# ---------------- model config (small, consistent with the module) ----------------
DICTIONARY = [chr(ord('a') + i) for i in range(26)] + ['<eos>', ' ', '.', '-', "'", '_']
VOCAB = len(DICTIONARY)       # 32
EMB = 16                      # embedding_dim  (module default 15, rounded to 16; == HID)
HID = 16                      # num_lstm_units
LAYERS = 3                    # num_lstm_layers


# --------------------------- fully fused forward kernel ----------------------------
def rnn_fused_kernel(ids_ref,                       # scalar prefetch: (B, T) int32 in SMEM
                     emb_ref,                       # (V, E)
                     w_x0_ref,                      # (E, 4H)    layer-0 input weights
                     w_h0_ref,                      # (H, 4H)    layer-0 recurrent weights
                     w_cat_ref,                     # (L-1, 2H, 4H)  merged [W_ih;W_hh] for layers 1..L-1
                     b_ref,                         # (L, 1, 4H) combined b_ih + b_hh
                     w_out_ref,                     # (H, V)
                     b_out_ref,                     # (1, V)
                     h0_ref, c0_ref,                # (L, B, H)
                     logits_ref,                    # (B*T, V)
                     h_out_ref, c_out_ref):         # (L, B, H)
    B, T = ids_ref.shape
    H = HID
    f32 = jnp.float32

    # ---- fused embedding lookup: one-hot (T*B, V) @ table (V, E) on the MXU ----
    iota_v = jax.lax.broadcasted_iota(jnp.int32, (1, VOCAB), 1)
    onehot_rows = []
    for t in range(T):                               # row t*B + b  (time-major)
        for b in range(B):
            onehot_rows.append((iota_v == ids_ref[b, t]).astype(f32))
    onehot = jnp.concatenate(onehot_rows, axis=0)    # (T*B, V)
    x_flat = jnp.dot(onehot, emb_ref[...], preferred_element_type=f32)   # (T*B, E)

    # ---- hoist the layer-0 input transform off the serial chain (one batched matmul) ----
    bias = [b_ref[l] for l in range(LAYERS)]                              # each (1, 4H)
    gates0_x = jnp.dot(x_flat, w_x0_ref[...], preferred_element_type=f32) + bias[0]  # (T*B, 4H)

    w_h0 = w_h0_ref[...]
    w_cat = [w_cat_ref[l] for l in range(LAYERS - 1)]

    def cell(gates, c_prev):
        # gate column order is (i, f, o, g): one sigmoid sweep + one tanh
        sig = jax.nn.sigmoid(gates[:, :3 * H])
        g_g = jnp.tanh(gates[:, 3 * H:])
        i_g, f_g, o_g = sig[:, :H], sig[:, H:2 * H], sig[:, 2 * H:3 * H]
        c_new = f_g * c_prev + i_g * g_g
        h_new = o_g * jnp.tanh(c_new)
        return h_new, c_new

    h = [h0_ref[l] for l in range(LAYERS)]
    c = [c0_ref[l] for l in range(LAYERS)]
    tops = []
    for t in range(T):                               # static unroll: full scheduler visibility
        # layer 0: input part precomputed, only the recurrent matmul on the serial chain
        gates = gates0_x[t * B:(t + 1) * B] + jnp.dot(h[0], w_h0, preferred_element_type=f32)
        h[0], c[0] = cell(gates, c[0])
        x = h[0]
        # layers 1..L-1: single merged matmul per layer-step
        for l in range(1, LAYERS):
            xh = jnp.concatenate([x, h[l]], axis=-1)                       # (B, 2H)
            gates = jnp.dot(xh, w_cat[l - 1], preferred_element_type=f32) + bias[l]
            h[l], c[l] = cell(gates, c[l])
            x = h[l]
        tops.append(x)                               # top-layer hidden at step t, (B, H)

    # ---- fused output projection, written batch-first like out.view(-1, H) ----
    rows_bt = []
    for b in range(B):                               # row b*T + t  (torch batch_first flatten)
        for t in range(T):
            rows_bt.append(tops[t][b:b + 1, :])
    out_bt = jnp.concatenate(rows_bt, axis=0)        # (B*T, H)
    logits_ref[...] = (jnp.dot(out_bt, w_out_ref[...], preferred_element_type=f32)
                       + b_out_ref[...]).astype(logits_ref.dtype)

    for l in range(LAYERS):
        h_out_ref[l] = h[l].astype(h_out_ref.dtype)
        c_out_ref[l] = c[l].astype(c_out_ref.dtype)


# ------------------------------- forward wrapper ----------------------------------
def rnn_forward(params, input_ids, hidden=None):
    """Mirrors RNN.forward: returns (logits[(B*T), V], (h[L,B,H], c[L,B,H]))."""
    B, T = input_ids.shape
    if hidden is None:
        h0 = jnp.zeros((LAYERS, B, HID), jnp.float32)
        c0 = jnp.zeros((LAYERS, B, HID), jnp.float32)
    else:
        h0, c0 = hidden

    def full(shape):
        # full-array block; index_map also receives the scalar-prefetch ref
        return pl.BlockSpec(shape, lambda i, ids_ref, _n=len(shape): (0,) * _n)

    logits, h, c = pl.pallas_call(
        rnn_fused_kernel,
        out_shape=(
            jax.ShapeDtypeStruct((B * T, VOCAB), jnp.float32),
            jax.ShapeDtypeStruct((LAYERS, B, HID), jnp.float32),
            jax.ShapeDtypeStruct((LAYERS, B, HID), jnp.float32),
        ),
        grid_spec=pltpu.PrefetchScalarGridSpec(
            num_scalar_prefetch=1,                    # input ids -> SMEM
            grid=(1,),                                # everything in a single grid step
            in_specs=[
                full((VOCAB, EMB)),                   # embedding table
                full((EMB, 4 * HID)),                 # w_x0
                full((HID, 4 * HID)),                 # w_h0
                full((LAYERS - 1, 2 * HID, 4 * HID)), # merged weights, layers 1..L-1
                full((LAYERS, 1, 4 * HID)),           # combined bias
                full((HID, VOCAB)),                   # w_out
                full((1, VOCAB)),                     # b_out
                full((LAYERS, B, HID)),               # h0
                full((LAYERS, B, HID)),               # c0
            ],
            out_specs=(
                full((B * T, VOCAB)),
                full((LAYERS, B, HID)),
                full((LAYERS, B, HID)),
            ),
        ),
        compiler_params=pltpu.CompilerParams(dimension_semantics=("arbitrary",)),
    )(input_ids.astype(jnp.int32), params["emb"], params["w_x0"], params["w_h0"],
      params["w_cat"], params["b"], params["w_out"], params["b_out"], h0, c0)
    # .detach() has no Pallas/JAX analogue needed (no autograd tape here)
    return logits, (h, c)


# ------------------- torch-layout -> kernel-layout parameter prep ------------------
def prep_params(raw):
    """raw uses the torch parameterization: gate rows ordered (i,f,g,o),
    weight_ih_l{k} (4H,in), weight_hh_l{k} (4H,H), Linear weight (V,H)."""
    H = HID
    # reorder gate blocks (i,f,g,o) -> (i,f,o,g)
    perm = jnp.concatenate([jnp.arange(0, H), jnp.arange(H, 2 * H),
                            jnp.arange(3 * H, 4 * H), jnp.arange(2 * H, 3 * H)])
    w_ih_r = raw["w_ih"][:, perm, :]                          # (L, 4H, in)
    w_hh_r = raw["w_hh"][:, perm, :]                          # (L, 4H, H)
    b_r = (raw["b_ih"] + raw["b_hh"])[:, perm]                # (L, 4H)

    w_cat = jnp.stack(
        [jnp.concatenate([w_ih_r[l].T, w_hh_r[l].T], axis=0) for l in range(1, LAYERS)],
        axis=0)                                               # (L-1, 2H, 4H)
    return {
        "emb": raw["embedding"],                              # (V, E)
        "w_x0": w_ih_r[0].T,                                  # (E, 4H)
        "w_h0": w_hh_r[0].T,                                  # (H, 4H)
        "w_cat": w_cat,
        "b": b_r.reshape(LAYERS, 1, 4 * H),
        "w_out": raw["w_out"].T,                              # (H, V)
        "b_out": raw["b_out"].reshape(1, VOCAB),
    }


# ----------------------- pure-JAX reference (torch semantics) ----------------------
def reference_forward(raw, ids, h0, c0):
    H = HID
    hi = jax.lax.Precision.HIGHEST
    emb = raw["embedding"][ids]                               # (B, T, E)
    B, T = ids.shape
    h = [h0[l] for l in range(LAYERS)]
    c = [c0[l] for l in range(LAYERS)]
    outs = []
    for t in range(T):
        x = emb[:, t, :]
        for l in range(LAYERS):
            gates = (jnp.dot(x, raw["w_ih"][l].T, precision=hi) + raw["b_ih"][l]
                     + jnp.dot(h[l], raw["w_hh"][l].T, precision=hi) + raw["b_hh"][l])
            i_g = jax.nn.sigmoid(gates[:, 0:H])
            f_g = jax.nn.sigmoid(gates[:, H:2 * H])
            g_g = jnp.tanh(gates[:, 2 * H:3 * H])
            o_g = jax.nn.sigmoid(gates[:, 3 * H:4 * H])
            c[l] = f_g * c[l] + i_g * g_g
            h[l] = o_g * jnp.tanh(c[l])
            x = h[l]
        outs.append(x)
    out = jnp.stack(outs, axis=1)                             # (B, T, H) batch_first
    logits = jnp.dot(out.reshape(-1, H), raw["w_out"].T, precision=hi) + raw["b_out"]
    return logits, jnp.stack(h), jnp.stack(c)


# ------------------------------------ main -----------------------------------------
if __name__ == "__main__":
    key = jax.random.PRNGKey(0)
    ks = jax.random.split(key, 8)
    B, T = 2, 8
    s = 0.5

    # torch-layout parameters (gate order i,f,g,o).  Stacking w_ih assumes EMB == HID,
    # matching the module defaults (embedding_dim == num_lstm_units).
    raw = {
        "embedding": s * jax.random.normal(ks[0], (VOCAB, EMB), jnp.float32),
        "w_ih": s * jax.random.normal(ks[1], (LAYERS, 4 * HID, EMB), jnp.float32),
        "w_hh": s * jax.random.normal(ks[2], (LAYERS, 4 * HID, HID), jnp.float32),
        "b_ih": s * jax.random.normal(ks[3], (LAYERS, 4 * HID), jnp.float32),
        "b_hh": s * jax.random.normal(ks[4], (LAYERS, 4 * HID), jnp.float32),
        "w_out": s * jax.random.normal(ks[5], (VOCAB, HID), jnp.float32),
        "b_out": s * jax.random.normal(ks[6], (VOCAB,), jnp.float32),
    }
    input_ids = jax.random.randint(ks[7], (B, T), 0, VOCAB, dtype=jnp.int32)

    params = prep_params(raw)
    logits, (h, c) = rnn_forward(params, input_ids)
    jax.block_until_ready((logits, h, c))

    assert logits.shape == (B * T, VOCAB)
    assert h.shape == (LAYERS, B, HID) and c.shape == (LAYERS, B, HID)

    # numerics check against a pure-JAX mirror of torch.nn.LSTM + Linear
    h0 = jnp.zeros((LAYERS, B, HID), jnp.float32)
    c0 = jnp.zeros((LAYERS, B, HID), jnp.float32)
    ref_logits, ref_h, ref_c = jax.jit(reference_forward)(raw, input_ids, h0, c0)
    assert jnp.allclose(logits, ref_logits, atol=2e-2, rtol=2e-2), \
        float(jnp.max(jnp.abs(logits - ref_logits)))
    assert jnp.allclose(h, ref_h, atol=2e-2, rtol=2e-2)
    assert jnp.allclose(c, ref_c, atol=2e-2, rtol=2e-2)

    print("KERNEL_OK")
</pallas_src>

<mosaic_0001>
module attributes {stable_mosaic.version = 11 : i64} {
  func.func @rnn_fused_kernel(%arg0: i32, %arg1: memref<2x8xi32, #tpu.memory_space<smem>>, %arg2: memref<32x16xf32, #tpu.memory_space<vmem>>, %arg3: memref<16x64xf32, #tpu.memory_space<vmem>>, %arg4: memref<16x64xf32, #tpu.memory_space<vmem>>, %arg5: memref<2x32x64xf32, #tpu.memory_space<vmem>>, %arg6: memref<3x1x64xf32, #tpu.memory_space<vmem>>, %arg7: memref<16x32xf32, #tpu.memory_space<vmem>>, %arg8: memref<1x32xf32, #tpu.memory_space<vmem>>, %arg9: memref<3x2x16xf32, #tpu.memory_space<vmem>>, %arg10: memref<3x2x16xf32, #tpu.memory_space<vmem>>, %arg11: memref<16x32xf32, #tpu.memory_space<vmem>>, %arg12: memref<3x2x16xf32, #tpu.memory_space<vmem>>, %arg13: memref<3x2x16xf32, #tpu.memory_space<vmem>>) attributes {dimension_semantics = [#tpu.dimension_semantics<arbitrary>], iteration_bounds = array<i64: 1>, scalar_prefetch = 1 : i64, scratch_operands = 0 : i64, tpu.core_type = #tpu.core_type<tc>, window_params = [{pipeline_mode = #tpu.pipeline_mode<synchronous>, transform_indices = @transform_0, window_bounds = array<i64: 32, 16>}, {pipeline_mode = #tpu.pipeline_mode<synchronous>, transform_indices = @transform_1, window_bounds = array<i64: 16, 64>}, {pipeline_mode = #tpu.pipeline_mode<synchronous>, transform_indices = @transform_2, window_bounds = array<i64: 16, 64>}, {pipeline_mode = #tpu.pipeline_mode<synchronous>, transform_indices = @transform_3, window_bounds = array<i64: 2, 32, 64>}, {pipeline_mode = #tpu.pipeline_mode<synchronous>, transform_indices = @transform_4, window_bounds = array<i64: 3, 1, 64>}, {pipeline_mode = #tpu.pipeline_mode<synchronous>, transform_indices = @transform_5, window_bounds = array<i64: 16, 32>}, {pipeline_mode = #tpu.pipeline_mode<synchronous>, transform_indices = @transform_6, window_bounds = array<i64: 1, 32>}, {pipeline_mode = #tpu.pipeline_mode<synchronous>, transform_indices = @transform_7, window_bounds = array<i64: 3, 2, 16>}, {pipeline_mode = #tpu.pipeline_mode<synchronous>, transform_indices = @transform_8, window_bounds = array<i64: 3, 2, 16>}, {pipeline_mode = #tpu.pipeline_mode<synchronous>, transform_indices = @transform_9, window_bounds = array<i64: 16, 32>}, {pipeline_mode = #tpu.pipeline_mode<synchronous>, transform_indices = @transform_10, window_bounds = array<i64: 3, 2, 16>}, {pipeline_mode = #tpu.pipeline_mode<synchronous>, transform_indices = @transform_11, window_bounds = array<i64: 3, 2, 16>}]} {
    %0 = tpu.iota {dimensions = array<i32: 1>} : vector<1x32xi32>
    %c0 = arith.constant 0 : index
    %c0_0 = arith.constant 0 : index
    %1 = memref.load %arg1[%c0, %c0_0] : memref<2x8xi32, #tpu.memory_space<smem>>
    %2 = vector.broadcast %1 : i32 to vector<1x32xi32>
    %3 = arith.cmpi eq, %0, %2 : vector<1x32xi32>
    %4 = arith.extui %3 : vector<1x32xi1> to vector<1x32xi32>
    %5 = arith.sitofp %4 : vector<1x32xi32> to vector<1x32xf32>
    %c1 = arith.constant 1 : index
    %c0_1 = arith.constant 0 : index
    %6 = memref.load %arg1[%c1, %c0_1] : memref<2x8xi32, #tpu.memory_space<smem>>
    %7 = vector.broadcast %6 : i32 to vector<1x32xi32>
    %8 = arith.cmpi eq, %0, %7 : vector<1x32xi32>
    %9 = arith.extui %8 : vector<1x32xi1> to vector<1x32xi32>
    %10 = arith.sitofp %9 : vector<1x32xi32> to vector<1x32xf32>
    %c0_2 = arith.constant 0 : index
    %c1_3 = arith.constant 1 : index
    %11 = memref.load %arg1[%c0_2, %c1_3] : memref<2x8xi32, #tpu.memory_space<smem>>
    %12 = vector.broadcast %11 : i32 to vector<1x32xi32>
    %13 = arith.cmpi eq, %0, %12 : vector<1x32xi32>
    %14 = arith.extui %13 : vector<1x32xi1> to vector<1x32xi32>
    %15 = arith.sitofp %14 : vector<1x32xi32> to vector<1x32xf32>
    %c1_4 = arith.constant 1 : index
    %c1_5 = arith.constant 1 : index
    %16 = memref.load %arg1[%c1_4, %c1_5] : memref<2x8xi32, #tpu.memory_space<smem>>
    %17 = vector.broadcast %16 : i32 to vector<1x32xi32>
    %18 = arith.cmpi eq, %0, %17 : vector<1x32xi32>
    %19 = arith.extui %18 : vector<1x32xi1> to vector<1x32xi32>
    %20 = arith.sitofp %19 : vector<1x32xi32> to vector<1x32xf32>
    %c0_6 = arith.constant 0 : index
    %c2 = arith.constant 2 : index
    %21 = memref.load %arg1[%c0_6, %c2] : memref<2x8xi32, #tpu.memory_space<smem>>
    %22 = vector.broadcast %21 : i32 to vector<1x32xi32>
    %23 = arith.cmpi eq, %0, %22 : vector<1x32xi32>
    %24 = arith.extui %23 : vector<1x32xi1> to vector<1x32xi32>
    %25 = arith.sitofp %24 : vector<1x32xi32> to vector<1x32xf32>
    %c1_7 = arith.constant 1 : index
    %c2_8 = arith.constant 2 : index
    %26 = memref.load %arg1[%c1_7, %c2_8] : memref<2x8xi32, #tpu.memory_space<smem>>
    %27 = vector.broadcast %26 : i32 to vector<1x32xi32>
    %28 = arith.cmpi eq, %0, %27 : vector<1x32xi32>
    %29 = arith.extui %28 : vector<1x32xi1> to vector<1x32xi32>
    %30 = arith.sitofp %29 : vector<1x32xi32> to vector<1x32xf32>
    %c0_9 = arith.constant 0 : index
    %c3 = arith.constant 3 : index
    %31 = memref.load %arg1[%c0_9, %c3] : memref<2x8xi32, #tpu.memory_space<smem>>
    %32 = vector.broadcast %31 : i32 to vector<1x32xi32>
    %33 = arith.cmpi eq, %0, %32 : vector<1x32xi32>
    %34 = arith.extui %33 : vector<1x32xi1> to vector<1x32xi32>
    %35 = arith.sitofp %34 : vector<1x32xi32> to vector<1x32xf32>
    %c1_10 = arith.constant 1 : index
    %c3_11 = arith.constant 3 : index
    %36 = memref.load %arg1[%c1_10, %c3_11] : memref<2x8xi32, #tpu.memory_space<smem>>
    %37 = vector.broadcast %36 : i32 to vector<1x32xi32>
    %38 = arith.cmpi eq, %0, %37 : vector<1x32xi32>
    %39 = arith.extui %38 : vector<1x32xi1> to vector<1x32xi32>
    %40 = arith.sitofp %39 : vector<1x32xi32> to vector<1x32xf32>
    %c0_12 = arith.constant 0 : index
    %c4 = arith.constant 4 : index
    %41 = memref.load %arg1[%c0_12, %c4] : memref<2x8xi32, #tpu.memory_space<smem>>
    %42 = vector.broadcast %41 : i32 to vector<1x32xi32>
    %43 = arith.cmpi eq, %0, %42 : vector<1x32xi32>
    %44 = arith.extui %43 : vector<1x32xi1> to vector<1x32xi32>
    %45 = arith.sitofp %44 : vector<1x32xi32> to vector<1x32xf32>
    %c1_13 = arith.constant 1 : index
    %c4_14 = arith.constant 4 : index
    %46 = memref.load %arg1[%c1_13, %c4_14] : memref<2x8xi32, #tpu.memory_space<smem>>
    %47 = vector.broadcast %46 : i32 to vector<1x32xi32>
    %48 = arith.cmpi eq, %0, %47 : vector<1x32xi32>
    %49 = arith.extui %48 : vector<1x32xi1> to vector<1x32xi32>
    %50 = arith.sitofp %49 : vector<1x32xi32> to vector<1x32xf32>
    %c0_15 = arith.constant 0 : index
    %c5 = arith.constant 5 : index
    %51 = memref.load %arg1[%c0_15, %c5] : memref<2x8xi32, #tpu.memory_space<smem>>
    %52 = vector.broadcast %51 : i32 to vector<1x32xi32>
    %53 = arith.cmpi eq, %0, %52 : vector<1x32xi32>
    %54 = arith.extui %53 : vector<1x32xi1> to vector<1x32xi32>
    %55 = arith.sitofp %54 : vector<1x32xi32> to vector<1x32xf32>
    %c1_16 = arith.constant 1 : index
    %c5_17 = arith.constant 5 : index
    %56 = memref.load %arg1[%c1_16, %c5_17] : memref<2x8xi32, #tpu.memory_space<smem>>
    %57 = vector.broadcast %56 : i32 to vector<1x32xi32>
    %58 = arith.cmpi eq, %0, %57 : vector<1x32xi32>
    %59 = arith.extui %58 : vector<1x32xi1> to vector<1x32xi32>
    %60 = arith.sitofp %59 : vector<1x32xi32> to vector<1x32xf32>
    %c0_18 = arith.constant 0 : index
    %c6 = arith.constant 6 : index
    %61 = memref.load %arg1[%c0_18, %c6] : memref<2x8xi32, #tpu.memory_space<smem>>
    %62 = vector.broadcast %61 : i32 to vector<1x32xi32>
    %63 = arith.cmpi eq, %0, %62 : vector<1x32xi32>
    %64 = arith.extui %63 : vector<1x32xi1> to vector<1x32xi32>
    %65 = arith.sitofp %64 : vector<1x32xi32> to vector<1x32xf32>
    %c1_19 = arith.constant 1 : index
    %c6_20 = arith.constant 6 : index
    %66 = memref.load %arg1[%c1_19, %c6_20] : memref<2x8xi32, #tpu.memory_space<smem>>
    %67 = vector.broadcast %66 : i32 to vector<1x32xi32>
    %68 = arith.cmpi eq, %0, %67 : vector<1x32xi32>
    %69 = arith.extui %68 : vector<1x32xi1> to vector<1x32xi32>
    %70 = arith.sitofp %69 : vector<1x32xi32> to vector<1x32xf32>
    %c0_21 = arith.constant 0 : index
    %c7 = arith.constant 7 : index
    %71 = memref.load %arg1[%c0_21, %c7] : memref<2x8xi32, #tpu.memory_space<smem>>
    %72 = vector.broadcast %71 : i32 to vector<1x32xi32>
    %73 = arith.cmpi eq, %0, %72 : vector<1x32xi32>
    %74 = arith.extui %73 : vector<1x32xi1> to vector<1x32xi32>
    %75 = arith.sitofp %74 : vector<1x32xi32> to vector<1x32xf32>
    %c1_22 = arith.constant 1 : index
    %c7_23 = arith.constant 7 : index
    %76 = memref.load %arg1[%c1_22, %c7_23] : memref<2x8xi32, #tpu.memory_space<smem>>
    %77 = vector.broadcast %76 : i32 to vector<1x32xi32>
    %78 = arith.cmpi eq, %0, %77 : vector<1x32xi32>
    %79 = arith.extui %78 : vector<1x32xi1> to vector<1x32xi32>
    %80 = arith.sitofp %79 : vector<1x32xi32> to vector<1x32xf32>
    %81 = tpu.concatenate %5, %10, %15, %20, %25, %30, %35, %40, %45, %50, %55, %60, %65, %70, %75, %80 in 0 : vector<1x32xf32>, vector<1x32xf32>, vector<1x32xf32>, vector<1x32xf32>, vector<1x32xf32>, vector<1x32xf32>, vector<1x32xf32>, vector<1x32xf32>, vector<1x32xf32>, vector<1x32xf32>, vector<1x32xf32>, vector<1x32xf32>, vector<1x32xf32>, vector<1x32xf32>, vector<1x32xf32>, vector<1x32xf32> -> vector<16x32xf32>
    %c0_24 = arith.constant 0 : index
    %c0_25 = arith.constant 0 : index
    %82 = vector.load %arg2[%c0_24, %c0_25] : memref<32x16xf32, #tpu.memory_space<vmem>>, vector<32x16xf32>
    %cst = arith.constant dense<0.000000e+00> : vector<16x16xf32>
    %83 = tpu.matmul %81, %82, %cst {dimension_numbers = #tpu.dot_dimension_numbers<[1], [0], [0], [1], [0, 0, 1, 1], [], []>} : vector<16x32xf32>, vector<32x16xf32>, vector<16x16xf32> -> vector<16x16xf32>
    %c0_26 = arith.constant 0 : index
    %c0_27 = arith.constant 0 : index
    %c0_28 = arith.constant 0 : index
    %84 = vector.load %arg6[%c0_26, %c0_27, %c0_28] : memref<3x1x64xf32, #tpu.memory_space<vmem>>, vector<1x1x64xf32>
    %85 = vector.shape_cast %84 : vector<1x1x64xf32> to vector<1x64xf32>
    %c1_29 = arith.constant 1 : index
    %c0_30 = arith.constant 0 : index
    %c0_31 = arith.constant 0 : index
    %86 = vector.load %arg6[%c1_29, %c0_30, %c0_31] : memref<3x1x64xf32, #tpu.memory_space<vmem>>, vector<1x1x64xf32>
    %87 = vector.shape_cast %86 : vector<1x1x64xf32> to vector<1x64xf32>
    %c2_32 = arith.constant 2 : index
    %c0_33 = arith.constant 0 : index
    %c0_34 = arith.constant 0 : index
    %88 = vector.load %arg6[%c2_32, %c0_33, %c0_34] : memref<3x1x64xf32, #tpu.memory_space<vmem>>, vector<1x1x64xf32>
    %89 = vector.shape_cast %88 : vector<1x1x64xf32> to vector<1x64xf32>
    %c0_35 = arith.constant 0 : index
    %c0_36 = arith.constant 0 : index
    %90 = vector.load %arg3[%c0_35, %c0_36] : memref<16x64xf32, #tpu.memory_space<vmem>>, vector<16x64xf32>
    %cst_37 = arith.constant dense<0.000000e+00> : vector<16x64xf32>
    %91 = tpu.matmul %83, %90, %cst_37 {dimension_numbers = #tpu.dot_dimension_numbers<[1], [0], [0], [1], [0, 0, 1, 1], [], []>} : vector<16x16xf32>, vector<16x64xf32>, vector<16x64xf32> -> vector<16x64xf32>
    %92 = vector.broadcast %85 : vector<1x64xf32> to vector<16x64xf32>
    %93 = arith.addf %91, %92 : vector<16x64xf32>
    %c0_38 = arith.constant 0 : index
    %c0_39 = arith.constant 0 : index
    %94 = vector.load %arg4[%c0_38, %c0_39] : memref<16x64xf32, #tpu.memory_space<vmem>>, vector<16x64xf32>
    %c0_40 = arith.constant 0 : index
    %c0_41 = arith.constant 0 : index
    %c0_42 = arith.constant 0 : index
    %95 = vector.load %arg5[%c0_40, %c0_41, %c0_42] : memref<2x32x64xf32, #tpu.memory_space<vmem>>, vector<1x32x64xf32>
    %96 = vector.shape_cast %95 : vector<1x32x64xf32> to vector<32x64xf32>
    %c1_43 = arith.constant 1 : index
    %c0_44 = arith.constant 0 : index
    %c0_45 = arith.constant 0 : index
    %97 = vector.load %arg5[%c1_43, %c0_44, %c0_45] : memref<2x32x64xf32, #tpu.memory_space<vmem>>, vector<1x32x64xf32>
    %98 = vector.shape_cast %97 : vector<1x32x64xf32> to vector<32x64xf32>
    %c0_46 = arith.constant 0 : index
    %c0_47 = arith.constant 0 : index
    %c0_48 = arith.constant 0 : index
    %99 = vector.load %arg9[%c0_46, %c0_47, %c0_48] : memref<3x2x16xf32, #tpu.memory_space<vmem>>, vector<1x2x16xf32>
    %100 = vector.shape_cast %99 : vector<1x2x16xf32> to vector<2x16xf32>
    %c1_49 = arith.constant 1 : index
    %c0_50 = arith.constant 0 : index
    %c0_51 = arith.constant 0 : index
    %101 = vector.load %arg9[%c1_49, %c0_50, %c0_51] : memref<3x2x16xf32, #tpu.memory_space<vmem>>, vector<1x2x16xf32>
    %102 = vector.shape_cast %101 : vector<1x2x16xf32> to vector<2x16xf32>
    %c2_52 = arith.constant 2 : index
    %c0_53 = arith.constant 0 : index
    %c0_54 = arith.constant 0 : index
    %103 = vector.load %arg9[%c2_52, %c0_53, %c0_54] : memref<3x2x16xf32, #tpu.memory_space<vmem>>, vector<1x2x16xf32>
    %104 = vector.shape_cast %103 : vector<1x2x16xf32> to vector<2x16xf32>
    %c0_55 = arith.constant 0 : index
    %c0_56 = arith.constant 0 : index
    %c0_57 = arith.constant 0 : index
    %105 = vector.load %arg10[%c0_55, %c0_56, %c0_57] : memref<3x2x16xf32, #tpu.memory_space<vmem>>, vector<1x2x16xf32>
    %106 = vector.shape_cast %105 : vector<1x2x16xf32> to vector<2x16xf32>
    %c1_58 = arith.constant 1 : index
    %c0_59 = arith.constant 0 : index
    %c0_60 = arith.constant 0 : index
    %107 = vector.load %arg10[%c1_58, %c0_59, %c0_60] : memref<3x2x16xf32, #tpu.memory_space<vmem>>, vector<1x2x16xf32>
    %108 = vector.shape_cast %107 : vector<1x2x16xf32> to vector<2x16xf32>
    %c2_61 = arith.constant 2 : index
    %c0_62 = arith.constant 0 : index
    %c0_63 = arith.constant 0 : index
    %109 = vector.load %arg10[%c2_61, %c0_62, %c0_63] : memref<3x2x16xf32, #tpu.memory_space<vmem>>, vector<1x2x16xf32>
    %110 = vector.shape_cast %109 : vector<1x2x16xf32> to vector<2x16xf32>
    %111 = vector.extract_strided_slice %93 {offsets = [0, 0], sizes = [2, 64], strides = [1, 1]} : vector<16x64xf32> to vector<2x64xf32>
    %cst_64 = arith.constant dense<0.000000e+00> : vector<2x64xf32>
    %112 = tpu.matmul %100, %94, %cst_64 {dimension_numbers = #tpu.dot_dimension_numbers<[1], [0], [0], [1], [0, 0, 1, 1], [], []>} : vector<2x16xf32>, vector<16x64xf32>, vector<2x64xf32> -> vector<2x64xf32>
    %113 = arith.addf %111, %112 : vector<2x64xf32>
    %114 = vector.extract_strided_slice %113 {offsets = [0, 0], sizes = [2, 48], strides = [1, 1]} : vector<2x64xf32> to vector<2x48xf32>
    %115 = arith.negf %114 : vector<2x48xf32>
    %116 = math.exp %115 : vector<2x48xf32>
    %cst_65 = arith.constant 1.000000e+00 : f32
    %117 = vector.broadcast %cst_65 : f32 to vector<2x48xf32>
    %118 = arith.addf %117, %116 : vector<2x48xf32>
    %119 = arith.divf %117, %118 : vector<2x48xf32>
    %120 = vector.extract_strided_slice %113 {offsets = [0, 48], sizes = [2, 16], strides = [1, 1]} : vector<2x64xf32> to vector<2x16xf32>
    %121 = math.tanh %120 : vector<2x16xf32>
    %122 = vector.extract_strided_slice %119 {offsets = [0, 0], sizes = [2, 16], strides = [1, 1]} : vector<2x48xf32> to vector<2x16xf32>
    %123 = vector.extract_strided_slice %119 {offsets = [0, 16], sizes = [2, 16], strides = [1, 1]} : vector<2x48xf32> to vector<2x16xf32>
    %124 = vector.extract_strided_slice %119 {offsets = [0, 32], sizes = [2, 16], strides = [1, 1]} : vector<2x48xf32> to vector<2x16xf32>
    %125 = arith.mulf %123, %106 : vector<2x16xf32>
    %126 = arith.mulf %122, %121 : vector<2x16xf32>
    %127 = arith.addf %125, %126 : vector<2x16xf32>
    %128 = math.tanh %127 : vector<2x16xf32>
    %129 = arith.mulf %124, %128 : vector<2x16xf32>
    %130 = tpu.concatenate %129, %102 in 1 : vector<2x16xf32>, vector<2x16xf32> -> vector<2x32xf32>
    %cst_66 = arith.constant dense<0.000000e+00> : vector<2x64xf32>
    %131 = tpu.matmul %130, %96, %cst_66 {dimension_numbers = #tpu.dot_dimension_numbers<[1], [0], [0], [1], [0, 0, 1, 1], [], []>} : vector<2x32xf32>, vector<32x64xf32>, vector<2x64xf32> -> vector<2x64xf32>
    %132 = vector.broadcast %87 : vector<1x64xf32> to vector<2x64xf32>
    %133 = arith.addf %131, %132 : vector<2x64xf32>
    %134 = vector.extract_strided_slice %133 {offsets = [0, 0], sizes = [2, 48], strides = [1, 1]} : vector<2x64xf32> to vector<2x48xf32>
    %135 = arith.negf %134 : vector<2x48xf32>
    %136 = math.exp %135 : vector<2x48xf32>
    %cst_67 = arith.constant 1.000000e+00 : f32
    %137 = vector.broadcast %cst_67 : f32 to vector<2x48xf32>
    %138 = arith.addf %137, %136 : vector<2x48xf32>
    %139 = arith.divf %137, %138 : vector<2x48xf32>
    %140 = vector.extract_strided_slice %133 {offsets = [0, 48], sizes = [2, 16], strides = [1, 1]} : vector<2x64xf32> to vector<2x16xf32>
    %141 = math.tanh %140 : vector<2x16xf32>
    %142 = vector.extract_strided_slice %139 {offsets = [0, 0], sizes = [2, 16], strides = [1, 1]} : vector<2x48xf32> to vector<2x16xf32>
    %143 = vector.extract_strided_slice %139 {offsets = [0, 16], sizes = [2, 16], strides = [1, 1]} : vector<2x48xf32> to vector<2x16xf32>
    %144 = vector.extract_strided_slice %139 {offsets = [0, 32], sizes = [2, 16], strides = [1, 1]} : vector<2x48xf32> to vector<2x16xf32>
    %145 = arith.mulf %143, %108 : vector<2x16xf32>
    %146 = arith.mulf %142, %141 : vector<2x16xf32>
    %147 = arith.addf %145, %146 : vector<2x16xf32>
    %148 = math.tanh %147 : vector<2x16xf32>
    %149 = arith.mulf %144, %148 : vector<2x16xf32>
    %150 = tpu.concatenate %149, %104 in 1 : vector<2x16xf32>, vector<2x16xf32> -> vector<2x32xf32>
    %cst_68 = arith.constant dense<0.000000e+00> : vector<2x64xf32>
    %151 = tpu.matmul %150, %98, %cst_68 {dimension_numbers = #tpu.dot_dimension_numbers<[1], [0], [0], [1], [0, 0, 1, 1], [], []>} : vector<2x32xf32>, vector<32x64xf32>, vector<2x64xf32> -> vector<2x64xf32>
    %152 = vector.broadcast %89 : vector<1x64xf32> to vector<2x64xf32>
    %153 = arith.addf %151, %152 : vector<2x64xf32>
    %154 = vector.extract_strided_slice %153 {offsets = [0, 0], sizes = [2, 48], strides = [1, 1]} : vector<2x64xf32> to vector<2x48xf32>
    %155 = arith.negf %154 : vector<2x48xf32>
    %156 = math.exp %155 : vector<2x48xf32>
    %cst_69 = arith.constant 1.000000e+00 : f32
    %157 = vector.broadcast %cst_69 : f32 to vector<2x48xf32>
    %158 = arith.addf %157, %156 : vector<2x48xf32>
    %159 = arith.divf %157, %158 : vector<2x48xf32>
    %160 = vector.extract_strided_slice %153 {offsets = [0, 48], sizes = [2, 16], strides = [1, 1]} : vector<2x64xf32> to vector<2x16xf32>
    %161 = math.tanh %160 : vector<2x16xf32>
    %162 = vector.extract_strided_slice %159 {offsets = [0, 0], sizes = [2, 16], strides = [1, 1]} : vector<2x48xf32> to vector<2x16xf32>
    %163 = vector.extract_strided_slice %159 {offsets = [0, 16], sizes = [2, 16], strides = [1, 1]} : vector<2x48xf32> to vector<2x16xf32>
    %164 = vector.extract_strided_slice %159 {offsets = [0, 32], sizes = [2, 16], strides = [1, 1]} : vector<2x48xf32> to vector<2x16xf32>
    %165 = arith.mulf %163, %110 : vector<2x16xf32>
    %166 = arith.mulf %162, %161 : vector<2x16xf32>
    %167 = arith.addf %165, %166 : vector<2x16xf32>
    %168 = math.tanh %167 : vector<2x16xf32>
    %169 = arith.mulf %164, %168 : vector<2x16xf32>
    %170 = vector.extract_strided_slice %93 {offsets = [2, 0], sizes = [2, 64], strides = [1, 1]} : vector<16x64xf32> to vector<2x64xf32>
    %cst_70 = arith.constant dense<0.000000e+00> : vector<2x64xf32>
    %171 = tpu.matmul %129, %94, %cst_70 {dimension_numbers = #tpu.dot_dimension_numbers<[1], [0], [0], [1], [0, 0, 1, 1], [], []>} : vector<2x16xf32>, vector<16x64xf32>, vector<2x64xf32> -> vector<2x64xf32>
    %172 = arith.addf %170, %171 : vector<2x64xf32>
    %173 = vector.extract_strided_slice %172 {offsets = [0, 0], sizes = [2, 48], strides = [1, 1]} : vector<2x64xf32> to vector<2x48xf32>
    %174 = arith.negf %173 : vector<2x48xf32>
    %175 = math.exp %174 : vector<2x48xf32>
    %cst_71 = arith.constant 1.000000e+00 : f32
    %176 = vector.broadcast %cst_71 : f32 to vector<2x48xf32>
    %177 = arith.addf %176, %175 : vector<2x48xf32>
    %178 = arith.divf %176, %177 : vector<2x48xf32>
    %179 = vector.extract_strided_slice %172 {offsets = [0, 48], sizes = [2, 16], strides = [1, 1]} : vector<2x64xf32> to vector<2x16xf32>
    %180 = math.tanh %179 : vector<2x16xf32>
    %181 = vector.extract_strided_slice %178 {offsets = [0, 0], sizes = [2, 16], strides = [1, 1]} : vector<2x48xf32> to vector<2x16xf32>
    %182 = vector.extract_strided_slice %178 {offsets = [0, 16], sizes = [2, 16], strides = [1, 1]} : vector<2x48xf32> to vector<2x16xf32>
    %183 = vector.extract_strided_slice %178 {offsets = [0, 32], sizes = [2, 16], strides = [1, 1]} : vector<2x48xf32> to vector<2x16xf32>
    %184 = arith.mulf %182, %127 : vector<2x16xf32>
    %185 = arith.mulf %181, %180 : vector<2x16xf32>
    %186 = arith.addf %184, %185 : vector<2x16xf32>
    %187 = math.tanh %186 : vector<2x16xf32>
    %188 = arith.mulf %183, %187 : vector<2x16xf32>
    %189 = tpu.concatenate %188, %149 in 1 : vector<2x16xf32>, vector<2x16xf32> -> vector<2x32xf32>
    %cst_72 = arith.constant dense<0.000000e+00> : vector<2x64xf32>
    %190 = tpu.matmul %189, %96, %cst_72 {dimension_numbers = #tpu.dot_dimension_numbers<[1], [0], [0], [1], [0, 0, 1, 1], [], []>} : vector<2x32xf32>, vector<32x64xf32>, vector<2x64xf32> -> vector<2x64xf32>
    %191 = vector.broadcast %87 : vector<1x64xf32> to vector<2x64xf32>
    %192 = arith.addf %190, %191 : vector<2x64xf32>
    %193 = vector.extract_strided_slice %192 {offsets = [0, 0], sizes = [2, 48], strides = [1, 1]} : vector<2x64xf32> to vector<2x48xf32>
    %194 = arith.negf %193 : vector<2x48xf32>
    %195 = math.exp %194 : vector<2x48xf32>
    %cst_73 = arith.constant 1.000000e+00 : f32
    %196 = vector.broadcast %cst_73 : f32 to vector<2x48xf32>
    %197 = arith.addf %196, %195 : vector<2x48xf32>
    %198 = arith.divf %196, %197 : vector<2x48xf32>
    %199 = vector.extract_strided_slice %192 {offsets = [0, 48], sizes = [2, 16], strides = [1, 1]} : vector<2x64xf32> to vector<2x16xf32>
    %200 = math.tanh %199 : vector<2x16xf32>
    %201 = vector.extract_strided_slice %198 {offsets = [0, 0], sizes = [2, 16], strides = [1, 1]} : vector<2x48xf32> to vector<2x16xf32>
    %202 = vector.extract_strided_slice %198 {offsets = [0, 16], sizes = [2, 16], strides = [1, 1]} : vector<2x48xf32> to vector<2x16xf32>
    %203 = vector.extract_strided_slice %198 {offsets = [0, 32], sizes = [2, 16], strides = [1, 1]} : vector<2x48xf32> to vector<2x16xf32>
    %204 = arith.mulf %202, %147 : vector<2x16xf32>
    %205 = arith.mulf %201, %200 : vector<2x16xf32>
    %206 = arith.addf %204, %205 : vector<2x16xf32>
    %207 = math.tanh %206 : vector<2x16xf32>
    %208 = arith.mulf %203, %207 : vector<2x16xf32>
    %209 = tpu.concatenate %208, %169 in 1 : vector<2x16xf32>, vector<2x16xf32> -> vector<2x32xf32>
    %cst_74 = arith.constant dense<0.000000e+00> : vector<2x64xf32>
    %210 = tpu.matmul %209, %98, %cst_74 {dimension_numbers = #tpu.dot_dimension_numbers<[1], [0], [0], [1], [0, 0, 1, 1], [], []>} : vector<2x32xf32>, vector<32x64xf32>, vector<2x64xf32> -> vector<2x64xf32>
    %211 = vector.broadcast %89 : vector<1x64xf32> to vector<2x64xf32>
    %212 = arith.addf %210, %211 : vector<2x64xf32>
    %213 = vector.extract_strided_slice %212 {offsets = [0, 0], sizes = [2, 48], strides = [1, 1]} : vector<2x64xf32> to vector<2x48xf32>
    %214 = arith.negf %213 : vector<2x48xf32>
    %215 = math.exp %214 : vector<2x48xf32>
    %cst_75 = arith.constant 1.000000e+00 : f32
    %216 = vector.broadcast %cst_75 : f32 to vector<2x48xf32>
    %217 = arith.addf %216, %215 : vector<2x48xf32>
    %218 = arith.divf %216, %217 : vector<2x48xf32>
    %219 = vector.extract_strided_slice %212 {offsets = [0, 48], sizes = [2, 16], strides = [1, 1]} : vector<2x64xf32> to vector<2x16xf32>
    %220 = math.tanh %219 : vector<2x16xf32>
    %221 = vector.extract_strided_slice %218 {offsets = [0, 0], sizes = [2, 16], strides = [1, 1]} : vector<2x48xf32> to vector<2x16xf32>
    %222 = vector.extract_strided_slice %218 {offsets = [0, 16], sizes = [2, 16], strides = [1, 1]} : vector<2x48xf32> to vector<2x16xf32>
    %223 = vector.extract_strided_slice %218 {offsets = [0, 32], sizes = [2, 16], strides = [1, 1]} : vector<2x48xf32> to vector<2x16xf32>
    %224 = arith.mulf %222, %167 : vector<2x16xf32>
    %225 = arith.mulf %221, %220 : vector<2x16xf32>
    %226 = arith.addf %224, %225 : vector<2x16xf32>
    %227 = math.tanh %226 : vector<2x16xf32>
    %228 = arith.mulf %223, %227 : vector<2x16xf32>
    %229 = vector.extract_strided_slice %93 {offsets = [4, 0], sizes = [2, 64], strides = [1, 1]} : vector<16x64xf32> to vector<2x64xf32>
    %cst_76 = arith.constant dense<0.000000e+00> : vector<2x64xf32>
    %230 = tpu.matmul %188, %94, %cst_76 {dimension_numbers = #tpu.dot_dimension_numbers<[1], [0], [0], [1], [0, 0, 1, 1], [], []>} : vector<2x16xf32>, vector<16x64xf32>, vector<2x64xf32> -> vector<2x64xf32>
    %231 = arith.addf %229, %230 : vector<2x64xf32>
    %232 = vector.extract_strided_slice %231 {offsets = [0, 0], sizes = [2, 48], strides = [1, 1]} : vector<2x64xf32> to vector<2x48xf32>
    %233 = arith.negf %232 : vector<2x48xf32>
    %234 = math.exp %233 : vector<2x48xf32>
    %cst_77 = arith.constant 1.000000e+00 : f32
    %235 = vector.broadcast %cst_77 : f32 to vector<2x48xf32>
    %236 = arith.addf %235, %234 : vector<2x48xf32>
    %237 = arith.divf %235, %236 : vector<2x48xf32>
    %238 = vector.extract_strided_slice %231 {offsets = [0, 48], sizes = [2, 16], strides = [1, 1]} : vector<2x64xf32> to vector<2x16xf32>
    %239 = math.tanh %238 : vector<2x16xf32>
    %240 = vector.extract_strided_slice %237 {offsets = [0, 0], sizes = [2, 16], strides = [1, 1]} : vector<2x48xf32> to vector<2x16xf32>
    %241 = vector.extract_strided_slice %237 {offsets = [0, 16], sizes = [2, 16], strides = [1, 1]} : vector<2x48xf32> to vector<2x16xf32>
    %242 = vector.extract_strided_slice %237 {offsets = [0, 32], sizes = [2, 16], strides = [1, 1]} : vector<2x48xf32> to vector<2x16xf32>
    %243 = arith.mulf %241, %186 : vector<2x16xf32>
    %244 = arith.mulf %240, %239 : vector<2x16xf32>
    %245 = arith.addf %243, %244 : vector<2x16xf32>
    %246 = math.tanh %245 : vector<2x16xf32>
    %247 = arith.mulf %242, %246 : vector<2x16xf32>
    %248 = tpu.concatenate %247, %208 in 1 : vector<2x16xf32>, vector<2x16xf32> -> vector<2x32xf32>
    %cst_78 = arith.constant dense<0.000000e+00> : vector<2x64xf32>
    %249 = tpu.matmul %248, %96, %cst_78 {dimension_numbers = #tpu.dot_dimension_numbers<[1], [0], [0], [1], [0, 0, 1, 1], [], []>} : vector<2x32xf32>, vector<32x64xf32>, vector<2x64xf32> -> vector<2x64xf32>
    %250 = vector.broadcast %87 : vector<1x64xf32> to vector<2x64xf32>
    %251 = arith.addf %249, %250 : vector<2x64xf32>
    %252 = vector.extract_strided_slice %251 {offsets = [0, 0], sizes = [2, 48], strides = [1, 1]} : vector<2x64xf32> to vector<2x48xf32>
    %253 = arith.negf %252 : vector<2x48xf32>
    %254 = math.exp %253 : vector<2x48xf32>
    %cst_79 = arith.constant 1.000000e+00 : f32
    %255 = vector.broadcast %cst_79 : f32 to vector<2x48xf32>
    %256 = arith.addf %255, %254 : vector<2x48xf32>
    %257 = arith.divf %255, %256 : vector<2x48xf32>
    %258 = vector.extract_strided_slice %251 {offsets = [0, 48], sizes = [2, 16], strides = [1, 1]} : vector<2x64xf32> to vector<2x16xf32>
    %259 = math.tanh %258 : vector<2x16xf32>
    %260 = vector.extract_strided_slice %257 {offsets = [0, 0], sizes = [2, 16], strides = [1, 1]} : vector<2x48xf32> to vector<2x16xf32>
    %261 = vector.extract_strided_slice %257 {offsets = [0, 16], sizes = [2, 16], strides = [1, 1]} : vector<2x48xf32> to vector<2x16xf32>
    %262 = vector.extract_strided_slice %257 {offsets = [0, 32], sizes = [2, 16], strides = [1, 1]} : vector<2x48xf32> to vector<2x16xf32>
    %263 = arith.mulf %261, %206 : vector<2x16xf32>
    %264 = arith.mulf %260, %259 : vector<2x16xf32>
    %265 = arith.addf %263, %264 : vector<2x16xf32>
    %266 = math.tanh %265 : vector<2x16xf32>
    %267 = arith.mulf %262, %266 : vector<2x16xf32>
    %268 = tpu.concatenate %267, %228 in 1 : vector<2x16xf32>, vector<2x16xf32> -> vector<2x32xf32>
    %cst_80 = arith.constant dense<0.000000e+00> : vector<2x64xf32>
    %269 = tpu.matmul %268, %98, %cst_80 {dimension_numbers = #tpu.dot_dimension_numbers<[1], [0], [0], [1], [0, 0, 1, 1], [], []>} : vector<2x32xf32>, vector<32x64xf32>, vector<2x64xf32> -> vector<2x64xf32>
    %270 = vector.broadcast %89 : vector<1x64xf32> to vector<2x64xf32>
    %271 = arith.addf %269, %270 : vector<2x64xf32>
    %272 = vector.extract_strided_slice %271 {offsets = [0, 0], sizes = [2, 48], strides = [1, 1]} : vector<2x64xf32> to vector<2x48xf32>
    %273 = arith.negf %272 : vector<2x48xf32>
    %274 = math.exp %273 : vector<2x48xf32>
    %cst_81 = arith.constant 1.000000e+00 : f32
    %275 = vector.broadcast %cst_81 : f32 to vector<2x48xf32>
    %276 = arith.addf %275, %274 : vector<2x48xf32>
    %277 = arith.divf %275, %276 : vector<2x48xf32>
    %278 = vector.extract_strided_slice %271 {offsets = [0, 48], sizes = [2, 16], strides = [1, 1]} : vector<2x64xf32> to vector<2x16xf32>
    %279 = math.tanh %278 : vector<2x16xf32>
    %280 = vector.extract_strided_slice %277 {offsets = [0, 0], sizes = [2, 16], strides = [1, 1]} : vector<2x48xf32> to vector<2x16xf32>
    %281 = vector.extract_strided_slice %277 {offsets = [0, 16], sizes = [2, 16], strides = [1, 1]} : vector<2x48xf32> to vector<2x16xf32>
    %282 = vector.extract_strided_slice %277 {offsets = [0, 32], sizes = [2, 16], strides = [1, 1]} : vector<2x48xf32> to vector<2x16xf32>
    %283 = arith.mulf %281, %226 : vector<2x16xf32>
    %284 = arith.mulf %280, %279 : vector<2x16xf32>
    %285 = arith.addf %283, %284 : vector<2x16xf32>
    %286 = math.tanh %285 : vector<2x16xf32>
    %287 = arith.mulf %282, %286 : vector<2x16xf32>
    %288 = vector.extract_strided_slice %93 {offsets = [6, 0], sizes = [2, 64], strides = [1, 1]} : vector<16x64xf32> to vector<2x64xf32>
    %cst_82 = arith.constant dense<0.000000e+00> : vector<2x64xf32>
    %289 = tpu.matmul %247, %94, %cst_82 {dimension_numbers = #tpu.dot_dimension_numbers<[1], [0], [0], [1], [0, 0, 1, 1], [], []>} : vector<2x16xf32>, vector<16x64xf32>, vector<2x64xf32> -> vector<2x64xf32>
    %290 = arith.addf %288, %289 : vector<2x64xf32>
    %291 = vector.extract_strided_slice %290 {offsets = [0, 0], sizes = [2, 48], strides = [1, 1]} : vector<2x64xf32> to vector<2x48xf32>
    %292 = arith.negf %291 : vector<2x48xf32>
    %293 = math.exp %292 : vector<2x48xf32>
    %cst_83 = arith.constant 1.000000e+00 : f32
    %294 = vector.broadcast %cst_83 : f32 to vector<2x48xf32>
    %295 = arith.addf %294, %293 : vector<2x48xf32>
    %296 = arith.divf %294, %295 : vector<2x48xf32>
    %297 = vector.extract_strided_slice %290 {offsets = [0, 48], sizes = [2, 16], strides = [1, 1]} : vector<2x64xf32> to vector<2x16xf32>
    %298 = math.tanh %297 : vector<2x16xf32>
    %299 = vector.extract_strided_slice %296 {offsets = [0, 0], sizes = [2, 16], strides = [1, 1]} : vector<2x48xf32> to vector<2x16xf32>
    %300 = vector.extract_strided_slice %296 {offsets = [0, 16], sizes = [2, 16], strides = [1, 1]} : vector<2x48xf32> to vector<2x16xf32>
    %301 = vector.extract_strided_slice %296 {offsets = [0, 32], sizes = [2, 16], strides = [1, 1]} : vector<2x48xf32> to vector<2x16xf32>
    %302 = arith.mulf %300, %245 : vector<2x16xf32>
    %303 = arith.mulf %299, %298 : vector<2x16xf32>
    %304 = arith.addf %302, %303 : vector<2x16xf32>
    %305 = math.tanh %304 : vector<2x16xf32>
    %306 = arith.mulf %301, %305 : vector<2x16xf32>
    %307 = tpu.concatenate %306, %267 in 1 : vector<2x16xf32>, vector<2x16xf32> -> vector<2x32xf32>
    %cst_84 = arith.constant dense<0.000000e+00> : vector<2x64xf32>
    %308 = tpu.matmul %307, %96, %cst_84 {dimension_numbers = #tpu.dot_dimension_numbers<[1], [0], [0], [1], [0, 0, 1, 1], [], []>} : vector<2x32xf32>, vector<32x64xf32>, vector<2x64xf32> -> vector<2x64xf32>
    %309 = vector.broadcast %87 : vector<1x64xf32> to vector<2x64xf32>
    %310 = arith.addf %308, %309 : vector<2x64xf32>
    %311 = vector.extract_strided_slice %310 {offsets = [0, 0], sizes = [2, 48], strides = [1, 1]} : vector<2x64xf32> to vector<2x48xf32>
    %312 = arith.negf %311 : vector<2x48xf32>
    %313 = math.exp %312 : vector<2x48xf32>
    %cst_85 = arith.constant 1.000000e+00 : f32
    %314 = vector.broadcast %cst_85 : f32 to vector<2x48xf32>
    %315 = arith.addf %314, %313 : vector<2x48xf32>
    %316 = arith.divf %314, %315 : vector<2x48xf32>
    %317 = vector.extract_strided_slice %310 {offsets = [0, 48], sizes = [2, 16], strides = [1, 1]} : vector<2x64xf32> to vector<2x16xf32>
    %318 = math.tanh %317 : vector<2x16xf32>
    %319 = vector.extract_strided_slice %316 {offsets = [0, 0], sizes = [2, 16], strides = [1, 1]} : vector<2x48xf32> to vector<2x16xf32>
    %320 = vector.extract_strided_slice %316 {offsets = [0, 16], sizes = [2, 16], strides = [1, 1]} : vector<2x48xf32> to vector<2x16xf32>
    %321 = vector.extract_strided_slice %316 {offsets = [0, 32], sizes = [2, 16], strides = [1, 1]} : vector<2x48xf32> to vector<2x16xf32>
    %322 = arith.mulf %320, %265 : vector<2x16xf32>
    %323 = arith.mulf %319, %318 : vector<2x16xf32>
    %324 = arith.addf %322, %323 : vector<2x16xf32>
    %325 = math.tanh %324 : vector<2x16xf32>
    %326 = arith.mulf %321, %325 : vector<2x16xf32>
    %327 = tpu.concatenate %326, %287 in 1 : vector<2x16xf32>, vector<2x16xf32> -> vector<2x32xf32>
    %cst_86 = arith.constant dense<0.000000e+00> : vector<2x64xf32>
    %328 = tpu.matmul %327, %98, %cst_86 {dimension_numbers = #tpu.dot_dimension_numbers<[1], [0], [0], [1], [0, 0, 1, 1], [], []>} : vector<2x32xf32>, vector<32x64xf32>, vector<2x64xf32> -> vector<2x64xf32>
    %329 = vector.broadcast %89 : vector<1x64xf32> to vector<2x64xf32>
    %330 = arith.addf %328, %329 : vector<2x64xf32>
    %331 = vector.extract_strided_slice %330 {offsets = [0, 0], sizes = [2, 48], strides = [1, 1]} : vector<2x64xf32> to vector<2x48xf32>
    %332 = arith.negf %331 : vector<2x48xf32>
    %333 = math.exp %332 : vector<2x48xf32>
    %cst_87 = arith.constant 1.000000e+00 : f32
    %334 = vector.broadcast %cst_87 : f32 to vector<2x48xf32>
    %335 = arith.addf %334, %333 : vector<2x48xf32>
    %336 = arith.divf %334, %335 : vector<2x48xf32>
    %337 = vector.extract_strided_slice %330 {offsets = [0, 48], sizes = [2, 16], strides = [1, 1]} : vector<2x64xf32> to vector<2x16xf32>
    %338 = math.tanh %337 : vector<2x16xf32>
    %339 = vector.extract_strided_slice %336 {offsets = [0, 0], sizes = [2, 16], strides = [1, 1]} : vector<2x48xf32> to vector<2x16xf32>
    %340 = vector.extract_strided_slice %336 {offsets = [0, 16], sizes = [2, 16], strides = [1, 1]} : vector<2x48xf32> to vector<2x16xf32>
    %341 = vector.extract_strided_slice %336 {offsets = [0, 32], sizes = [2, 16], strides = [1, 1]} : vector<2x48xf32> to vector<2x16xf32>
    %342 = arith.mulf %340, %285 : vector<2x16xf32>
    %343 = arith.mulf %339, %338 : vector<2x16xf32>
    %344 = arith.addf %342, %343 : vector<2x16xf32>
    %345 = math.tanh %344 : vector<2x16xf32>
    %346 = arith.mulf %341, %345 : vector<2x16xf32>
    %347 = vector.extract_strided_slice %93 {offsets = [8, 0], sizes = [2, 64], strides = [1, 1]} : vector<16x64xf32> to vector<2x64xf32>
    %cst_88 = arith.constant dense<0.000000e+00> : vector<2x64xf32>
    %348 = tpu.matmul %306, %94, %cst_88 {dimension_numbers = #tpu.dot_dimension_numbers<[1], [0], [0], [1], [0, 0, 1, 1], [], []>} : vector<2x16xf32>, vector<16x64xf32>, vector<2x64xf32> -> vector<2x64xf32>
    %349 = arith.addf %347, %348 : vector<2x64xf32>
    %350 = vector.extract_strided_slice %349 {offsets = [0, 0], sizes = [2, 48], strides = [1, 1]} : vector<2x64xf32> to vector<2x48xf32>
    %351 = arith.negf %350 : vector<2x48xf32>
    %352 = math.exp %351 : vector<2x48xf32>
    %cst_89 = arith.constant 1.000000e+00 : f32
    %353 = vector.broadcast %cst_89 : f32 to vector<2x48xf32>
    %354 = arith.addf %353, %352 : vector<2x48xf32>
    %355 = arith.divf %353, %354 : vector<2x48xf32>
    %356 = vector.extract_strided_slice %349 {offsets = [0, 48], sizes = [2, 16], strides = [1, 1]} : vector<2x64xf32> to vector<2x16xf32>
    %357 = math.tanh %356 : vector<2x16xf32>
    %358 = vector.extract_strided_slice %355 {offsets = [0, 0], sizes = [2, 16], strides = [1, 1]} : vector<2x48xf32> to vector<2x16xf32>
    %359 = vector.extract_strided_slice %355 {offsets = [0, 16], sizes = [2, 16], strides = [1, 1]} : vector<2x48xf32> to vector<2x16xf32>
    %360 = vector.extract_strided_slice %355 {offsets = [0, 32], sizes = [2, 16], strides = [1, 1]} : vector<2x48xf32> to vector<2x16xf32>
    %361 = arith.mulf %359, %304 : vector<2x16xf32>
    %362 = arith.mulf %358, %357 : vector<2x16xf32>
    %363 = arith.addf %361, %362 : vector<2x16xf32>
    %364 = math.tanh %363 : vector<2x16xf32>
    %365 = arith.mulf %360, %364 : vector<2x16xf32>
    %366 = tpu.concatenate %365, %326 in 1 : vector<2x16xf32>, vector<2x16xf32> -> vector<2x32xf32>
    %cst_90 = arith.constant dense<0.000000e+00> : vector<2x64xf32>
    %367 = tpu.matmul %366, %96, %cst_90 {dimension_numbers = #tpu.dot_dimension_numbers<[1], [0], [0], [1], [0, 0, 1, 1], [], []>} : vector<2x32xf32>, vector<32x64xf32>, vector<2x64xf32> -> vector<2x64xf32>
    %368 = vector.broadcast %87 : vector<1x64xf32> to vector<2x64xf32>
    %369 = arith.addf %367, %368 : vector<2x64xf32>
    %370 = vector.extract_strided_slice %369 {offsets = [0, 0], sizes = [2, 48], strides = [1, 1]} : vector<2x64xf32> to vector<2x48xf32>
    %371 = arith.negf %370 : vector<2x48xf32>
    %372 = math.exp %371 : vector<2x48xf32>
    %cst_91 = arith.constant 1.000000e+00 : f32
    %373 = vector.broadcast %cst_91 : f32 to vector<2x48xf32>
    %374 = arith.addf %373, %372 : vector<2x48xf32>
    %375 = arith.divf %373, %374 : vector<2x48xf32>
    %376 = vector.extract_strided_slice %369 {offsets = [0, 48], sizes = [2, 16], strides = [1, 1]} : vector<2x64xf32> to vector<2x16xf32>
    %377 = math.tanh %376 : vector<2x16xf32>
    %378 = vector.extract_strided_slice %375 {offsets = [0, 0], sizes = [2, 16], strides = [1, 1]} : vector<2x48xf32> to vector<2x16xf32>
    %379 = vector.extract_strided_slice %375 {offsets = [0, 16], sizes = [2, 16], strides = [1, 1]} : vector<2x48xf32> to vector<2x16xf32>
    %380 = vector.extract_strided_slice %375 {offsets = [0, 32], sizes = [2, 16], strides = [1, 1]} : vector<2x48xf32> to vector<2x16xf32>
    %381 = arith.mulf %379, %324 : vector<2x16xf32>
    %382 = arith.mulf %378, %377 : vector<2x16xf32>
    %383 = arith.addf %381, %382 : vector<2x16xf32>
    %384 = math.tanh %383 : vector<2x16xf32>
    %385 = arith.mulf %380, %384 : vector<2x16xf32>
    %386 = tpu.concatenate %385, %346 in 1 : vector<2x16xf32>, vector<2x16xf32> -> vector<2x32xf32>
    %cst_92 = arith.constant dense<0.000000e+00> : vector<2x64xf32>
    %387 = tpu.matmul %386, %98, %cst_92 {dimension_numbers = #tpu.dot_dimension_numbers<[1], [0], [0], [1], [0, 0, 1, 1], [], []>} : vector<2x32xf32>, vector<32x64xf32>, vector<2x64xf32> -> vector<2x64xf32>
    %388 = vector.broadcast %89 : vector<1x64xf32> to vector<2x64xf32>
    %389 = arith.addf %387, %388 : vector<2x64xf32>
    %390 = vector.extract_strided_slice %389 {offsets = [0, 0], sizes = [2, 48], strides = [1, 1]} : vector<2x64xf32> to vector<2x48xf32>
    %391 = arith.negf %390 : vector<2x48xf32>
    %392 = math.exp %391 : vector<2x48xf32>
    %cst_93 = arith.constant 1.000000e+00 : f32
    %393 = vector.broadcast %cst_93 : f32 to vector<2x48xf32>
    %394 = arith.addf %393, %392 : vector<2x48xf32>
    %395 = arith.divf %393, %394 : vector<2x48xf32>
    %396 = vector.extract_strided_slice %389 {offsets = [0, 48], sizes = [2, 16], strides = [1, 1]} : vector<2x64xf32> to vector<2x16xf32>
    %397 = math.tanh %396 : vector<2x16xf32>
    %398 = vector.extract_strided_slice %395 {offsets = [0, 0], sizes = [2, 16], strides = [1, 1]} : vector<2x48xf32> to vector<2x16xf32>
    %399 = vector.extract_strided_slice %395 {offsets = [0, 16], sizes = [2, 16], strides = [1, 1]} : vector<2x48xf32> to vector<2x16xf32>
    %400 = vector.extract_strided_slice %395 {offsets = [0, 32], sizes = [2, 16], strides = [1, 1]} : vector<2x48xf32> to vector<2x16xf32>
    %401 = arith.mulf %399, %344 : vector<2x16xf32>
    %402 = arith.mulf %398, %397 : vector<2x16xf32>
    %403 = arith.addf %401, %402 : vector<2x16xf32>
    %404 = math.tanh %403 : vector<2x16xf32>
    %405 = arith.mulf %400, %404 : vector<2x16xf32>
    %406 = vector.extract_strided_slice %93 {offsets = [10, 0], sizes = [2, 64], strides = [1, 1]} : vector<16x64xf32> to vector<2x64xf32>
    %cst_94 = arith.constant dense<0.000000e+00> : vector<2x64xf32>
    %407 = tpu.matmul %365, %94, %cst_94 {dimension_numbers = #tpu.dot_dimension_numbers<[1], [0], [0], [1], [0, 0, 1, 1], [], []>} : vector<2x16xf32>, vector<16x64xf32>, vector<2x64xf32> -> vector<2x64xf32>
    %408 = arith.addf %406, %407 : vector<2x64xf32>
    %409 = vector.extract_strided_slice %408 {offsets = [0, 0], sizes = [2, 48], strides = [1, 1]} : vector<2x64xf32> to vector<2x48xf32>
    %410 = arith.negf %409 : vector<2x48xf32>
    %411 = math.exp %410 : vector<2x48xf32>
    %cst_95 = arith.constant 1.000000e+00 : f32
    %412 = vector.broadcast %cst_95 : f32 to vector<2x48xf32>
    %413 = arith.addf %412, %411 : vector<2x48xf32>
    %414 = arith.divf %412, %413 : vector<2x48xf32>
    %415 = vector.extract_strided_slice %408 {offsets = [0, 48], sizes = [2, 16], strides = [1, 1]} : vector<2x64xf32> to vector<2x16xf32>
    %416 = math.tanh %415 : vector<2x16xf32>
    %417 = vector.extract_strided_slice %414 {offsets = [0, 0], sizes = [2, 16], strides = [1, 1]} : vector<2x48xf32> to vector<2x16xf32>
    %418 = vector.extract_strided_slice %414 {offsets = [0, 16], sizes = [2, 16], strides = [1, 1]} : vector<2x48xf32> to vector<2x16xf32>
    %419 = vector.extract_strided_slice %414 {offsets = [0, 32], sizes = [2, 16], strides = [1, 1]} : vector<2x48xf32> to vector<2x16xf32>
    %420 = arith.mulf %418, %363 : vector<2x16xf32>
    %421 = arith.mulf %417, %416 : vector<2x16xf32>
    %422 = arith.addf %420, %421 : vector<2x16xf32>
    %423 = math.tanh %422 : vector<2x16xf32>
    %424 = arith.mulf %419, %423 : vector<2x16xf32>
    %425 = tpu.concatenate %424, %385 in 1 : vector<2x16xf32>, vector<2x16xf32> -> vector<2x32xf32>
    %cst_96 = arith.constant dense<0.000000e+00> : vector<2x64xf32>
    %426 = tpu.matmul %425, %96, %cst_96 {dimension_numbers = #tpu.dot_dimension_numbers<[1], [0], [0], [1], [0, 0, 1, 1], [], []>} : vector<2x32xf32>, vector<32x64xf32>, vector<2x64xf32> -> vector<2x64xf32>
    %427 = vector.broadcast %87 : vector<1x64xf32> to vector<2x64xf32>
    %428 = arith.addf %426, %427 : vector<2x64xf32>
    %429 = vector.extract_strided_slice %428 {offsets = [0, 0], sizes = [2, 48], strides = [1, 1]} : vector<2x64xf32> to vector<2x48xf32>
    %430 = arith.negf %429 : vector<2x48xf32>
    %431 = math.exp %430 : vector<2x48xf32>
    %cst_97 = arith.constant 1.000000e+00 : f32
    %432 = vector.broadcast %cst_97 : f32 to vector<2x48xf32>
    %433 = arith.addf %432, %431 : vector<2x48xf32>
    %434 = arith.divf %432, %433 : vector<2x48xf32>
    %435 = vector.extract_strided_slice %428 {offsets = [0, 48], sizes = [2, 16], strides = [1, 1]} : vector<2x64xf32> to vector<2x16xf32>
    %436 = math.tanh %435 : vector<2x16xf32>
    %437 = vector.extract_strided_slice %434 {offsets = [0, 0], sizes = [2, 16], strides = [1, 1]} : vector<2x48xf32> to vector<2x16xf32>
    %438 = vector.extract_strided_slice %434 {offsets = [0, 16], sizes = [2, 16], strides = [1, 1]} : vector<2x48xf32> to vector<2x16xf32>
    %439 = vector.extract_strided_slice %434 {offsets = [0, 32], sizes = [2, 16], strides = [1, 1]} : vector<2x48xf32> to vector<2x16xf32>
    %440 = arith.mulf %438, %383 : vector<2x16xf32>
    %441 = arith.mulf %437, %436 : vector<2x16xf32>
    %442 = arith.addf %440, %441 : vector<2x16xf32>
    %443 = math.tanh %442 : vector<2x16xf32>
    %444 = arith.mulf %439, %443 : vector<2x16xf32>
    %445 = tpu.concatenate %444, %405 in 1 : vector<2x16xf32>, vector<2x16xf32> -> vector<2x32xf32>
    %cst_98 = arith.constant dense<0.000000e+00> : vector<2x64xf32>
    %446 = tpu.matmul %445, %98, %cst_98 {dimension_numbers = #tpu.dot_dimension_numbers<[1], [0], [0], [1], [0, 0, 1, 1], [], []>} : vector<2x32xf32>, vector<32x64xf32>, vector<2x64xf32> -> vector<2x64xf32>
    %447 = vector.broadcast %89 : vector<1x64xf32> to vector<2x64xf32>
    %448 = arith.addf %446, %447 : vector<2x64xf32>
    %449 = vector.extract_strided_slice %448 {offsets = [0, 0], sizes = [2, 48], strides = [1, 1]} : vector<2x64xf32> to vector<2x48xf32>
    %450 = arith.negf %449 : vector<2x48xf32>
    %451 = math.exp %450 : vector<2x48xf32>
    %cst_99 = arith.constant 1.000000e+00 : f32
    %452 = vector.broadcast %cst_99 : f32 to vector<2x48xf32>
    %453 = arith.addf %452, %451 : vector<2x48xf32>
    %454 = arith.divf %452, %453 : vector<2x48xf32>
    %455 = vector.extract_strided_slice %448 {offsets = [0, 48], sizes = [2, 16], strides = [1, 1]} : vector<2x64xf32> to vector<2x16xf32>
    %456 = math.tanh %455 : vector<2x16xf32>
    %457 = vector.extract_strided_slice %454 {offsets = [0, 0], sizes = [2, 16], strides = [1, 1]} : vector<2x48xf32> to vector<2x16xf32>
    %458 = vector.extract_strided_slice %454 {offsets = [0, 16], sizes = [2, 16], strides = [1, 1]} : vector<2x48xf32> to vector<2x16xf32>
    %459 = vector.extract_strided_slice %454 {offsets = [0, 32], sizes = [2, 16], strides = [1, 1]} : vector<2x48xf32> to vector<2x16xf32>
    %460 = arith.mulf %458, %403 : vector<2x16xf32>
    %461 = arith.mulf %457, %456 : vector<2x16xf32>
    %462 = arith.addf %460, %461 : vector<2x16xf32>
    %463 = math.tanh %462 : vector<2x16xf32>
    %464 = arith.mulf %459, %463 : vector<2x16xf32>
    %465 = vector.extract_strided_slice %93 {offsets = [12, 0], sizes = [2, 64], strides = [1, 1]} : vector<16x64xf32> to vector<2x64xf32>
    %cst_100 = arith.constant dense<0.000000e+00> : vector<2x64xf32>
    %466 = tpu.matmul %424, %94, %cst_100 {dimension_numbers = #tpu.dot_dimension_numbers<[1], [0], [0], [1], [0, 0, 1, 1], [], []>} : vector<2x16xf32>, vector<16x64xf32>, vector<2x64xf32> -> vector<2x64xf32>
    %467 = arith.addf %465, %466 : vector<2x64xf32>
    %468 = vector.extract_strided_slice %467 {offsets = [0, 0], sizes = [2, 48], strides = [1, 1]} : vector<2x64xf32> to vector<2x48xf32>
    %469 = arith.negf %468 : vector<2x48xf32>
    %470 = math.exp %469 : vector<2x48xf32>
    %cst_101 = arith.constant 1.000000e+00 : f32
    %471 = vector.broadcast %cst_101 : f32 to vector<2x48xf32>
    %472 = arith.addf %471, %470 : vector<2x48xf32>
    %473 = arith.divf %471, %472 : vector<2x48xf32>
    %474 = vector.extract_strided_slice %467 {offsets = [0, 48], sizes = [2, 16], strides = [1, 1]} : vector<2x64xf32> to vector<2x16xf32>
    %475 = math.tanh %474 : vector<2x16xf32>
    %476 = vector.extract_strided_slice %473 {offsets = [0, 0], sizes = [2, 16], strides = [1, 1]} : vector<2x48xf32> to vector<2x16xf32>
    %477 = vector.extract_strided_slice %473 {offsets = [0, 16], sizes = [2, 16], strides = [1, 1]} : vector<2x48xf32> to vector<2x16xf32>
    %478 = vector.extract_strided_slice %473 {offsets = [0, 32], sizes = [2, 16], strides = [1, 1]} : vector<2x48xf32> to vector<2x16xf32>
    %479 = arith.mulf %477, %422 : vector<2x16xf32>
    %480 = arith.mulf %476, %475 : vector<2x16xf32>
    %481 = arith.addf %479, %480 : vector<2x16xf32>
    %482 = math.tanh %481 : vector<2x16xf32>
    %483 = arith.mulf %478, %482 : vector<2x16xf32>
    %484 = tpu.concatenate %483, %444 in 1 : vector<2x16xf32>, vector<2x16xf32> -> vector<2x32xf32>
    %cst_102 = arith.constant dense<0.000000e+00> : vector<2x64xf32>
    %485 = tpu.matmul %484, %96, %cst_102 {dimension_numbers = #tpu.dot_dimension_numbers<[1], [0], [0], [1], [0, 0, 1, 1], [], []>} : vector<2x32xf32>, vector<32x64xf32>, vector<2x64xf32> -> vector<2x64xf32>
    %486 = vector.broadcast %87 : vector<1x64xf32> to vector<2x64xf32>
    %487 = arith.addf %485, %486 : vector<2x64xf32>
    %488 = vector.extract_strided_slice %487 {offsets = [0, 0], sizes = [2, 48], strides = [1, 1]} : vector<2x64xf32> to vector<2x48xf32>
    %489 = arith.negf %488 : vector<2x48xf32>
    %490 = math.exp %489 : vector<2x48xf32>
    %cst_103 = arith.constant 1.000000e+00 : f32
    %491 = vector.broadcast %cst_103 : f32 to vector<2x48xf32>
    %492 = arith.addf %491, %490 : vector<2x48xf32>
    %493 = arith.divf %491, %492 : vector<2x48xf32>
    %494 = vector.extract_strided_slice %487 {offsets = [0, 48], sizes = [2, 16], strides = [1, 1]} : vector<2x64xf32> to vector<2x16xf32>
    %495 = math.tanh %494 : vector<2x16xf32>
    %496 = vector.extract_strided_slice %493 {offsets = [0, 0], sizes = [2, 16], strides = [1, 1]} : vector<2x48xf32> to vector<2x16xf32>
    %497 = vector.extract_strided_slice %493 {offsets = [0, 16], sizes = [2, 16], strides = [1, 1]} : vector<2x48xf32> to vector<2x16xf32>
    %498 = vector.extract_strided_slice %493 {offsets = [0, 32], sizes = [2, 16], strides = [1, 1]} : vector<2x48xf32> to vector<2x16xf32>
    %499 = arith.mulf %497, %442 : vector<2x16xf32>
    %500 = arith.mulf %496, %495 : vector<2x16xf32>
    %501 = arith.addf %499, %500 : vector<2x16xf32>
    %502 = math.tanh %501 : vector<2x16xf32>
    %503 = arith.mulf %498, %502 : vector<2x16xf32>
    %504 = tpu.concatenate %503, %464 in 1 : vector<2x16xf32>, vector<2x16xf32> -> vector<2x32xf32>
    %cst_104 = arith.constant dense<0.000000e+00> : vector<2x64xf32>
    %505 = tpu.matmul %504, %98, %cst_104 {dimension_numbers = #tpu.dot_dimension_numbers<[1], [0], [0], [1], [0, 0, 1, 1], [], []>} : vector<2x32xf32>, vector<32x64xf32>, vector<2x64xf32> -> vector<2x64xf32>
    %506 = vector.broadcast %89 : vector<1x64xf32> to vector<2x64xf32>
    %507 = arith.addf %505, %506 : vector<2x64xf32>
    %508 = vector.extract_strided_slice %507 {offsets = [0, 0], sizes = [2, 48], strides = [1, 1]} : vector<2x64xf32> to vector<2x48xf32>
    %509 = arith.negf %508 : vector<2x48xf32>
    %510 = math.exp %509 : vector<2x48xf32>
    %cst_105 = arith.constant 1.000000e+00 : f32
    %511 = vector.broadcast %cst_105 : f32 to vector<2x48xf32>
    %512 = arith.addf %511, %510 : vector<2x48xf32>
    %513 = arith.divf %511, %512 : vector<2x48xf32>
    %514 = vector.extract_strided_slice %507 {offsets = [0, 48], sizes = [2, 16], strides = [1, 1]} : vector<2x64xf32> to vector<2x16xf32>
    %515 = math.tanh %514 : vector<2x16xf32>
    %516 = vector.extract_strided_slice %513 {offsets = [0, 0], sizes = [2, 16], strides = [1, 1]} : vector<2x48xf32> to vector<2x16xf32>
    %517 = vector.extract_strided_slice %513 {offsets = [0, 16], sizes = [2, 16], strides = [1, 1]} : vector<2x48xf32> to vector<2x16xf32>
    %518 = vector.extract_strided_slice %513 {offsets = [0, 32], sizes = [2, 16], strides = [1, 1]} : vector<2x48xf32> to vector<2x16xf32>
    %519 = arith.mulf %517, %462 : vector<2x16xf32>
    %520 = arith.mulf %516, %515 : vector<2x16xf32>
    %521 = arith.addf %519, %520 : vector<2x16xf32>
    %522 = math.tanh %521 : vector<2x16xf32>
    %523 = arith.mulf %518, %522 : vector<2x16xf32>
    %524 = vector.extract_strided_slice %93 {offsets = [14, 0], sizes = [2, 64], strides = [1, 1]} : vector<16x64xf32> to vector<2x64xf32>
    %cst_106 = arith.constant dense<0.000000e+00> : vector<2x64xf32>
    %525 = tpu.matmul %483, %94, %cst_106 {dimension_numbers = #tpu.dot_dimension_numbers<[1], [0], [0], [1], [0, 0, 1, 1], [], []>} : vector<2x16xf32>, vector<16x64xf32>, vector<2x64xf32> -> vector<2x64xf32>
    %526 = arith.addf %524, %525 : vector<2x64xf32>
    %527 = vector.extract_strided_slice %526 {offsets = [0, 0], sizes = [2, 48], strides = [1, 1]} : vector<2x64xf32> to vector<2x48xf32>
    %528 = arith.negf %527 : vector<2x48xf32>
    %529 = math.exp %528 : vector<2x48xf32>
    %cst_107 = arith.constant 1.000000e+00 : f32
    %530 = vector.broadcast %cst_107 : f32 to vector<2x48xf32>
    %531 = arith.addf %530, %529 : vector<2x48xf32>
    %532 = arith.divf %530, %531 : vector<2x48xf32>
    %533 = vector.extract_strided_slice %526 {offsets = [0, 48], sizes = [2, 16], strides = [1, 1]} : vector<2x64xf32> to vector<2x16xf32>
    %534 = math.tanh %533 : vector<2x16xf32>
    %535 = vector.extract_strided_slice %532 {offsets = [0, 0], sizes = [2, 16], strides = [1, 1]} : vector<2x48xf32> to vector<2x16xf32>
    %536 = vector.extract_strided_slice %532 {offsets = [0, 16], sizes = [2, 16], strides = [1, 1]} : vector<2x48xf32> to vector<2x16xf32>
    %537 = vector.extract_strided_slice %532 {offsets = [0, 32], sizes = [2, 16], strides = [1, 1]} : vector<2x48xf32> to vector<2x16xf32>
    %538 = arith.mulf %536, %481 : vector<2x16xf32>
    %539 = arith.mulf %535, %534 : vector<2x16xf32>
    %540 = arith.addf %538, %539 : vector<2x16xf32>
    %541 = math.tanh %540 : vector<2x16xf32>
    %542 = arith.mulf %537, %541 : vector<2x16xf32>
    %543 = tpu.concatenate %542, %503 in 1 : vector<2x16xf32>, vector<2x16xf32> -> vector<2x32xf32>
    %cst_108 = arith.constant dense<0.000000e+00> : vector<2x64xf32>
    %544 = tpu.matmul %543, %96, %cst_108 {dimension_numbers = #tpu.dot_dimension_numbers<[1], [0], [0], [1], [0, 0, 1, 1], [], []>} : vector<2x32xf32>, vector<32x64xf32>, vector<2x64xf32> -> vector<2x64xf32>
    %545 = vector.broadcast %87 : vector<1x64xf32> to vector<2x64xf32>
    %546 = arith.addf %544, %545 : vector<2x64xf32>
    %547 = vector.extract_strided_slice %546 {offsets = [0, 0], sizes = [2, 48], strides = [1, 1]} : vector<2x64xf32> to vector<2x48xf32>
    %548 = arith.negf %547 : vector<2x48xf32>
    %549 = math.exp %548 : vector<2x48xf32>
    %cst_109 = arith.constant 1.000000e+00 : f32
    %550 = vector.broadcast %cst_109 : f32 to vector<2x48xf32>
    %551 = arith.addf %550, %549 : vector<2x48xf32>
    %552 = arith.divf %550, %551 : vector<2x48xf32>
    %553 = vector.extract_strided_slice %546 {offsets = [0, 48], sizes = [2, 16], strides = [1, 1]} : vector<2x64xf32> to vector<2x16xf32>
    %554 = math.tanh %553 : vector<2x16xf32>
    %555 = vector.extract_strided_slice %552 {offsets = [0, 0], sizes = [2, 16], strides = [1, 1]} : vector<2x48xf32> to vector<2x16xf32>
    %556 = vector.extract_strided_slice %552 {offsets = [0, 16], sizes = [2, 16], strides = [1, 1]} : vector<2x48xf32> to vector<2x16xf32>
    %557 = vector.extract_strided_slice %552 {offsets = [0, 32], sizes = [2, 16], strides = [1, 1]} : vector<2x48xf32> to vector<2x16xf32>
    %558 = arith.mulf %556, %501 : vector<2x16xf32>
    %559 = arith.mulf %555, %554 : vector<2x16xf32>
    %560 = arith.addf %558, %559 : vector<2x16xf32>
    %561 = math.tanh %560 : vector<2x16xf32>
    %562 = arith.mulf %557, %561 : vector<2x16xf32>
    %563 = tpu.concatenate %562, %523 in 1 : vector<2x16xf32>, vector<2x16xf32> -> vector<2x32xf32>
    %cst_110 = arith.constant dense<0.000000e+00> : vector<2x64xf32>
    %564 = tpu.matmul %563, %98, %cst_110 {dimension_numbers = #tpu.dot_dimension_numbers<[1], [0], [0], [1], [0, 0, 1, 1], [], []>} : vector<2x32xf32>, vector<32x64xf32>, vector<2x64xf32> -> vector<2x64xf32>
    %565 = vector.broadcast %89 : vector<1x64xf32> to vector<2x64xf32>
    %566 = arith.addf %564, %565 : vector<2x64xf32>
    %567 = vector.extract_strided_slice %566 {offsets = [0, 0], sizes = [2, 48], strides = [1, 1]} : vector<2x64xf32> to vector<2x48xf32>
    %568 = arith.negf %567 : vector<2x48xf32>
    %569 = math.exp %568 : vector<2x48xf32>
    %cst_111 = arith.constant 1.000000e+00 : f32
    %570 = vector.broadcast %cst_111 : f32 to vector<2x48xf32>
    %571 = arith.addf %570, %569 : vector<2x48xf32>
    %572 = arith.divf %570, %571 : vector<2x48xf32>
    %573 = vector.extract_strided_slice %566 {offsets = [0, 48], sizes = [2, 16], strides = [1, 1]} : vector<2x64xf32> to vector<2x16xf32>
    %574 = math.tanh %573 : vector<2x16xf32>
    %575 = vector.extract_strided_slice %572 {offsets = [0, 0], sizes = [2, 16], strides = [1, 1]} : vector<2x48xf32> to vector<2x16xf32>
    %576 = vector.extract_strided_slice %572 {offsets = [0, 16], sizes = [2, 16], strides = [1, 1]} : vector<2x48xf32> to vector<2x16xf32>
    %577 = vector.extract_strided_slice %572 {offsets = [0, 32], sizes = [2, 16], strides = [1, 1]} : vector<2x48xf32> to vector<2x16xf32>
    %578 = arith.mulf %576, %521 : vector<2x16xf32>
    %579 = arith.mulf %575, %574 : vector<2x16xf32>
    %580 = arith.addf %578, %579 : vector<2x16xf32>
    %581 = math.tanh %580 : vector<2x16xf32>
    %582 = arith.mulf %577, %581 : vector<2x16xf32>
    %583 = vector.extract_strided_slice %169 {offsets = [0, 0], sizes = [1, 16], strides = [1, 1]} : vector<2x16xf32> to vector<1x16xf32>
    %584 = vector.extract_strided_slice %228 {offsets = [0, 0], sizes = [1, 16], strides = [1, 1]} : vector<2x16xf32> to vector<1x16xf32>
    %585 = vector.extract_strided_slice %287 {offsets = [0, 0], sizes = [1, 16], strides = [1, 1]} : vector<2x16xf32> to vector<1x16xf32>
    %586 = vector.extract_strided_slice %346 {offsets = [0, 0], sizes = [1, 16], strides = [1, 1]} : vector<2x16xf32> to vector<1x16xf32>
    %587 = vector.extract_strided_slice %405 {offsets = [0, 0], sizes = [1, 16], strides = [1, 1]} : vector<2x16xf32> to vector<1x16xf32>
    %588 = vector.extract_strided_slice %464 {offsets = [0, 0], sizes = [1, 16], strides = [1, 1]} : vector<2x16xf32> to vector<1x16xf32>
    %589 = vector.extract_strided_slice %523 {offsets = [0, 0], sizes = [1, 16], strides = [1, 1]} : vector<2x16xf32> to vector<1x16xf32>
    %590 = vector.extract_strided_slice %582 {offsets = [0, 0], sizes = [1, 16], strides = [1, 1]} : vector<2x16xf32> to vector<1x16xf32>
    %591 = vector.extract_strided_slice %169 {offsets = [1, 0], sizes = [1, 16], strides = [1, 1]} : vector<2x16xf32> to vector<1x16xf32>
    %592 = vector.extract_strided_slice %228 {offsets = [1, 0], sizes = [1, 16], strides = [1, 1]} : vector<2x16xf32> to vector<1x16xf32>
    %593 = vector.extract_strided_slice %287 {offsets = [1, 0], sizes = [1, 16], strides = [1, 1]} : vector<2x16xf32> to vector<1x16xf32>
    %594 = vector.extract_strided_slice %346 {offsets = [1, 0], sizes = [1, 16], strides = [1, 1]} : vector<2x16xf32> to vector<1x16xf32>
    %595 = vector.extract_strided_slice %405 {offsets = [1, 0], sizes = [1, 16], strides = [1, 1]} : vector<2x16xf32> to vector<1x16xf32>
    %596 = vector.extract_strided_slice %464 {offsets = [1, 0], sizes = [1, 16], strides = [1, 1]} : vector<2x16xf32> to vector<1x16xf32>
    %597 = vector.extract_strided_slice %523 {offsets = [1, 0], sizes = [1, 16], strides = [1, 1]} : vector<2x16xf32> to vector<1x16xf32>
    %598 = vector.extract_strided_slice %582 {offsets = [1, 0], sizes = [1, 16], strides = [1, 1]} : vector<2x16xf32> to vector<1x16xf32>
    %599 = tpu.concatenate %583, %584, %585, %586, %587, %588, %589, %590, %591, %592, %593, %594, %595, %596, %597, %598 in 0 : vector<1x16xf32>, vector<1x16xf32>, vector<1x16xf32>, vector<1x16xf32>, vector<1x16xf32>, vector<1x16xf32>, vector<1x16xf32>, vector<1x16xf32>, vector<1x16xf32>, vector<1x16xf32>, vector<1x16xf32>, vector<1x16xf32>, vector<1x16xf32>, vector<1x16xf32>, vector<1x16xf32>, vector<1x16xf32> -> vector<16x16xf32>
    %c0_112 = arith.constant 0 : index
    %c0_113 = arith.constant 0 : index
    %600 = vector.load %arg7[%c0_112, %c0_113] : memref<16x32xf32, #tpu.memory_space<vmem>>, vector<16x32xf32>
    %cst_114 = arith.constant dense<0.000000e+00> : vector<16x32xf32>
    %601 = tpu.matmul %599, %600, %cst_114 {dimension_numbers = #tpu.dot_dimension_numbers<[1], [0], [0], [1], [0, 0, 1, 1], [], []>} : vector<16x16xf32>, vector<16x32xf32>, vector<16x32xf32> -> vector<16x32xf32>
    %c0_115 = arith.constant 0 : index
    %c0_116 = arith.constant 0 : index
    %602 = vector.load %arg8[%c0_115, %c0_116] : memref<1x32xf32, #tpu.memory_space<vmem>>, vector<1x32xf32>
    %603 = vector.broadcast %602 : vector<1x32xf32> to vector<16x32xf32>
    %604 = arith.addf %601, %603 : vector<16x32xf32>
    %c0_117 = arith.constant 0 : index
    %c0_118 = arith.constant 0 : index
    %605 = vector.load %arg11[%c0_117, %c0_118] : memref<16x32xf32, #tpu.memory_space<vmem>>, vector<16x32xf32>
    tpu.vector_store %arg11[%c0_117, %c0_118], %604 {strides = array<i32>} : memref<16x32xf32, #tpu.memory_space<vmem>>, vector<16x32xf32>,
    %c0_119 = arith.constant 0 : index
    %c0_120 = arith.constant 0 : index
    %c0_121 = arith.constant 0 : index
    %606 = vector.load %arg12[%c0_119, %c0_120, %c0_121] : memref<3x2x16xf32, #tpu.memory_space<vmem>>, vector<1x2x16xf32>
    %607 = vector.shape_cast %606 : vector<1x2x16xf32> to vector<2x16xf32>
    %608 = vector.shape_cast %542 : vector<2x16xf32> to vector<1x2x16xf32>
    tpu.vector_store %arg12[%c0_119, %c0_120, %c0_121], %608 {strides = array<i32>} : memref<3x2x16xf32, #tpu.memory_space<vmem>>, vector<1x2x16xf32>,
    %c0_122 = arith.constant 0 : index
    %c0_123 = arith.constant 0 : index
    %c0_124 = arith.constant 0 : index
    %609 = vector.load %arg13[%c0_122, %c0_123, %c0_124] : memref<3x2x16xf32, #tpu.memory_space<vmem>>, vector<1x2x16xf32>
    %610 = vector.shape_cast %609 : vector<1x2x16xf32> to vector<2x16xf32>
    %611 = vector.shape_cast %540 : vector<2x16xf32> to vector<1x2x16xf32>
    tpu.vector_store %arg13[%c0_122, %c0_123, %c0_124], %611 {strides = array<i32>} : memref<3x2x16xf32, #tpu.memory_space<vmem>>, vector<1x2x16xf32>,
    %c1_125 = arith.constant 1 : index
    %c0_126 = arith.constant 0 : index
    %c0_127 = arith.constant 0 : index
    %612 = vector.load %arg12[%c1_125, %c0_126, %c0_127] : memref<3x2x16xf32, #tpu.memory_space<vmem>>, vector<1x2x16xf32>
    %613 = vector.shape_cast %612 : vector<1x2x16xf32> to vector<2x16xf32>
    %614 = vector.shape_cast %562 : vector<2x16xf32> to vector<1x2x16xf32>
    tpu.vector_store %arg12[%c1_125, %c0_126, %c0_127], %614 {strides = array<i32>} : memref<3x2x16xf32, #tpu.memory_space<vmem>>, vector<1x2x16xf32>,
    %c1_128 = arith.constant 1 : index
    %c0_129 = arith.constant 0 : index
    %c0_130 = arith.constant 0 : index
    %615 = vector.load %arg13[%c1_128, %c0_129, %c0_130] : memref<3x2x16xf32, #tpu.memory_space<vmem>>, vector<1x2x16xf32>
    %616 = vector.shape_cast %615 : vector<1x2x16xf32> to vector<2x16xf32>
    %617 = vector.shape_cast %560 : vector<2x16xf32> to vector<1x2x16xf32>
    tpu.vector_store %arg13[%c1_128, %c0_129, %c0_130], %617 {strides = array<i32>} : memref<3x2x16xf32, #tpu.memory_space<vmem>>, vector<1x2x16xf32>,
    %c2_131 = arith.constant 2 : index
    %c0_132 = arith.constant 0 : index
    %c0_133 = arith.constant 0 : index
    %618 = vector.load %arg12[%c2_131, %c0_132, %c0_133] : memref<3x2x16xf32, #tpu.memory_space<vmem>>, vector<1x2x16xf32>
    %619 = vector.shape_cast %618 : vector<1x2x16xf32> to vector<2x16xf32>
    %620 = vector.shape_cast %582 : vector<2x16xf32> to vector<1x2x16xf32>
    tpu.vector_store %arg12[%c2_131, %c0_132, %c0_133], %620 {strides = array<i32>} : memref<3x2x16xf32, #tpu.memory_space<vmem>>, vector<1x2x16xf32>,
    %c2_134 = arith.constant 2 : index
    %c0_135 = arith.constant 0 : index
    %c0_136 = arith.constant 0 : index
    %621 = vector.load %arg13[%c2_134, %c0_135, %c0_136] : memref<3x2x16xf32, #tpu.memory_space<vmem>>, vector<1x2x16xf32>
    %622 = vector.shape_cast %621 : vector<1x2x16xf32> to vector<2x16xf32>
    %623 = vector.shape_cast %580 : vector<2x16xf32> to vector<1x2x16xf32>
    tpu.vector_store %arg13[%c2_134, %c0_135, %c0_136], %623 {strides = array<i32>} : memref<3x2x16xf32, #tpu.memory_space<vmem>>, vector<1x2x16xf32>,
    return
  }
  func.func @transform_0(%arg0: i32, %arg1: memref<2x8xi32, #tpu.memory_space<smem>>) -> (i32, i32) {
    %c0_i32 = arith.constant 0 : i32
    %c0_i32_0 = arith.constant 0 : i32
    %c0_i32_1 = arith.constant 0 : i32
    return %c0_i32, %c0_i32_0 : i32, i32
  }
  func.func @transform_1(%arg0: i32, %arg1: memref<2x8xi32, #tpu.memory_space<smem>>) -> (i32, i32) {
    %c0_i32 = arith.constant 0 : i32
    %c0_i32_0 = arith.constant 0 : i32
    %c0_i32_1 = arith.constant 0 : i32
    return %c0_i32, %c0_i32_0 : i32, i32
  }
  func.func @transform_2(%arg0: i32, %arg1: memref<2x8xi32, #tpu.memory_space<smem>>) -> (i32, i32) {
    %c0_i32 = arith.constant 0 : i32
    %c0_i32_0 = arith.constant 0 : i32
    %c0_i32_1 = arith.constant 0 : i32
    return %c0_i32, %c0_i32_0 : i32, i32
  }
  func.func @transform_3(%arg0: i32, %arg1: memref<2x8xi32, #tpu.memory_space<smem>>) -> (i32, i32, i32) {
    %c0_i32 = arith.constant 0 : i32
    %c0_i32_0 = arith.constant 0 : i32
    %c0_i32_1 = arith.constant 0 : i32
    %c0_i32_2 = arith.constant 0 : i32
    return %c0_i32, %c0_i32_0, %c0_i32_1 : i32, i32, i32
  }
  func.func @transform_4(%arg0: i32, %arg1: memref<2x8xi32, #tpu.memory_space<smem>>) -> (i32, i32, i32) {
    %c0_i32 = arith.constant 0 : i32
    %c0_i32_0 = arith.constant 0 : i32
    %c0_i32_1 = arith.constant 0 : i32
    %c0_i32_2 = arith.constant 0 : i32
    return %c0_i32, %c0_i32_0, %c0_i32_1 : i32, i32, i32
  }
  func.func @transform_5(%arg0: i32, %arg1: memref<2x8xi32, #tpu.memory_space<smem>>) -> (i32, i32) {
    %c0_i32 = arith.constant 0 : i32
    %c0_i32_0 = arith.constant 0 : i32
    %c0_i32_1 = arith.constant 0 : i32
    return %c0_i32, %c0_i32_0 : i32, i32
  }
  func.func @transform_6(%arg0: i32, %arg1: memref<2x8xi32, #tpu.memory_space<smem>>) -> (i32, i32) {
    %c0_i32 = arith.constant 0 : i32
    %c0_i32_0 = arith.constant 0 : i32
    %c0_i32_1 = arith.constant 0 : i32
    return %c0_i32, %c0_i32_0 : i32, i32
  }
  func.func @transform_7(%arg0: i32, %arg1: memref<2x8xi32, #tpu.memory_space<smem>>) -> (i32, i32, i32) {
    %c0_i32 = arith.constant 0 : i32
    %c0_i32_0 = arith.constant 0 : i32
    %c0_i32_1 = arith.constant 0 : i32
    %c0_i32_2 = arith.constant 0 : i32
    return %c0_i32, %c0_i32_0, %c0_i32_1 : i32, i32, i32
  }
  func.func @transform_8(%arg0: i32, %arg1: memref<2x8xi32, #tpu.memory_space<smem>>) -> (i32, i32, i32) {
    %c0_i32 = arith.constant 0 : i32
    %c0_i32_0 = arith.constant 0 : i32
    %c0_i32_1 = arith.constant 0 : i32
    %c0_i32_2 = arith.constant 0 : i32
    return %c0_i32, %c0_i32_0, %c0_i32_1 : i32, i32, i32
  }
  func.func @transform_9(%arg0: i32, %arg1: memref<2x8xi32, #tpu.memory_space<smem>>) -> (i32, i32) {
    %c0_i32 = arith.constant 0 : i32
    %c0_i32_0 = arith.constant 0 : i32
    %c0_i32_1 = arith.constant 0 : i32
    return %c0_i32, %c0_i32_0 : i32, i32
  }
  func.func @transform_10(%arg0: i32, %arg1: memref<2x8xi32, #tpu.memory_space<smem>>) -> (i32, i32, i32) {
    %c0_i32 = arith.constant 0 : i32
    %c0_i32_0 = arith.constant 0 : i32
    %c0_i32_1 = arith.constant 0 : i32
    %c0_i32_2 = arith.constant 0 : i32
    return %c0_i32, %c0_i32_0, %c0_i32_1 : i32, i32, i32
  }
  func.func @transform_11(%arg0: i32, %arg1: memref<2x8xi32, #tpu.memory_space<smem>>) -> (i32, i32, i32) {
    %c0_i32 = arith.constant 0 : i32
    %c0_i32_0 = arith.constant 0 : i32
    %c0_i32_1 = arith.constant 0 : i32
    %c0_i32_2 = arith.constant 0 : i32
    return %c0_i32, %c0_i32_0, %c0_i32_1 : i32, i32, i32
  }
}

</mosaic_0001>

<llo_original>
// kernel: tpu_custom_call.1
$region0: #{tpu_custom_call.1}
  #allocation0 [shape = 'u32[]', space=smem, size = 0x4, offset = 0x4, fixed_abs, tag = 'smem constant byte address 0x4 - core index']
  #allocation1 [shape = 'u32[72,128]{1,0:T(1,128)}', space=vmem, size = 0x9000, scoped, tag = 'internal scratch']
  #allocation2 [shape = 's32[1]{0}', space=sflag, size = 0x4, scoped, tag = 'scoped memory for tpu_custom_call.1']
  #allocation3 [shape = 'u8[1024]{0}', space=smem, size = 0x400, scoped, tag = 'prefetched SMEM operand 0']
  %s0 = inlined_call_operand.hbm [shape: s32[2,8], index: 0, kind: input, shape index: {}]
  %s1 = inlined_call_operand.vmem [shape: f32[32,16], index: 1, kind: input, shape index: {}]
  %s2 = inlined_call_operand.vmem [shape: f32[16,64], index: 2, kind: input, shape index: {}]
  %s3 = inlined_call_operand.vmem [shape: f32[16,64], index: 3, kind: input, shape index: {}]
  %s4 = inlined_call_operand.hbm [shape: f32[2,32,64], index: 4, kind: input, shape index: {}]
  %s5 = inlined_call_operand.hbm [shape: f32[3,1,64], index: 5, kind: input, shape index: {}]
  %s6 = inlined_call_operand.vmem [shape: f32[16,32], index: 6, kind: input, shape index: {}]
  %s7 = inlined_call_operand.hbm [shape: f32[1,32], index: 7, kind: input, shape index: {}]
  %s8 = inlined_call_operand.vmem [shape: f32[3,2,16], index: 8, kind: input, shape index: {}]
  %s9 = inlined_call_operand.hbm [shape: f32[3,2,16], index: 9, kind: input, shape index: {}]
  %s10 = inlined_call_operand.hbm [shape: f32[16,32], index: 10, kind: output, shape index: {0}]
  %s11 = inlined_call_operand.hbm [shape: f32[3,2,16], index: 11, kind: output, shape index: {1}]
  %s12 = inlined_call_operand.hbm [shape: f32[3,2,16], index: 12, kind: output, shape index: {2}]
  %13 = xla_tuple %s10, %s11, %s12
  %s14 = sld [smem:[#allocation0]]
  $region78: #{tpu_custom_call.1} parent=0
    _
  %s16 = ssub.s32 1, %s14
  %s17 = scalar_select 0, %s16, %s14
  %s19 = sshll.u32 %s0, 4
  %s20 = int_to_ptr.hbm [resolvable:$true] %s19
  %22 = dma.hbm_to_smem %s20, 32, [#allocation3], [#allocation2]
  %24 = dma.done [#allocation2], 32
  %25 = sfence
  $region1: #{tpu_custom_call.1} parent=0
    #allocation4 [shape = 'u8[32768]{0}', space=vmem, size = 0x8000, scoped, tag = 'input window, operand 4, single buffered']
    #allocation5 [shape = 's32[1]{0}', space=sflag, size = 0x4, scoped, tag = 'scoped memory for tpu_custom_call.1']
    #allocation6 [shape = 's32[1]{0}', space=sflag, size = 0x4, scoped, tag = 'scoped memory for tpu_custom_call.1']
    #allocation7 [shape = 'u8[1536]{0}', space=vmem, size = 0x800, scoped, tag = 'input window, operand 5, single buffered']
    #allocation8 [shape = 's32[1]{0}', space=sflag, size = 0x4, scoped, tag = 'scoped memory for tpu_custom_call.1']
    #allocation9 [shape = 'u8[512]{0}', space=vmem, size = 0x400, scoped, tag = 'input window, operand 7, single buffered']
    #allocation10 [shape = 'u8[3072]{0}', space=vmem, size = 0xc00, scoped, tag = 'input window, operand 9, single buffered']
    #allocation11 [shape = 's32[1]{0}', space=sflag, size = 0x4, scoped, tag = 'scoped memory for tpu_custom_call.1']
    #allocation12 [shape = 'u8[8192]{0}', space=vmem, size = 0x2000, scoped, tag = 'output window, operand 0, single buffered']
    #allocation13 [shape = 'u8[3072]{0}', space=vmem, size = 0xc00, scoped, tag = 'output window, operand 1, single buffered']
    #allocation14 [shape = 's32[1]{0}', space=sflag, size = 0x4, scoped, tag = 'scoped memory for tpu_custom_call.1']
    #allocation15 [shape = 'u8[3072]{0}', space=vmem, size = 0xc00, scoped, tag = 'output window, operand 2, single buffered']
    %26 = vsyncpa [#allocation5], 0
    %27 = vsyncpa [#allocation8], 0
    %28 = vsyncpa [#allocation11], 0
    %29 = vsyncpa [#allocation6], 0
    %30 = vsyncpa [#allocation14], 0
    // Predicated region
    $region2: #{tpu_custom_call.1} parent=1 // pred_check
      _
    $region3: #{tpu_custom_call.1} parent=1 // pred_check_branch
      %32 = sbr.rel (0) target = $region5
    $region4: #{tpu_custom_call.1} parent=1 // pred_region
      _
    $region5: #{tpu_custom_call.1} parent=1 // pred_fallthru
      _
    // Predicated region
    $region6: #{tpu_custom_call.1} parent=1 // pred_check
      _
    $region7: #{tpu_custom_call.1} parent=1 // pred_check_branch
      %34 = sbr.rel (0) target = $region9
    $region8: #{tpu_custom_call.1} parent=1 // pred_region
      _
    $region9: #{tpu_custom_call.1} parent=1 // pred_fallthru
      _
    // Predicated region
    $region10: #{tpu_custom_call.1} parent=1 // pred_check
      _
    $region11: #{tpu_custom_call.1} parent=1 // pred_check_branch
      %36 = sbr.rel (0) target = $region13
    $region12: #{tpu_custom_call.1} parent=1 // pred_region
      _
    $region13: #{tpu_custom_call.1} parent=1 // pred_fallthru
      _
    // Predicated region
    $region14: #{tpu_custom_call.1} parent=1 // pred_check
      _
    $region15: #{tpu_custom_call.1} parent=1 // pred_check_branch
      %38 = sbr.rel (0) target = $region17
    $region16: #{tpu_custom_call.1} parent=1 // pred_region
      %40 = vsyncadd [#allocation5], 0
      %s41 = sshll.u32 %s4, 4
      %s42 = int_to_ptr.hbm [resolvable:$true] %s41
      %s43 = sshll.u32 [#allocation4], 4
      %s44 = int_to_ptr.vmem [resolvable:$true] %s43
      %49 = dma.hbm_to_vmem [thread:$0]  %s42, 1024, %s44, [#allocation5], 128, 128, 8
    $region17: #{tpu_custom_call.1} parent=1 // pred_fallthru
      _
    // Predicated region
    $region18: #{tpu_custom_call.1} parent=1 // pred_check
      _
    $region19: #{tpu_custom_call.1} parent=1 // pred_check_branch
      %51 = sbr.rel (0) target = $region21
    $region20: #{tpu_custom_call.1} parent=1 // pred_region
      %53 = vsyncadd [#allocation8], 0
      %s54 = sshll.u32 %s5, 4
      %s55 = int_to_ptr.hbm [resolvable:$true] %s54
      %s56 = sshll.u32 [#allocation7], 4
      %s57 = int_to_ptr.vmem [resolvable:$true] %s56
      %62 = dma.hbm_to_vmem [thread:$0]  %s55, 48, %s57, [#allocation8], 16, 16, 1
    $region21: #{tpu_custom_call.1} parent=1 // pred_fallthru
      _
    // Predicated region
    $region22: #{tpu_custom_call.1} parent=1 // pred_check
      _
    $region23: #{tpu_custom_call.1} parent=1 // pred_check_branch
      %64 = sbr.rel (0) target = $region25
    $region24: #{tpu_custom_call.1} parent=1 // pred_region
      _
    $region25: #{tpu_custom_call.1} parent=1 // pred_fallthru
      _
    // Predicated region
    $region26: #{tpu_custom_call.1} parent=1 // pred_check
      _
    $region27: #{tpu_custom_call.1} parent=1 // pred_check_branch
      %66 = sbr.rel (0) target = $region29
    $region28: #{tpu_custom_call.1} parent=1 // pred_region
      %68 = vsyncadd [#allocation8], 0
      %s70 = sshll.u32 %s7, 4
      %s71 = int_to_ptr.hbm [resolvable:$true] %s70
      %s72 = sshll.u32 [#allocation9], 4
      %s73 = int_to_ptr.vmem [resolvable:$true] %s72
      %75 = dma.hbm_to_vmem [thread:$0]  %s71, 16, %s73, [#allocation8]
    $region29: #{tpu_custom_call.1} parent=1 // pred_fallthru
      _
    // Predicated region
    $region30: #{tpu_custom_call.1} parent=1 // pred_check
      _
    $region31: #{tpu_custom_call.1} parent=1 // pred_check_branch
      %77 = sbr.rel (0) target = $region33
    $region32: #{tpu_custom_call.1} parent=1 // pred_region
      _
    $region33: #{tpu_custom_call.1} parent=1 // pred_fallthru
      _
    // Predicated region
    $region34: #{tpu_custom_call.1} parent=1 // pred_check
      _
    $region35: #{tpu_custom_call.1} parent=1 // pred_check_branch
      %79 = sbr.rel (0) target = $region37
    $region36: #{tpu_custom_call.1} parent=1 // pred_region
      %81 = vsyncadd [#allocation11], 0
      %s82 = sshll.u32 %s9, 4
      %s83 = int_to_ptr.hbm [resolvable:$true] %s82
      %s84 = sshll.u32 [#allocation10], 4
      %s85 = int_to_ptr.vmem [resolvable:$true] %s84
      %90 = dma.hbm_to_vmem [thread:$0]  %s83, 96, %s85, [#allocation11], 32, 32, 2
    $region37: #{tpu_custom_call.1} parent=1 // pred_fallthru
      _
    // Predicated region
    $region38: #{tpu_custom_call.1} parent=1 // pred_check
      _
    $region39: #{tpu_custom_call.1} parent=1 // pred_check_branch
      %92 = sbr.rel (0) target = $region41
    $region40: #{tpu_custom_call.1} parent=1 // pred_region
      %94 = dma.done [#allocation5], 1024
    $region41: #{tpu_custom_call.1} parent=1 // pred_fallthru
      _
    // Predicated region
    $region42: #{tpu_custom_call.1} parent=1 // pred_check
      _
    $region43: #{tpu_custom_call.1} parent=1 // pred_check_branch
      %96 = sbr.rel (0) target = $region45
    $region44: #{tpu_custom_call.1} parent=1 // pred_region
      %98 = dma.done [#allocation8], 48
    $region45: #{tpu_custom_call.1} parent=1 // pred_fallthru
      _
    // Predicated region
    $region46: #{tpu_custom_call.1} parent=1 // pred_check
      _
    $region47: #{tpu_custom_call.1} parent=1 // pred_check_branch
      %100 = sbr.rel (0) target = $region49
    $region48: #{tpu_custom_call.1} parent=1 // pred_region
      %102 = dma.done [#allocation8], 16
    $region49: #{tpu_custom_call.1} parent=1 // pred_fallthru
      _
    // Predicated region
    $region50: #{tpu_custom_call.1} parent=1 // pred_check
      _
    $region51: #{tpu_custom_call.1} parent=1 // pred_check_branch
      %104 = sbr.rel (0) target = $region53
    $region52: #{tpu_custom_call.1} parent=1 // pred_region
      %106 = dma.done [#allocation11], 96
    $region53: #{tpu_custom_call.1} parent=1 // pred_fallthru
      _
    %v107 = vlaneseq
    %v108 = vand.u32 %v107, 127
    %s109 = sld [smem:[#allocation3]]
    %v110 = vstv %s109
    %vm111 = vcmp.eq.s32.totalorder %v108, %v110
    %v112 = vsel %vm111, 1, 0
    %v113 = vcvt.s32.f32 %v112
    %s114 = sld [smem:[#allocation3 + $0x80]]
    %v115 = vstv %s114
    %vm116 = vcmp.eq.s32.totalorder %v108, %v115
    %v117 = vsel %vm116, 1, 0
    %v118 = vcvt.s32.f32 %v117
    %s119 = sld [smem:[#allocation3 + $0x1]]
    %v120 = vstv %s119
    %vm121 = vcmp.eq.s32.totalorder %v108, %v120
    %v122 = vsel %vm121, 1, 0
    %v123 = vcvt.s32.f32 %v122
    %s124 = sld [smem:[#allocation3 + $0x81]]
    %v125 = vstv %s124
    %vm126 = vcmp.eq.s32.totalorder %v108, %v125
    %v127 = vsel %vm126, 1, 0
    %v128 = vcvt.s32.f32 %v127
    %s129 = sld [smem:[#allocation3 + $0x2]]
    %v130 = vstv %s129
    %vm131 = vcmp.eq.s32.totalorder %v108, %v130
    %v132 = vsel %vm131, 1, 0
    %v133 = vcvt.s32.f32 %v132
    %s134 = sld [smem:[#allocation3 + $0x82]]
    %v135 = vstv %s134
    %vm136 = vcmp.eq.s32.totalorder %v108, %v135
    %v137 = vsel %vm136, 1, 0
    %v138 = vcvt.s32.f32 %v137
    %s139 = sld [smem:[#allocation3 + $0x3]]
    %v140 = vstv %s139
    %vm141 = vcmp.eq.s32.totalorder %v108, %v140
    %v142 = vsel %vm141, 1, 0
    %v143 = vcvt.s32.f32 %v142
    %s144 = sld [smem:[#allocation3 + $0x83]]
    %v145 = vstv %s144
    %vm146 = vcmp.eq.s32.totalorder %v108, %v145
    %v147 = vsel %vm146, 1, 0
    %v148 = vcvt.s32.f32 %v147
    %s149 = sld [smem:[#allocation3 + $0x4]]
    %v150 = vstv %s149
    %vm151 = vcmp.eq.s32.totalorder %v108, %v150
    %v152 = vsel %vm151, 1, 0
    %v153 = vcvt.s32.f32 %v152
    %s154 = sld [smem:[#allocation3 + $0x84]]
    %v155 = vstv %s154
    %vm156 = vcmp.eq.s32.totalorder %v108, %v155
    %v157 = vsel %vm156, 1, 0
    %v158 = vcvt.s32.f32 %v157
    %s159 = sld [smem:[#allocation3 + $0x5]]
    %v160 = vstv %s159
    %vm161 = vcmp.eq.s32.totalorder %v108, %v160
    %v162 = vsel %vm161, 1, 0
    %v163 = vcvt.s32.f32 %v162
    %s164 = sld [smem:[#allocation3 + $0x85]]
    %v165 = vstv %s164
    %vm166 = vcmp.eq.s32.totalorder %v108, %v165
    %v167 = vsel %vm166, 1, 0
    %v168 = vcvt.s32.f32 %v167
    %s169 = sld [smem:[#allocation3 + $0x6]]
    %v170 = vstv %s169
    %vm171 = vcmp.eq.s32.totalorder %v108, %v170
    %v172 = vsel %vm171, 1, 0
    %v173 = vcvt.s32.f32 %v172
    %s174 = sld [smem:[#allocation3 + $0x86]]
    %v175 = vstv %s174
    %vm176 = vcmp.eq.s32.totalorder %v108, %v175
    %v177 = vsel %vm176, 1, 0
    %v178 = vcvt.s32.f32 %v177
    %s179 = sld [smem:[#allocation3 + $0x7]]
    %v180 = vstv %s179
    %vm181 = vcmp.eq.s32.totalorder %v108, %v180
    %v182 = vsel %vm181, 1, 0
    %v183 = vcvt.s32.f32 %v182
    %s184 = sld [smem:[#allocation3 + $0x87]]
    %v185 = vstv %s184
    %vm186 = vcmp.eq.s32.totalorder %v108, %v185
    %v187 = vsel %vm186, 1, 0
    %v188 = vcvt.s32.f32 %v187
    %vm189 = vcmask 1040384
    %v190 = vsel %vm189, %v113, %v118
    %vm191 = vcmask 1041408
    %v192 = vsel %vm191, %v190, %v123
    %vm193 = vcmask 1042432
    %v194 = vsel %vm193, %v192, %v128
    %vm195 = vcmask 1043456
    %v196 = vsel %vm195, %v194, %v133
    %vm197 = vcmask 1044480
    %v198 = vsel %vm197, %v196, %v138
    %vm199 = vcmask 1045504
    %v200 = vsel %vm199, %v198, %v143
    %vm201 = vcmask 1046528
    %v202 = vsel %vm201, %v200, %v148
    %v203 = vsel %vm189, %v153, %v158
    %v204 = vsel %vm191, %v203, %v163
    %v205 = vsel %vm193, %v204, %v168
    %v206 = vsel %vm195, %v205, %v173
    %v207 = vsel %vm197, %v206, %v178
    %v208 = vsel %vm199, %v207, %v183
    %v209 = vsel %vm201, %v208, %v188
    %v210 = vld [vmem:[%s1] sm:$0xff]
    %v211 = vld [vmem:[%s1 + $0x8] sm:$0xff]
    %v212 = vld [vmem:[%s1 + $0x10] sm:$0xff]
    %v213 = vld [vmem:[%s1 + $0x18] sm:$0xff]
    %vm214 = vcmask 261120
    %v216 = vsel %vm214, %v202, 0
    %v219 = vsel %vm214, %v209, 0
    %221 = vmatpush.msra.mxu0 0.0
    %222 = vmatpush.msra.mxu0 0.0
    %223 = vmatpush.msra.mxu0 0.0
    %224 = vmatpush.msra.mxu0 0.0
    %225 = vmatpush.msra.mxu0 0.0
    %226 = vmatpush.msra.mxu0 0.0
    %227 = vmatpush.msra.mxu0 0.0
    %228 = vmatpush.msra.mxu0 0.0
    %229 = vmatpush.msra.mxu0 0.0
    %230 = vmatpush.msra.mxu0 0.0
    %231 = vmatpush.msra.mxu0 0.0
    %232 = vmatpush.msra.mxu0 0.0
    %233 = vmatpush.msra.mxu0 %v213
    %234 = vmatpush.msra.mxu0 %v212
    %235 = vmatpush.msra.mxu0 %v211
    %236 = vmatpush.msra.mxu0 %v210
    %237 = vmatmul.f32.gmra.mxu0 %v216
    %v238 = vpop.f32.mrf.mxu0
    %v239 = vadd.f32 0.0, %v238
    %240 = vmatmul.f32.gmra.mxu0 %v219
    %v241 = vpop.f32.mrf.mxu0
    %v242 = vadd.f32 0.0, %v241
    %243 = vdwg.mxu0
    %v244 = vld [vmem:[#allocation7] sm:$0x1]
    %s245 = scalar_lea.vmem [#allocation7], 1
    %v246 = vld [vmem:[%s245] sm:$0x1]
    %s247 = scalar_lea.vmem [#allocation7], 2
    %v248 = vld [vmem:[%s247] sm:$0x1]
    %v249 = vld [vmem:[%s2] sm:$0xff]
    %v250 = vld [vmem:[%s2 + $0x8] sm:$0xff]
    %v252 = vperm.slane %v244, 0
    %vm254 = vcmask 130048
    %v256 = vsel %vm254, %v239, 0
    %v259 = vsel %vm254, %v242, 0
    %261 = vmatpush.msra.mxu0 0.0
    %262 = vmatpush.msra.mxu0 0.0
    %263 = vmatpush.msra.mxu0 0.0
    %264 = vmatpush.msra.mxu0 0.0
    %265 = vmatpush.msra.mxu0 0.0
    %266 = vmatpush.msra.mxu0 0.0
    %267 = vmatpush.msra.mxu0 0.0
    %268 = vmatpush.msra.mxu0 0.0
    %269 = vmatpush.msra.mxu0 0.0
    %270 = vmatpush.msra.mxu0 0.0
    %271 = vmatpush.msra.mxu0 0.0
    %272 = vmatpush.msra.mxu0 0.0
    %273 = vmatpush.msra.mxu0 0.0
    %274 = vmatpush.msra.mxu0 0.0
    %275 = vmatpush.msra.mxu0 %v250
    %276 = vmatpush.msra.mxu0 %v249
    %277 = vmatmul.f32.gmra.mxu0 %v256
    %v278 = vpop.f32.mrf.mxu0
    %v279 = vadd.f32 %v252, %v278
    %280 = vmatmul.f32.gmra.mxu0 %v259
    %v281 = vpop.f32.mrf.mxu0
    %v282 = vadd.f32 %v252, %v281
    %283 = vdwg.mxu0
    %v284 = vld [vmem:[%s3] sm:$0xff]
    %v285 = vld [vmem:[%s3 + $0x8] sm:$0xff]
    %v286 = vld [vmem:[#allocation4] sm:$0xff]
    %v287 = vld [vmem:[#allocation4 + $0x8] sm:$0xff]
    %v288 = vld [vmem:[#allocation4 + $0x10] sm:$0xff]
    %v289 = vld [vmem:[#allocation4 + $0x18] sm:$0xff]
    %s290 = scalar_lea.vmem [#allocation4], 32
    %v291 = vld [vmem:[%s290] sm:$0xff]
    %v292 = vld [vmem:[%s290 + $0x8] sm:$0xff]
    %v293 = vld [vmem:[%s290 + $0x10] sm:$0xff]
    %v294 = vld [vmem:[%s290 + $0x18] sm:$0xff]
    %v295 = vld [vmem:[%s8] sm:$0x3]
    %s296 = scalar_lea.vmem %s8, 2
    %v297 = vld [vmem:[%s296] sm:$0x3]
    %s298 = scalar_lea.vmem %s8, 4
    %v299 = vld [vmem:[%s298] sm:$0x3]
    %v300 = vld [vmem:[#allocation10] sm:$0x3]
    %s301 = scalar_lea.vmem [#allocation10], 2
    %v302 = vld [vmem:[%s301] sm:$0x3]
    %s303 = scalar_lea.vmem [#allocation10], 4
    %v304 = vld [vmem:[%s303] sm:$0x3]
    %v306 = vsel %vm254, %v295, 0
    %308 = vmatpush.msra.mxu0 0.0
    %309 = vmatpush.msra.mxu0 0.0
    %310 = vmatpush.msra.mxu0 0.0
    %311 = vmatpush.msra.mxu0 0.0
    %312 = vmatpush.msra.mxu0 0.0
    %313 = vmatpush.msra.mxu0 0.0
    %314 = vmatpush.msra.mxu0 0.0
    %315 = vmatpush.msra.mxu0 0.0
    %316 = vmatpush.msra.mxu0 0.0
    %317 = vmatpush.msra.mxu0 0.0
    %318 = vmatpush.msra.mxu0 0.0
    %319 = vmatpush.msra.mxu0 0.0
    %320 = vmatpush.msra.mxu0 0.0
    %321 = vmatpush.msra.mxu0 0.0
    %322 = vmatpush.msra.mxu0 %v285
    %323 = vmatpush.msra.mxu0 %v284
    %324 = vmatmul.f32.gmra.mxu0 %v306
    %v325 = vpop.f32.mrf.mxu0
    %v326 = vadd.f32 0.0, %v325
    %327 = vdwg.mxu0
    %v328 = vadd.f32 %v279, %v326
    %v329 = vxor.u32 %v328, 2147483648
    %v330 = vmul.f32 %v329, 1.442695
    %v331 = vpow.pop %v330
    %v332 = vadd.f32 %v331, 1.0
    %v333 = vrcp.pop %v332
    %v334 = vmul.f32 %v332, %v333
    %v335 = vsub.f32 1.0, %v334
    %v336 = vmul.f32 %v333, %v335
    %v337 = vadd.f32 %v333, %v336
    %vm338 = vweird.f32 %v332
    %vm339 = vweird.f32 %v333
    %vm340 = vmor %vm338, %vm339
    %v341 = vsel %vm340, %v333, %v337
    %v342 = vand.u32 2147483647, %v332
    %vm343 = vcmp.eq.f32.partialorder %v342, 8.507059e+37
    %v344 = vand.u32 %v332, 2147483648
    %v345 = vor.u32 1.1754944e-38, %v344
    %v346 = vsel %vm343, %v345, %v341
    %v347 = vmul.f32 1.0, %v346
    %v348 = vtanh.pop %v328
    %350 = vrot.lane.b32.xlu0 %v300, 16
    %v351 = vpop.permute.xlu0 %350
    %v353 = vmul.f32 %v347, %v351
    %355 = vrot.lane.b32.xlu0 %v348, 80
    %v356 = vpop.permute.xlu0 %355
    %v358 = vmul.f32 %v347, %v356
    %360 = vrot.lane.b32.xlu0 %v358, 16
    %v361 = vpop.permute.xlu0 %360
    %v363 = vadd.f32 %v353, %v361
    %v364 = vtanh.pop %v363
    %366 = vrot.lane.b32.xlu0 %v364, 16
    %v367 = vpop.permute.xlu0 %366
    %v369 = vmul.f32 %v347, %v367
    %371 = vrot.lane.b32.xlu0 %v369, 96
    %v372 = vpop.permute.xlu0 %371
    %375 = vrot.lane.b32.xlu0 %v297, 16
    %v376 = vpop.permute.xlu0 %375
    %v378 = vsel %vm254, %v372, %v376
    %v380 = vperm.slane %v246, 0
    %v383 = vsel %vm214, %v378, 0
    %385 = vmatpush.msra.mxu0 0.0
    %386 = vmatpush.msra.mxu0 0.0
    %387 = vmatpush.msra.mxu0 0.0
    %388 = vmatpush.msra.mxu0 0.0
    %389 = vmatpush.msra.mxu0 0.0
    %390 = vmatpush.msra.mxu0 0.0
    %391 = vmatpush.msra.mxu0 0.0
    %392 = vmatpush.msra.mxu0 0.0
    %393 = vmatpush.msra.mxu0 0.0
    %394 = vmatpush.msra.mxu0 0.0
    %395 = vmatpush.msra.mxu0 0.0
    %396 = vmatpush.msra.mxu0 0.0
    %397 = vmatpush.msra.mxu0 %v289
    %398 = vmatpush.msra.mxu0 %v288
    %399 = vmatpush.msra.mxu0 %v287
    %400 = vmatpush.msra.mxu0 %v286
    %401 = vmatmul.f32.gmra.mxu0 %v383
    %v402 = vpop.f32.mrf.mxu0
    %v403 = vadd.f32 %v380, %v402
    %404 = vdwg.mxu0
    %v405 = vxor.u32 %v403, 2147483648
    %v406 = vmul.f32 %v405, 1.442695
    %v407 = vpow.pop %v406
    %v408 = vadd.f32 %v407, 1.0
    %v409 = vrcp.pop %v408
    %v410 = vmul.f32 %v408, %v409
    %v411 = vsub.f32 1.0, %v410
    %v412 = vmul.f32 %v409, %v411
    %v413 = vadd.f32 %v409, %v412
    %vm414 = vweird.f32 %v408
    %vm415 = vweird.f32 %v409
    %vm416 = vmor %vm414, %vm415
    %v417 = vsel %vm416, %v409, %v413
    %v418 = vand.u32 2147483647, %v408
    %vm419 = vcmp.eq.f32.partialorder %v418, 8.507059e+37
    %v420 = vand.u32 %v408, 2147483648
    %v421 = vor.u32 1.1754944e-38, %v420
    %v422 = vsel %vm419, %v421, %v417
    %v423 = vmul.f32 1.0, %v422
    %v424 = vtanh.pop %v403
    %426 = vrot.lane.b32.xlu0 %v302, 16
    %v427 = vpop.permute.xlu0 %426
    %v429 = vmul.f32 %v423, %v427
    %431 = vrot.lane.b32.xlu0 %v424, 80
    %v432 = vpop.permute.xlu0 %431
    %v434 = vmul.f32 %v423, %v432
    %436 = vrot.lane.b32.xlu0 %v434, 16
    %v437 = vpop.permute.xlu0 %436
    %v439 = vadd.f32 %v429, %v437
    %v440 = vtanh.pop %v439
    %442 = vrot.lane.b32.xlu0 %v440, 16
    %v443 = vpop.permute.xlu0 %442
    %v445 = vmul.f32 %v423, %v443
    %447 = vrot.lane.b32.xlu0 %v445, 96
    %v448 = vpop.permute.xlu0 %447
    %451 = vrot.lane.b32.xlu0 %v299, 16
    %v452 = vpop.permute.xlu0 %451
    %v454 = vsel %vm254, %v448, %v452
    %v456 = vperm.slane %v248, 0
    %v459 = vsel %vm214, %v454, 0
    %461 = vmatpush.msra.mxu0 0.0
    %462 = vmatpush.msra.mxu0 0.0
    %463 = vmatpush.msra.mxu0 0.0
    %464 = vmatpush.msra.mxu0 0.0
    %465 = vmatpush.msra.mxu0 0.0
    %466 = vmatpush.msra.mxu0 0.0
    %467 = vmatpush.msra.mxu0 0.0
    %468 = vmatpush.msra.mxu0 0.0
    %469 = vmatpush.msra.mxu0 0.0
    %470 = vmatpush.msra.mxu0 0.0
    %471 = vmatpush.msra.mxu0 0.0
    %472 = vmatpush.msra.mxu0 0.0
    %473 = vmatpush.msra.mxu0 %v294
    %474 = vmatpush.msra.mxu0 %v293
    %475 = vmatpush.msra.mxu0 %v292
    %476 = vmatpush.msra.mxu0 %v291
    %477 = vmatmul.f32.gmra.mxu0 %v459
    %v478 = vpop.f32.mrf.mxu0
    %v479 = vadd.f32 %v456, %v478
    %480 = vdwg.mxu0
    %v481 = vxor.u32 %v479, 2147483648
    %v482 = vmul.f32 %v481, 1.442695
    %v483 = vpow.pop %v482
    %v484 = vadd.f32 %v483, 1.0
    %v485 = vrcp.pop %v484
    %v486 = vmul.f32 %v484, %v485
    %v487 = vsub.f32 1.0, %v486
    %v488 = vmul.f32 %v485, %v487
    %v489 = vadd.f32 %v485, %v488
    %vm490 = vweird.f32 %v484
    %vm491 = vweird.f32 %v485
    %vm492 = vmor %vm490, %vm491
    %v493 = vsel %vm492, %v485, %v489
    %v494 = vand.u32 2147483647, %v484
    %vm495 = vcmp.eq.f32.partialorder %v494, 8.507059e+37
    %v496 = vand.u32 %v484, 2147483648
    %v497 = vor.u32 1.1754944e-38, %v496
    %v498 = vsel %vm495, %v497, %v493
    %v499 = vmul.f32 1.0, %v498
    %v500 = vtanh.pop %v479
    %502 = vrot.lane.b32.xlu0 %v304, 16
    %v503 = vpop.permute.xlu0 %502
    %v505 = vmul.f32 %v499, %v503
    %507 = vrot.lane.b32.xlu0 %v500, 80
    %v508 = vpop.permute.xlu0 %507
    %v510 = vmul.f32 %v499, %v508
    %512 = vrot.lane.b32.xlu0 %v510, 16
    %v513 = vpop.permute.xlu0 %512
    %v515 = vadd.f32 %v505, %v513
    %v516 = vtanh.pop %v515
    %518 = vrot.lane.b32.xlu0 %v516, 16
    %v519 = vpop.permute.xlu0 %518
    %v521 = vmul.f32 %v499, %v519
    %v522 = vsel %vm254, %v372, 0
    %524 = vmatpush.msra.mxu0 0.0
    %525 = vmatpush.msra.mxu0 0.0
    %526 = vmatpush.msra.mxu0 0.0
    %527 = vmatpush.msra.mxu0 0.0
    %528 = vmatpush.msra.mxu0 0.0
    %529 = vmatpush.msra.mxu0 0.0
    %530 = vmatpush.msra.mxu0 0.0
    %531 = vmatpush.msra.mxu0 0.0
    %532 = vmatpush.msra.mxu0 0.0
    %533 = vmatpush.msra.mxu0 0.0
    %534 = vmatpush.msra.mxu0 0.0
    %535 = vmatpush.msra.mxu0 0.0
    %536 = vmatpush.msra.mxu0 0.0
    %537 = vmatpush.msra.mxu0 0.0
    %538 = vmatpush.msra.mxu0 %v285
    %539 = vmatpush.msra.mxu0 %v284
    %540 = vmatmul.f32.gmra.mxu0 %v522
    %v541 = vpop.f32.mrf.mxu0
    %v542 = vadd.f32 0.0, %v541
    %543 = vdwg.mxu0
    %v545 = vrot.slane %v542, 6
    %v547 = vadd.f32 %v279, %v545
    %v548 = vxor.u32 %v547, 2147483648
    %v549 = vmul.f32 %v548, 1.442695
    %v550 = vpow.pop %v549
    %v551 = vadd.f32 %v550, 1.0
    %v552 = vrcp.pop %v551
    %v553 = vmul.f32 %v551, %v552
    %v554 = vsub.f32 1.0, %v553
    %v555 = vmul.f32 %v552, %v554
    %v556 = vadd.f32 %v552, %v555
    %vm557 = vweird.f32 %v551
    %vm558 = vweird.f32 %v552
    %vm559 = vmor %vm557, %vm558
    %v560 = vsel %vm559, %v552, %v556
    %v561 = vand.u32 2147483647, %v551
    %vm562 = vcmp.eq.f32.partialorder %v561, 8.507059e+37
    %v563 = vand.u32 %v551, 2147483648
    %v564 = vor.u32 1.1754944e-38, %v563
    %v565 = vsel %vm562, %v564, %v560
    %v566 = vmul.f32 1.0, %v565
    %v567 = vtanh.pop %v547
    %v569 = vrot.slane %v363, 6
    %v571 = vmul.f32 %v566, %v569
    %573 = vrot.lane.b32.xlu0 %v567, 80
    %v574 = vpop.permute.xlu0 %573
    %v576 = vmul.f32 %v566, %v574
    %578 = vrot.lane.b32.xlu0 %v576, 16
    %v579 = vpop.permute.xlu0 %578
    %v581 = vadd.f32 %v571, %v579
    %v582 = vtanh.pop %v581
    %584 = vrot.lane.b32.xlu0 %v582, 16
    %v585 = vpop.permute.xlu0 %584
    %v587 = vmul.f32 %v566, %v585
    %589 = vrot.lane.b32.xlu0 %v587, 96
    %v590 = vpop.permute.xlu0 %589
    %v592 = vrot.slane %v445, 6
    %593 = vrot.lane.b32.xlu0 %v592, 112
    %v594 = vpop.permute.xlu0 %593
    %v596 = vsel %vm254, %v590, %v594
    %v598 = vrot.slane %v596, 2
    %v599 = vsel %vm214, %v598, 0
    %601 = vmatpush.msra.mxu0 0.0
    %602 = vmatpush.msra.mxu0 0.0
    %603 = vmatpush.msra.mxu0 0.0
    %604 = vmatpush.msra.mxu0 0.0
    %605 = vmatpush.msra.mxu0 0.0
    %606 = vmatpush.msra.mxu0 0.0
    %607 = vmatpush.msra.mxu0 0.0
    %608 = vmatpush.msra.mxu0 0.0
    %609 = vmatpush.msra.mxu0 0.0
    %610 = vmatpush.msra.mxu0 0.0
    %611 = vmatpush.msra.mxu0 0.0
    %612 = vmatpush.msra.mxu0 0.0
    %613 = vmatpush.msra.mxu0 %v289
    %614 = vmatpush.msra.mxu0 %v288
    %615 = vmatpush.msra.mxu0 %v287
    %616 = vmatpush.msra.mxu0 %v286
    %617 = vmatmul.f32.gmra.mxu0 %v599
    %v618 = vpop.f32.mrf.mxu0
    %v619 = vadd.f32 %v380, %v618
    %620 = vdwg.mxu0
    %v621 = vxor.u32 %v619, 2147483648
    %v622 = vmul.f32 %v621, 1.442695
    %v623 = vpow.pop %v622
    %v624 = vadd.f32 %v623, 1.0
    %v625 = vrcp.pop %v624
    %v626 = vmul.f32 %v624, %v625
    %v627 = vsub.f32 1.0, %v626
    %v628 = vmul.f32 %v625, %v627
    %v629 = vadd.f32 %v625, %v628
    %vm630 = vweird.f32 %v624
    %vm631 = vweird.f32 %v625
    %vm632 = vmor %vm630, %vm631
    %v633 = vsel %vm632, %v625, %v629
    %v634 = vand.u32 2147483647, %v624
    %vm635 = vcmp.eq.f32.partialorder %v634, 8.507059e+37
    %v636 = vand.u32 %v624, 2147483648
    %v637 = vor.u32 1.1754944e-38, %v636
    %v638 = vsel %vm635, %v637, %v633
    %v639 = vmul.f32 1.0, %v638
    %v640 = vtanh.pop %v619
    %v641 = vmul.f32 %v639, %v439
    %643 = vrot.lane.b32.xlu0 %v640, 80
    %v644 = vpop.permute.xlu0 %643
    %v646 = vmul.f32 %v639, %v644
    %648 = vrot.lane.b32.xlu0 %v646, 16
    %v649 = vpop.permute.xlu0 %648
    %v651 = vadd.f32 %v641, %v649
    %v652 = vtanh.pop %v651
    %654 = vrot.lane.b32.xlu0 %v652, 16
    %v655 = vpop.permute.xlu0 %654
    %v657 = vmul.f32 %v639, %v655
    %659 = vrot.lane.b32.xlu0 %v657, 96
    %v660 = vpop.permute.xlu0 %659
    %663 = vrot.lane.b32.xlu0 %v521, 112
    %v664 = vpop.permute.xlu0 %663
    %v666 = vsel %vm254, %v660, %v664
    %v668 = vsel %vm214, %v666, 0
    %670 = vmatpush.msra.mxu0 0.0
    %671 = vmatpush.msra.mxu0 0.0
    %672 = vmatpush.msra.mxu0 0.0
    %673 = vmatpush.msra.mxu0 0.0
    %674 = vmatpush.msra.mxu0 0.0
    %675 = vmatpush.msra.mxu0 0.0
    %676 = vmatpush.msra.mxu0 0.0
    %677 = vmatpush.msra.mxu0 0.0
    %678 = vmatpush.msra.mxu0 0.0
    %679 = vmatpush.msra.mxu0 0.0
    %680 = vmatpush.msra.mxu0 0.0
    %681 = vmatpush.msra.mxu0 0.0
    %682 = vmatpush.msra.mxu0 %v294
    %683 = vmatpush.msra.mxu0 %v293
    %684 = vmatpush.msra.mxu0 %v292
    %685 = vmatpush.msra.mxu0 %v291
    %686 = vmatmul.f32.gmra.mxu0 %v668
    %v687 = vpop.f32.mrf.mxu0
    %v688 = vadd.f32 %v456, %v687
    %689 = vdwg.mxu0
    %v690 = vxor.u32 %v688, 2147483648
    %v691 = vmul.f32 %v690, 1.442695
    %v692 = vpow.pop %v691
    %v693 = vadd.f32 %v692, 1.0
    %v694 = vrcp.pop %v693
    %v695 = vmul.f32 %v693, %v694
    %v696 = vsub.f32 1.0, %v695
    %v697 = vmul.f32 %v694, %v696
    %v698 = vadd.f32 %v694, %v697
    %vm699 = vweird.f32 %v693
    %vm700 = vweird.f32 %v694
    %vm701 = vmor %vm699, %vm700
    %v702 = vsel %vm701, %v694, %v698
    %v703 = vand.u32 2147483647, %v693
    %vm704 = vcmp.eq.f32.partialorder %v703, 8.507059e+37
    %v705 = vand.u32 %v693, 2147483648
    %v706 = vor.u32 1.1754944e-38, %v705
    %v707 = vsel %vm704, %v706, %v702
    %v708 = vmul.f32 1.0, %v707
    %v709 = vtanh.pop %v688
    %v710 = vmul.f32 %v708, %v515
    %712 = vrot.lane.b32.xlu0 %v709, 80
    %v713 = vpop.permute.xlu0 %712
    %v715 = vmul.f32 %v708, %v713
    %717 = vrot.lane.b32.xlu0 %v715, 16
    %v718 = vpop.permute.xlu0 %717
    %v720 = vadd.f32 %v710, %v718
    %v721 = vtanh.pop %v720
    %723 = vrot.lane.b32.xlu0 %v721, 16
    %v724 = vpop.permute.xlu0 %723
    %v726 = vmul.f32 %v708, %v724
    %v727 = vrot.slane %v587, 2
    %728 = vrot.lane.b32.xlu0 %v727, 96
    %v729 = vpop.permute.xlu0 %728
    %v730 = vsel %vm254, %v729, 0
    %732 = vmatpush.msra.mxu0 0.0
    %733 = vmatpush.msra.mxu0 0.0
    %734 = vmatpush.msra.mxu0 0.0
    %735 = vmatpush.msra.mxu0 0.0
    %736 = vmatpush.msra.mxu0 0.0
    %737 = vmatpush.msra.mxu0 0.0
    %738 = vmatpush.msra.mxu0 0.0
    %739 = vmatpush.msra.mxu0 0.0
    %740 = vmatpush.msra.mxu0 0.0
    %741 = vmatpush.msra.mxu0 0.0
    %742 = vmatpush.msra.mxu0 0.0
    %743 = vmatpush.msra.mxu0 0.0
    %744 = vmatpush.msra.mxu0 0.0
    %745 = vmatpush.msra.mxu0 0.0
    %746 = vmatpush.msra.mxu0 %v285
    %747 = vmatpush.msra.mxu0 %v284
    %748 = vmatmul.f32.gmra.mxu0 %v730
    %v749 = vpop.f32.mrf.mxu0
    %v750 = vadd.f32 0.0, %v749
    %751 = vdwg.mxu0
    %v753 = vrot.slane %v750, 4
    %v755 = vadd.f32 %v279, %v753
    %v756 = vxor.u32 %v755, 2147483648
    %v757 = vmul.f32 %v756, 1.442695
    %v758 = vpow.pop %v757
    %v759 = vadd.f32 %v758, 1.0
    %v760 = vrcp.pop %v759
    %v761 = vmul.f32 %v759, %v760
    %v762 = vsub.f32 1.0, %v761
    %v763 = vmul.f32 %v760, %v762
    %v764 = vadd.f32 %v760, %v763
    %vm765 = vweird.f32 %v759
    %vm766 = vweird.f32 %v760
    %vm767 = vmor %vm765, %vm766
    %v768 = vsel %vm767, %v760, %v764
    %v769 = vand.u32 2147483647, %v759
    %vm770 = vcmp.eq.f32.partialorder %v769, 8.507059e+37
    %v771 = vand.u32 %v759, 2147483648
    %v772 = vor.u32 1.1754944e-38, %v771
    %v773 = vsel %vm770, %v772, %v768
    %v774 = vmul.f32 1.0, %v773
    %v775 = vtanh.pop %v755
    %v777 = vrot.slane %v581, 6
    %v779 = vmul.f32 %v774, %v777
    %781 = vrot.lane.b32.xlu0 %v775, 80
    %v782 = vpop.permute.xlu0 %781
    %v784 = vmul.f32 %v774, %v782
    %786 = vrot.lane.b32.xlu0 %v784, 16
    %v787 = vpop.permute.xlu0 %786
    %v789 = vadd.f32 %v779, %v787
    %v790 = vtanh.pop %v789
    %792 = vrot.lane.b32.xlu0 %v790, 16
    %v793 = vpop.permute.xlu0 %792
    %v795 = vmul.f32 %v774, %v793
    %797 = vrot.lane.b32.xlu0 %v795, 96
    %v798 = vpop.permute.xlu0 %797
    %v800 = vrot.slane %v657, 4
    %801 = vrot.lane.b32.xlu0 %v800, 112
    %v802 = vpop.permute.xlu0 %801
    %v804 = vsel %vm254, %v798, %v802
    %v806 = vrot.slane %v804, 4
    %v807 = vsel %vm214, %v806, 0
    %809 = vmatpush.msra.mxu0 0.0
    %810 = vmatpush.msra.mxu0 0.0
    %811 = vmatpush.msra.mxu0 0.0
    %812 = vmatpush.msra.mxu0 0.0
    %813 = vmatpush.msra.mxu0 0.0
    %814 = vmatpush.msra.mxu0 0.0
    %815 = vmatpush.msra.mxu0 0.0
    %816 = vmatpush.msra.mxu0 0.0
    %817 = vmatpush.msra.mxu0 0.0
    %818 = vmatpush.msra.mxu0 0.0
    %819 = vmatpush.msra.mxu0 0.0
    %820 = vmatpush.msra.mxu0 0.0
    %821 = vmatpush.msra.mxu0 %v289
    %822 = vmatpush.msra.mxu0 %v288
    %823 = vmatpush.msra.mxu0 %v287
    %824 = vmatpush.msra.mxu0 %v286
    %825 = vmatmul.f32.gmra.mxu0 %v807
    %v826 = vpop.f32.mrf.mxu0
    %v827 = vadd.f32 %v380, %v826
    %828 = vdwg.mxu0
    %v829 = vxor.u32 %v827, 2147483648
    %v830 = vmul.f32 %v829, 1.442695
    %v831 = vpow.pop %v830
    %v832 = vadd.f32 %v831, 1.0
    %v833 = vrcp.pop %v832
    %v834 = vmul.f32 %v832, %v833
    %v835 = vsub.f32 1.0, %v834
    %v836 = vmul.f32 %v833, %v835
    %v837 = vadd.f32 %v833, %v836
    %vm838 = vweird.f32 %v832
    %vm839 = vweird.f32 %v833
    %vm840 = vmor %vm838, %vm839
    %v841 = vsel %vm840, %v833, %v837
    %v842 = vand.u32 2147483647, %v832
    %vm843 = vcmp.eq.f32.partialorder %v842, 8.507059e+37
    %v844 = vand.u32 %v832, 2147483648
    %v845 = vor.u32 1.1754944e-38, %v844
    %v846 = vsel %vm843, %v845, %v841
    %v847 = vmul.f32 1.0, %v846
    %v848 = vtanh.pop %v827
    %v849 = vmul.f32 %v847, %v651
    %851 = vrot.lane.b32.xlu0 %v848, 80
    %v852 = vpop.permute.xlu0 %851
    %v854 = vmul.f32 %v847, %v852
    %856 = vrot.lane.b32.xlu0 %v854, 16
    %v857 = vpop.permute.xlu0 %856
    %v859 = vadd.f32 %v849, %v857
    %v860 = vtanh.pop %v859
    %862 = vrot.lane.b32.xlu0 %v860, 16
    %v863 = vpop.permute.xlu0 %862
    %v865 = vmul.f32 %v847, %v863
    %867 = vrot.lane.b32.xlu0 %v865, 96
    %v868 = vpop.permute.xlu0 %867
    %871 = vrot.lane.b32.xlu0 %v726, 112
    %v872 = vpop.permute.xlu0 %871
    %v874 = vsel %vm254, %v868, %v872
    %v876 = vsel %vm214, %v874, 0
    %878 = vmatpush.msra.mxu0 0.0
    %879 = vmatpush.msra.mxu0 0.0
    %880 = vmatpush.msra.mxu0 0.0
    %881 = vmatpush.msra.mxu0 0.0
    %882 = vmatpush.msra.mxu0 0.0
    %883 = vmatpush.msra.mxu0 0.0
    %884 = vmatpush.msra.mxu0 0.0
    %885 = vmatpush.msra.mxu0 0.0
    %886 = vmatpush.msra.mxu0 0.0
    %887 = vmatpush.msra.mxu0 0.0
    %888 = vmatpush.msra.mxu0 0.0
    %889 = vmatpush.msra.mxu0 0.0
    %890 = vmatpush.msra.mxu0 %v294
    %891 = vmatpush.msra.mxu0 %v293
    %892 = vmatpush.msra.mxu0 %v292
    %893 = vmatpush.msra.mxu0 %v291
    %894 = vmatmul.f32.gmra.mxu0 %v876
    %v895 = vpop.f32.mrf.mxu0
    %v896 = vadd.f32 %v456, %v895
    %897 = vdwg.mxu0
    %v898 = vxor.u32 %v896, 2147483648
    %v899 = vmul.f32 %v898, 1.442695
    %v900 = vpow.pop %v899
    %v901 = vadd.f32 %v900, 1.0
    %v902 = vrcp.pop %v901
    %v903 = vmul.f32 %v901, %v902
    %v904 = vsub.f32 1.0, %v903
    %v905 = vmul.f32 %v902, %v904
    %v906 = vadd.f32 %v902, %v905
    %vm907 = vweird.f32 %v901
    %vm908 = vweird.f32 %v902
    %vm909 = vmor %vm907, %vm908
    %v910 = vsel %vm909, %v902, %v906
    %v911 = vand.u32 2147483647, %v901
    %vm912 = vcmp.eq.f32.partialorder %v911, 8.507059e+37
    %v913 = vand.u32 %v901, 2147483648
    %v914 = vor.u32 1.1754944e-38, %v913
    %v915 = vsel %vm912, %v914, %v910
    %v916 = vmul.f32 1.0, %v915
    %v917 = vtanh.pop %v896
    %v918 = vmul.f32 %v916, %v720
    %920 = vrot.lane.b32.xlu0 %v917, 80
    %v921 = vpop.permute.xlu0 %920
    %v923 = vmul.f32 %v916, %v921
    %925 = vrot.lane.b32.xlu0 %v923, 16
    %v926 = vpop.permute.xlu0 %925
    %v928 = vadd.f32 %v918, %v926
    %v929 = vtanh.pop %v928
    %931 = vrot.lane.b32.xlu0 %v929, 16
    %v932 = vpop.permute.xlu0 %931
    %v934 = vmul.f32 %v916, %v932
    %v935 = vrot.slane %v795, 4
    %936 = vrot.lane.b32.xlu0 %v935, 96
    %v937 = vpop.permute.xlu0 %936
    %v938 = vsel %vm254, %v937, 0
    %940 = vmatpush.msra.mxu0 0.0
    %941 = vmatpush.msra.mxu0 0.0
    %942 = vmatpush.msra.mxu0 0.0
    %943 = vmatpush.msra.mxu0 0.0
    %944 = vmatpush.msra.mxu0 0.0
    %945 = vmatpush.msra.mxu0 0.0
    %946 = vmatpush.msra.mxu0 0.0
    %947 = vmatpush.msra.mxu0 0.0
    %948 = vmatpush.msra.mxu0 0.0
    %949 = vmatpush.msra.mxu0 0.0
    %950 = vmatpush.msra.mxu0 0.0
    %951 = vmatpush.msra.mxu0 0.0
    %952 = vmatpush.msra.mxu0 0.0
    %953 = vmatpush.msra.mxu0 0.0
    %954 = vmatpush.msra.mxu0 %v285
    %955 = vmatpush.msra.mxu0 %v284
    %956 = vmatmul.f32.gmra.mxu0 %v938
    %v957 = vpop.f32.mrf.mxu0
    %v958 = vadd.f32 0.0, %v957
    %959 = vdwg.mxu0
    %v961 = vrot.slane %v958, 2
    %v963 = vadd.f32 %v279, %v961
    %v964 = vxor.u32 %v963, 2147483648
    %v965 = vmul.f32 %v964, 1.442695
    %v966 = vpow.pop %v965
    %v967 = vadd.f32 %v966, 1.0
    %v968 = vrcp.pop %v967
    %v969 = vmul.f32 %v967, %v968
    %v970 = vsub.f32 1.0, %v969
    %v971 = vmul.f32 %v968, %v970
    %v972 = vadd.f32 %v968, %v971
    %vm973 = vweird.f32 %v967
    %vm974 = vweird.f32 %v968
    %vm975 = vmor %vm973, %vm974
    %v976 = vsel %vm975, %v968, %v972
    %v977 = vand.u32 2147483647, %v967
    %vm978 = vcmp.eq.f32.partialorder %v977, 8.507059e+37
    %v979 = vand.u32 %v967, 2147483648
    %v980 = vor.u32 1.1754944e-38, %v979
    %v981 = vsel %vm978, %v980, %v976
    %v982 = vmul.f32 1.0, %v981
    %v983 = vtanh.pop %v963
    %v985 = vrot.slane %v789, 6
    %v987 = vmul.f32 %v982, %v985
    %989 = vrot.lane.b32.xlu0 %v983, 80
    %v990 = vpop.permute.xlu0 %989
    %v992 = vmul.f32 %v982, %v990
    %994 = vrot.lane.b32.xlu0 %v992, 16
    %v995 = vpop.permute.xlu0 %994
    %v997 = vadd.f32 %v987, %v995
    %v998 = vtanh.pop %v997
    %1000 = vrot.lane.b32.xlu0 %v998, 16
    %v1001 = vpop.permute.xlu0 %1000
    %v1003 = vmul.f32 %v982, %v1001
    %1005 = vrot.lane.b32.xlu0 %v1003, 96
    %v1006 = vpop.permute.xlu0 %1005
    %v1008 = vrot.slane %v865, 2
    %1009 = vrot.lane.b32.xlu0 %v1008, 112
    %v1010 = vpop.permute.xlu0 %1009
    %v1012 = vsel %vm254, %v1006, %v1010
    %v1014 = vrot.slane %v1012, 6
    %v1015 = vsel %vm214, %v1014, 0
    %1017 = vmatpush.msra.mxu0 0.0
    %1018 = vmatpush.msra.mxu0 0.0
    %1019 = vmatpush.msra.mxu0 0.0
    %1020 = vmatpush.msra.mxu0 0.0
    %1021 = vmatpush.msra.mxu0 0.0
    %1022 = vmatpush.msra.mxu0 0.0
    %1023 = vmatpush.msra.mxu0 0.0
    %1024 = vmatpush.msra.mxu0 0.0
    %1025 = vmatpush.msra.mxu0 0.0
    %1026 = vmatpush.msra.mxu0 0.0
    %1027 = vmatpush.msra.mxu0 0.0
    %1028 = vmatpush.msra.mxu0 0.0
    %1029 = vmatpush.msra.mxu0 %v289
    %1030 = vmatpush.msra.mxu0 %v288
    %1031 = vmatpush.msra.mxu0 %v287
    %1032 = vmatpush.msra.mxu0 %v286
    %1033 = vmatmul.f32.gmra.mxu0 %v1015
    %v1034 = vpop.f32.mrf.mxu0
    %v1035 = vadd.f32 %v380, %v1034
    %1036 = vdwg.mxu0
    %v1037 = vxor.u32 %v1035, 2147483648
    %v1038 = vmul.f32 %v1037, 1.442695
    %v1039 = vpow.pop %v1038
    %v1040 = vadd.f32 %v1039, 1.0
    %v1041 = vrcp.pop %v1040
    %v1042 = vmul.f32 %v1040, %v1041
    %v1043 = vsub.f32 1.0, %v1042
    %v1044 = vmul.f32 %v1041, %v1043
    %v1045 = vadd.f32 %v1041, %v1044
    %vm1046 = vweird.f32 %v1040
    %vm1047 = vweird.f32 %v1041
    %vm1048 = vmor %vm1046, %vm1047
    %v1049 = vsel %vm1048, %v1041, %v1045
    %v1050 = vand.u32 2147483647, %v1040
    %vm1051 = vcmp.eq.f32.partialorder %v1050, 8.507059e+37
    %v1052 = vand.u32 %v1040, 2147483648
    %v1053 = vor.u32 1.1754944e-38, %v1052
    %v1054 = vsel %vm1051, %v1053, %v1049
    %v1055 = vmul.f32 1.0, %v1054
    %v1056 = vtanh.pop %v1035
    %v1057 = vmul.f32 %v1055, %v859
    %1059 = vrot.lane.b32.xlu0 %v1056, 80
    %v1060 = vpop.permute.xlu0 %1059
    %v1062 = vmul.f32 %v1055, %v1060
    %1064 = vrot.lane.b32.xlu0 %v1062, 16
    %v1065 = vpop.permute.xlu0 %1064
    %v1067 = vadd.f32 %v1057, %v1065
    %v1068 = vtanh.pop %v1067
    %1070 = vrot.lane.b32.xlu0 %v1068, 16
    %v1071 = vpop.permute.xlu0 %1070
    %v1073 = vmul.f32 %v1055, %v1071
    %1075 = vrot.lane.b32.xlu0 %v1073, 96
    %v1076 = vpop.permute.xlu0 %1075
    %1079 = vrot.lane.b32.xlu0 %v934, 112
    %v1080 = vpop.permute.xlu0 %1079
    %v1082 = vsel %vm254, %v1076, %v1080
    %v1084 = vsel %vm214, %v1082, 0
    %1086 = vmatpush.msra.mxu0 0.0
    %1087 = vmatpush.msra.mxu0 0.0
    %1088 = vmatpush.msra.mxu0 0.0
    %1089 = vmatpush.msra.mxu0 0.0
    %1090 = vmatpush.msra.mxu0 0.0
    %1091 = vmatpush.msra.mxu0 0.0
    %1092 = vmatpush.msra.mxu0 0.0
    %1093 = vmatpush.msra.mxu0 0.0
    %1094 = vmatpush.msra.mxu0 0.0
    %1095 = vmatpush.msra.mxu0 0.0
    %1096 = vmatpush.msra.mxu0 0.0
    %1097 = vmatpush.msra.mxu0 0.0
    %1098 = vmatpush.msra.mxu0 %v294
    %1099 = vmatpush.msra.mxu0 %v293
    %1100 = vmatpush.msra.mxu0 %v292
    %1101 = vmatpush.msra.mxu0 %v291
    %1102 = vmatmul.f32.gmra.mxu0 %v1084
    %v1103 = vpop.f32.mrf.mxu0
    %v1104 = vadd.f32 %v456, %v1103
    %1105 = vdwg.mxu0
    %v1106 = vxor.u32 %v1104, 2147483648
    %v1107 = vmul.f32 %v1106, 1.442695
    %v1108 = vpow.pop %v1107
    %v1109 = vadd.f32 %v1108, 1.0
    %v1110 = vrcp.pop %v1109
    %v1111 = vmul.f32 %v1109, %v1110
    %v1112 = vsub.f32 1.0, %v1111
    %v1113 = vmul.f32 %v1110, %v1112
    %v1114 = vadd.f32 %v1110, %v1113
    %vm1115 = vweird.f32 %v1109
    %vm1116 = vweird.f32 %v1110
    %vm1117 = vmor %vm1115, %vm1116
    %v1118 = vsel %vm1117, %v1110, %v1114
    %v1119 = vand.u32 2147483647, %v1109
    %vm1120 = vcmp.eq.f32.partialorder %v1119, 8.507059e+37
    %v1121 = vand.u32 %v1109, 2147483648
    %v1122 = vor.u32 1.1754944e-38, %v1121
    %v1123 = vsel %vm1120, %v1122, %v1118
    %v1124 = vmul.f32 1.0, %v1123
    %v1125 = vtanh.pop %v1104
    %v1126 = vmul.f32 %v1124, %v928
    %1128 = vrot.lane.b32.xlu0 %v1125, 80
    %v1129 = vpop.permute.xlu0 %1128
    %v1131 = vmul.f32 %v1124, %v1129
    %1133 = vrot.lane.b32.xlu0 %v1131, 16
    %v1134 = vpop.permute.xlu0 %1133
    %v1136 = vadd.f32 %v1126, %v1134
    %v1137 = vtanh.pop %v1136
    %1139 = vrot.lane.b32.xlu0 %v1137, 16
    %v1140 = vpop.permute.xlu0 %1139
    %v1142 = vmul.f32 %v1124, %v1140
    %v1143 = vrot.slane %v1003, 6
    %1144 = vrot.lane.b32.xlu0 %v1143, 96
    %v1145 = vpop.permute.xlu0 %1144
    %v1146 = vsel %vm254, %v1145, 0
    %1148 = vmatpush.msra.mxu0 0.0
    %1149 = vmatpush.msra.mxu0 0.0
    %1150 = vmatpush.msra.mxu0 0.0
    %1151 = vmatpush.msra.mxu0 0.0
    %1152 = vmatpush.msra.mxu0 0.0
    %1153 = vmatpush.msra.mxu0 0.0
    %1154 = vmatpush.msra.mxu0 0.0
    %1155 = vmatpush.msra.mxu0 0.0
    %1156 = vmatpush.msra.mxu0 0.0
    %1157 = vmatpush.msra.mxu0 0.0
    %1158 = vmatpush.msra.mxu0 0.0
    %1159 = vmatpush.msra.mxu0 0.0
    %1160 = vmatpush.msra.mxu0 0.0
    %1161 = vmatpush.msra.mxu0 0.0
    %1162 = vmatpush.msra.mxu0 %v285
    %1163 = vmatpush.msra.mxu0 %v284
    %1164 = vmatmul.f32.gmra.mxu0 %v1146
    %v1165 = vpop.f32.mrf.mxu0
    %v1166 = vadd.f32 0.0, %v1165
    %1167 = vdwg.mxu0
    %v1168 = vadd.f32 %v282, %v1166
    %v1169 = vxor.u32 %v1168, 2147483648
    %v1170 = vmul.f32 %v1169, 1.442695
    %v1171 = vpow.pop %v1170
    %v1172 = vadd.f32 %v1171, 1.0
    %v1173 = vrcp.pop %v1172
    %v1174 = vmul.f32 %v1172, %v1173
    %v1175 = vsub.f32 1.0, %v1174
    %v1176 = vmul.f32 %v1173, %v1175
    %v1177 = vadd.f32 %v1173, %v1176
    %vm1178 = vweird.f32 %v1172
    %vm1179 = vweird.f32 %v1173
    %vm1180 = vmor %vm1178, %vm1179
    %v1181 = vsel %vm1180, %v1173, %v1177
    %v1182 = vand.u32 2147483647, %v1172
    %vm1183 = vcmp.eq.f32.partialorder %v1182, 8.507059e+37
    %v1184 = vand.u32 %v1172, 2147483648
    %v1185 = vor.u32 1.1754944e-38, %v1184
    %v1186 = vsel %vm1183, %v1185, %v1181
    %v1187 = vmul.f32 1.0, %v1186
    %v1188 = vtanh.pop %v1168
    %v1190 = vrot.slane %v997, 6
    %v1192 = vmul.f32 %v1187, %v1190
    %1194 = vrot.lane.b32.xlu0 %v1188, 80
    %v1195 = vpop.permute.xlu0 %1194
    %v1197 = vmul.f32 %v1187, %v1195
    %1199 = vrot.lane.b32.xlu0 %v1197, 16
    %v1200 = vpop.permute.xlu0 %1199
    %v1202 = vadd.f32 %v1192, %v1200
    %v1203 = vtanh.pop %v1202
    %1205 = vrot.lane.b32.xlu0 %v1203, 16
    %v1206 = vpop.permute.xlu0 %1205
    %v1208 = vmul.f32 %v1187, %v1206
    %1210 = vrot.lane.b32.xlu0 %v1208, 96
    %v1211 = vpop.permute.xlu0 %1210
    %1213 = vrot.lane.b32.xlu0 %v1073, 112
    %v1214 = vpop.permute.xlu0 %1213
    %v1216 = vsel %vm254, %v1211, %v1214
    %v1218 = vsel %vm214, %v1216, 0
    %1220 = vmatpush.msra.mxu0 0.0
    %1221 = vmatpush.msra.mxu0 0.0
    %1222 = vmatpush.msra.mxu0 0.0
    %1223 = vmatpush.msra.mxu0 0.0
    %1224 = vmatpush.msra.mxu0 0.0
    %1225 = vmatpush.msra.mxu0 0.0
    %1226 = vmatpush.msra.mxu0 0.0
    %1227 = vmatpush.msra.mxu0 0.0
    %1228 = vmatpush.msra.mxu0 0.0
    %1229 = vmatpush.msra.mxu0 0.0
    %1230 = vmatpush.msra.mxu0 0.0
    %1231 = vmatpush.msra.mxu0 0.0
    %1232 = vmatpush.msra.mxu0 %v289
    %1233 = vmatpush.msra.mxu0 %v288
    %1234 = vmatpush.msra.mxu0 %v287
    %1235 = vmatpush.msra.mxu0 %v286
    %1236 = vmatmul.f32.gmra.mxu0 %v1218
    %v1237 = vpop.f32.mrf.mxu0
    %v1238 = vadd.f32 %v380, %v1237
    %1239 = vdwg.mxu0
    %v1240 = vxor.u32 %v1238, 2147483648
    %v1241 = vmul.f32 %v1240, 1.442695
    %v1242 = vpow.pop %v1241
    %v1243 = vadd.f32 %v1242, 1.0
    %v1244 = vrcp.pop %v1243
    %v1245 = vmul.f32 %v1243, %v1244
    %v1246 = vsub.f32 1.0, %v1245
    %v1247 = vmul.f32 %v1244, %v1246
    %v1248 = vadd.f32 %v1244, %v1247
    %vm1249 = vweird.f32 %v1243
    %vm1250 = vweird.f32 %v1244
    %vm1251 = vmor %vm1249, %vm1250
    %v1252 = vsel %vm1251, %v1244, %v1248
    %v1253 = vand.u32 2147483647, %v1243
    %vm1254 = vcmp.eq.f32.partialorder %v1253, 8.507059e+37
    %v1255 = vand.u32 %v1243, 2147483648
    %v1256 = vor.u32 1.1754944e-38, %v1255
    %v1257 = vsel %vm1254, %v1256, %v1252
    %v1258 = vmul.f32 1.0, %v1257
    %v1259 = vtanh.pop %v1238
    %v1260 = vmul.f32 %v1258, %v1067
    %1262 = vrot.lane.b32.xlu0 %v1259, 80
    %v1263 = vpop.permute.xlu0 %1262
    %v1265 = vmul.f32 %v1258, %v1263
    %1267 = vrot.lane.b32.xlu0 %v1265, 16
    %v1268 = vpop.permute.xlu0 %1267
    %v1270 = vadd.f32 %v1260, %v1268
    %v1271 = vtanh.pop %v1270
    %1273 = vrot.lane.b32.xlu0 %v1271, 16
    %v1274 = vpop.permute.xlu0 %1273
    %v1276 = vmul.f32 %v1258, %v1274
    %1278 = vrot.lane.b32.xlu0 %v1276, 96
    %v1279 = vpop.permute.xlu0 %1278
    %1282 = vrot.lane.b32.xlu0 %v1142, 112
    %v1283 = vpop.permute.xlu0 %1282
    %v1285 = vsel %vm254, %v1279, %v1283
    %v1287 = vsel %vm214, %v1285, 0
    %1289 = vmatpush.msra.mxu0 0.0
    %1290 = vmatpush.msra.mxu0 0.0
    %1291 = vmatpush.msra.mxu0 0.0
    %1292 = vmatpush.msra.mxu0 0.0
    %1293 = vmatpush.msra.mxu0 0.0
    %1294 = vmatpush.msra.mxu0 0.0
    %1295 = vmatpush.msra.mxu0 0.0
    %1296 = vmatpush.msra.mxu0 0.0
    %1297 = vmatpush.msra.mxu0 0.0
    %1298 = vmatpush.msra.mxu0 0.0
    %1299 = vmatpush.msra.mxu0 0.0
    %1300 = vmatpush.msra.mxu0 0.0
    %1301 = vmatpush.msra.mxu0 %v294
    %1302 = vmatpush.msra.mxu0 %v293
    %1303 = vmatpush.msra.mxu0 %v292
    %1304 = vmatpush.msra.mxu0 %v291
    %1305 = vmatmul.f32.gmra.mxu0 %v1287
    %v1306 = vpop.f32.mrf.mxu0
    %v1307 = vadd.f32 %v456, %v1306
    %1308 = vdwg.mxu0
    %v1309 = vxor.u32 %v1307, 2147483648
    %v1310 = vmul.f32 %v1309, 1.442695
    %v1311 = vpow.pop %v1310
    %v1312 = vadd.f32 %v1311, 1.0
    %v1313 = vrcp.pop %v1312
    %v1314 = vmul.f32 %v1312, %v1313
    %v1315 = vsub.f32 1.0, %v1314
    %v1316 = vmul.f32 %v1313, %v1315
    %v1317 = vadd.f32 %v1313, %v1316
    %vm1318 = vweird.f32 %v1312
    %vm1319 = vweird.f32 %v1313
    %vm1320 = vmor %vm1318, %vm1319
    %v1321 = vsel %vm1320, %v1313, %v1317
    %v1322 = vand.u32 2147483647, %v1312
    %vm1323 = vcmp.eq.f32.partialorder %v1322, 8.507059e+37
    %v1324 = vand.u32 %v1312, 2147483648
    %v1325 = vor.u32 1.1754944e-38, %v1324
    %v1326 = vsel %vm1323, %v1325, %v1321
    %v1327 = vmul.f32 1.0, %v1326
    %v1328 = vtanh.pop %v1307
    %v1329 = vmul.f32 %v1327, %v1136
    %1331 = vrot.lane.b32.xlu0 %v1328, 80
    %v1332 = vpop.permute.xlu0 %1331
    %v1334 = vmul.f32 %v1327, %v1332
    %1336 = vrot.lane.b32.xlu0 %v1334, 16
    %v1337 = vpop.permute.xlu0 %1336
    %v1339 = vadd.f32 %v1329, %v1337
    %v1340 = vtanh.pop %v1339
    %1342 = vrot.lane.b32.xlu0 %v1340, 16
    %v1343 = vpop.permute.xlu0 %1342
    %v1345 = vmul.f32 %v1327, %v1343
    %v1346 = vsel %vm254, %v1211, 0
    %1348 = vmatpush.msra.mxu0 0.0
    %1349 = vmatpush.msra.mxu0 0.0
    %1350 = vmatpush.msra.mxu0 0.0
    %1351 = vmatpush.msra.mxu0 0.0
    %1352 = vmatpush.msra.mxu0 0.0
    %1353 = vmatpush.msra.mxu0 0.0
    %1354 = vmatpush.msra.mxu0 0.0
    %1355 = vmatpush.msra.mxu0 0.0
    %1356 = vmatpush.msra.mxu0 0.0
    %1357 = vmatpush.msra.mxu0 0.0
    %1358 = vmatpush.msra.mxu0 0.0
    %1359 = vmatpush.msra.mxu0 0.0
    %1360 = vmatpush.msra.mxu0 0.0
    %1361 = vmatpush.msra.mxu0 0.0
    %1362 = vmatpush.msra.mxu0 %v285
    %1363 = vmatpush.msra.mxu0 %v284
    %1364 = vmatmul.f32.gmra.mxu0 %v1346
    %v1365 = vpop.f32.mrf.mxu0
    %v1366 = vadd.f32 0.0, %v1365
    %1367 = vdwg.mxu0
    %v1369 = vrot.slane %v1366, 6
    %v1371 = vadd.f32 %v282, %v1369
    %v1372 = vxor.u32 %v1371, 2147483648
    %v1373 = vmul.f32 %v1372, 1.442695
    %v1374 = vpow.pop %v1373
    %v1375 = vadd.f32 %v1374, 1.0
    %v1376 = vrcp.pop %v1375
    %v1377 = vmul.f32 %v1375, %v1376
    %v1378 = vsub.f32 1.0, %v1377
    %v1379 = vmul.f32 %v1376, %v1378
    %v1380 = vadd.f32 %v1376, %v1379
    %vm1381 = vweird.f32 %v1375
    %vm1382 = vweird.f32 %v1376
    %vm1383 = vmor %vm1381, %vm1382
    %v1384 = vsel %vm1383, %v1376, %v1380
    %v1385 = vand.u32 2147483647, %v1375
    %vm1386 = vcmp.eq.f32.partialorder %v1385, 8.507059e+37
    %v1387 = vand.u32 %v1375, 2147483648
    %v1388 = vor.u32 1.1754944e-38, %v1387
    %v1389 = vsel %vm1386, %v1388, %v1384
    %v1390 = vmul.f32 1.0, %v1389
    %v1391 = vtanh.pop %v1371
    %v1393 = vrot.slane %v1202, 6
    %v1395 = vmul.f32 %v1390, %v1393
    %1397 = vrot.lane.b32.xlu0 %v1391, 80
    %v1398 = vpop.permute.xlu0 %1397
    %v1400 = vmul.f32 %v1390, %v1398
    %1402 = vrot.lane.b32.xlu0 %v1400, 16
    %v1403 = vpop.permute.xlu0 %1402
    %v1405 = vadd.f32 %v1395, %v1403
    %v1406 = vtanh.pop %v1405
    %1408 = vrot.lane.b32.xlu0 %v1406, 16
    %v1409 = vpop.permute.xlu0 %1408
    %v1411 = vmul.f32 %v1390, %v1409
    %1413 = vrot.lane.b32.xlu0 %v1411, 96
    %v1414 = vpop.permute.xlu0 %1413
    %v1416 = vrot.slane %v1276, 6
    %1417 = vrot.lane.b32.xlu0 %v1416, 112
    %v1418 = vpop.permute.xlu0 %1417
    %v1420 = vsel %vm254, %v1414, %v1418
    %v1422 = vrot.slane %v1420, 2
    %v1423 = vsel %vm214, %v1422, 0
    %1425 = vmatpush.msra.mxu0 0.0
    %1426 = vmatpush.msra.mxu0 0.0
    %1427 = vmatpush.msra.mxu0 0.0
    %1428 = vmatpush.msra.mxu0 0.0
    %1429 = vmatpush.msra.mxu0 0.0
    %1430 = vmatpush.msra.mxu0 0.0
    %1431 = vmatpush.msra.mxu0 0.0
    %1432 = vmatpush.msra.mxu0 0.0
    %1433 = vmatpush.msra.mxu0 0.0
    %1434 = vmatpush.msra.mxu0 0.0
    %1435 = vmatpush.msra.mxu0 0.0
    %1436 = vmatpush.msra.mxu0 0.0
    %1437 = vmatpush.msra.mxu0 %v289
    %1438 = vmatpush.msra.mxu0 %v288
    %1439 = vmatpush.msra.mxu0 %v287
    %1440 = vmatpush.msra.mxu0 %v286
    %1441 = vmatmul.f32.gmra.mxu0 %v1423
    %v1442 = vpop.f32.mrf.mxu0
    %v1443 = vadd.f32 %v380, %v1442
    %1444 = vdwg.mxu0
    %v1445 = vxor.u32 %v1443, 2147483648
    %v1446 = vmul.f32 %v1445, 1.442695
    %v1447 = vpow.pop %v1446
    %v1448 = vadd.f32 %v1447, 1.0
    %v1449 = vrcp.pop %v1448
    %v1450 = vmul.f32 %v1448, %v1449
    %v1451 = vsub.f32 1.0, %v1450
    %v1452 = vmul.f32 %v1449, %v1451
    %v1453 = vadd.f32 %v1449, %v1452
    %vm1454 = vweird.f32 %v1448
    %vm1455 = vweird.f32 %v1449
    %vm1456 = vmor %vm1454, %vm1455
    %v1457 = vsel %vm1456, %v1449, %v1453
    %v1458 = vand.u32 2147483647, %v1448
    %vm1459 = vcmp.eq.f32.partialorder %v1458, 8.507059e+37
    %v1460 = vand.u32 %v1448, 2147483648
    %v1461 = vor.u32 1.1754944e-38, %v1460
    %v1462 = vsel %vm1459, %v1461, %v1457
    %v1463 = vmul.f32 1.0, %v1462
    %v1464 = vtanh.pop %v1443
    %v1465 = vmul.f32 %v1463, %v1270
    %1467 = vrot.lane.b32.xlu0 %v1464, 80
    %v1468 = vpop.permute.xlu0 %1467
    %v1470 = vmul.f32 %v1463, %v1468
    %1472 = vrot.lane.b32.xlu0 %v1470, 16
    %v1473 = vpop.permute.xlu0 %1472
    %v1475 = vadd.f32 %v1465, %v1473
    %v1476 = vtanh.pop %v1475
    %1478 = vrot.lane.b32.xlu0 %v1476, 16
    %v1479 = vpop.permute.xlu0 %1478
    %v1481 = vmul.f32 %v1463, %v1479
    %1483 = vrot.lane.b32.xlu0 %v1481, 96
    %v1484 = vpop.permute.xlu0 %1483
    %1487 = vrot.lane.b32.xlu0 %v1345, 112
    %v1488 = vpop.permute.xlu0 %1487
    %v1490 = vsel %vm254, %v1484, %v1488
    %v1492 = vsel %vm214, %v1490, 0
    %1494 = vmatpush.msra.mxu0 0.0
    %1495 = vmatpush.msra.mxu0 0.0
    %1496 = vmatpush.msra.mxu0 0.0
    %1497 = vmatpush.msra.mxu0 0.0
    %1498 = vmatpush.msra.mxu0 0.0
    %1499 = vmatpush.msra.mxu0 0.0
    %1500 = vmatpush.msra.mxu0 0.0
    %1501 = vmatpush.msra.mxu0 0.0
    %1502 = vmatpush.msra.mxu0 0.0
    %1503 = vmatpush.msra.mxu0 0.0
    %1504 = vmatpush.msra.mxu0 0.0
    %1505 = vmatpush.msra.mxu0 0.0
    %1506 = vmatpush.msra.mxu0 %v294
    %1507 = vmatpush.msra.mxu0 %v293
    %1508 = vmatpush.msra.mxu0 %v292
    %1509 = vmatpush.msra.mxu0 %v291
    %1510 = vmatmul.f32.gmra.mxu0 %v1492
    %v1511 = vpop.f32.mrf.mxu0
    %v1512 = vadd.f32 %v456, %v1511
    %1513 = vdwg.mxu0
    %v1514 = vxor.u32 %v1512, 2147483648
    %v1515 = vmul.f32 %v1514, 1.442695
    %v1516 = vpow.pop %v1515
    %v1517 = vadd.f32 %v1516, 1.0
    %v1518 = vrcp.pop %v1517
    %v1519 = vmul.f32 %v1517, %v1518
    %v1520 = vsub.f32 1.0, %v1519
    %v1521 = vmul.f32 %v1518, %v1520
    %v1522 = vadd.f32 %v1518, %v1521
    %vm1523 = vweird.f32 %v1517
    %vm1524 = vweird.f32 %v1518
    %vm1525 = vmor %vm1523, %vm1524
    %v1526 = vsel %vm1525, %v1518, %v1522
    %v1527 = vand.u32 2147483647, %v1517
    %vm1528 = vcmp.eq.f32.partialorder %v1527, 8.507059e+37
    %v1529 = vand.u32 %v1517, 2147483648
    %v1530 = vor.u32 1.1754944e-38, %v1529
    %v1531 = vsel %vm1528, %v1530, %v1526
    %v1532 = vmul.f32 1.0, %v1531
    %v1533 = vtanh.pop %v1512
    %v1534 = vmul.f32 %v1532, %v1339
    %1536 = vrot.lane.b32.xlu0 %v1533, 80
    %v1537 = vpop.permute.xlu0 %1536
    %v1539 = vmul.f32 %v1532, %v1537
    %1541 = vrot.lane.b32.xlu0 %v1539, 16
    %v1542 = vpop.permute.xlu0 %1541
    %v1544 = vadd.f32 %v1534, %v1542
    %v1545 = vtanh.pop %v1544
    %1547 = vrot.lane.b32.xlu0 %v1545, 16
    %v1548 = vpop.permute.xlu0 %1547
    %v1550 = vmul.f32 %v1532, %v1548
    %v1551 = vrot.slane %v1411, 2
    %1552 = vrot.lane.b32.xlu0 %v1551, 96
    %v1553 = vpop.permute.xlu0 %1552
    %v1554 = vsel %vm254, %v1553, 0
    %1556 = vmatpush.msra.mxu0 0.0
    %1557 = vmatpush.msra.mxu0 0.0
    %1558 = vmatpush.msra.mxu0 0.0
    %1559 = vmatpush.msra.mxu0 0.0
    %1560 = vmatpush.msra.mxu0 0.0
    %1561 = vmatpush.msra.mxu0 0.0
    %1562 = vmatpush.msra.mxu0 0.0
    %1563 = vmatpush.msra.mxu0 0.0
    %1564 = vmatpush.msra.mxu0 0.0
    %1565 = vmatpush.msra.mxu0 0.0
    %1566 = vmatpush.msra.mxu0 0.0
    %1567 = vmatpush.msra.mxu0 0.0
    %1568 = vmatpush.msra.mxu0 0.0
    %1569 = vmatpush.msra.mxu0 0.0
    %1570 = vmatpush.msra.mxu0 %v285
    %1571 = vmatpush.msra.mxu0 %v284
    %1572 = vmatmul.f32.gmra.mxu0 %v1554
    %v1573 = vpop.f32.mrf.mxu0
    %v1574 = vadd.f32 0.0, %v1573
    %1575 = vdwg.mxu0
    %v1577 = vrot.slane %v1574, 4
    %v1579 = vadd.f32 %v282, %v1577
    %v1580 = vxor.u32 %v1579, 2147483648
    %v1581 = vmul.f32 %v1580, 1.442695
    %v1582 = vpow.pop %v1581
    %v1583 = vadd.f32 %v1582, 1.0
    %v1584 = vrcp.pop %v1583
    %v1585 = vmul.f32 %v1583, %v1584
    %v1586 = vsub.f32 1.0, %v1585
    %v1587 = vmul.f32 %v1584, %v1586
    %v1588 = vadd.f32 %v1584, %v1587
    %vm1589 = vweird.f32 %v1583
    %vm1590 = vweird.f32 %v1584
    %vm1591 = vmor %vm1589, %vm1590
    %v1592 = vsel %vm1591, %v1584, %v1588
    %v1593 = vand.u32 2147483647, %v1583
    %vm1594 = vcmp.eq.f32.partialorder %v1593, 8.507059e+37
    %v1595 = vand.u32 %v1583, 2147483648
    %v1596 = vor.u32 1.1754944e-38, %v1595
    %v1597 = vsel %vm1594, %v1596, %v1592
    %v1598 = vmul.f32 1.0, %v1597
    %v1599 = vtanh.pop %v1579
    %v1601 = vrot.slane %v1405, 6
    %v1603 = vmul.f32 %v1598, %v1601
    %1605 = vrot.lane.b32.xlu0 %v1599, 80
    %v1606 = vpop.permute.xlu0 %1605
    %v1608 = vmul.f32 %v1598, %v1606
    %1610 = vrot.lane.b32.xlu0 %v1608, 16
    %v1611 = vpop.permute.xlu0 %1610
    %v1613 = vadd.f32 %v1603, %v1611
    %v1614 = vtanh.pop %v1613
    %1616 = vrot.lane.b32.xlu0 %v1614, 16
    %v1617 = vpop.permute.xlu0 %1616
    %v1619 = vmul.f32 %v1598, %v1617
    %1621 = vrot.lane.b32.xlu0 %v1619, 96
    %v1622 = vpop.permute.xlu0 %1621
    %v1624 = vrot.slane %v1481, 4
    %1625 = vrot.lane.b32.xlu0 %v1624, 112
    %v1626 = vpop.permute.xlu0 %1625
    %v1628 = vsel %vm254, %v1622, %v1626
    %v1630 = vrot.slane %v1628, 4
    %v1631 = vsel %vm214, %v1630, 0
    %1633 = vmatpush.msra.mxu0 0.0
    %1634 = vmatpush.msra.mxu0 0.0
    %1635 = vmatpush.msra.mxu0 0.0
    %1636 = vmatpush.msra.mxu0 0.0
    %1637 = vmatpush.msra.mxu0 0.0
    %1638 = vmatpush.msra.mxu0 0.0
    %1639 = vmatpush.msra.mxu0 0.0
    %1640 = vmatpush.msra.mxu0 0.0
    %1641 = vmatpush.msra.mxu0 0.0
    %1642 = vmatpush.msra.mxu0 0.0
    %1643 = vmatpush.msra.mxu0 0.0
    %1644 = vmatpush.msra.mxu0 0.0
    %1645 = vmatpush.msra.mxu0 %v289
    %1646 = vmatpush.msra.mxu0 %v288
    %1647 = vmatpush.msra.mxu0 %v287
    %1648 = vmatpush.msra.mxu0 %v286
    %1649 = vmatmul.f32.gmra.mxu0 %v1631
    %v1650 = vpop.f32.mrf.mxu0
    %v1651 = vadd.f32 %v380, %v1650
    %1652 = vdwg.mxu0
    %v1653 = vxor.u32 %v1651, 2147483648
    %v1654 = vmul.f32 %v1653, 1.442695
    %v1655 = vpow.pop %v1654
    %v1656 = vadd.f32 %v1655, 1.0
    %v1657 = vrcp.pop %v1656
    %v1658 = vmul.f32 %v1656, %v1657
    %v1659 = vsub.f32 1.0, %v1658
    %v1660 = vmul.f32 %v1657, %v1659
    %v1661 = vadd.f32 %v1657, %v1660
    %vm1662 = vweird.f32 %v1656
    %vm1663 = vweird.f32 %v1657
    %vm1664 = vmor %vm1662, %vm1663
    %v1665 = vsel %vm1664, %v1657, %v1661
    %v1666 = vand.u32 2147483647, %v1656
    %vm1667 = vcmp.eq.f32.partialorder %v1666, 8.507059e+37
    %v1668 = vand.u32 %v1656, 2147483648
    %v1669 = vor.u32 1.1754944e-38, %v1668
    %v1670 = vsel %vm1667, %v1669, %v1665
    %v1671 = vmul.f32 1.0, %v1670
    %v1672 = vtanh.pop %v1651
    %v1673 = vmul.f32 %v1671, %v1475
    %1675 = vrot.lane.b32.xlu0 %v1672, 80
    %v1676 = vpop.permute.xlu0 %1675
    %v1678 = vmul.f32 %v1671, %v1676
    %1680 = vrot.lane.b32.xlu0 %v1678, 16
    %v1681 = vpop.permute.xlu0 %1680
    %v1683 = vadd.f32 %v1673, %v1681
    %v1684 = vtanh.pop %v1683
    %1686 = vrot.lane.b32.xlu0 %v1684, 16
    %v1687 = vpop.permute.xlu0 %1686
    %v1689 = vmul.f32 %v1671, %v1687
    %1691 = vrot.lane.b32.xlu0 %v1689, 96
    %v1692 = vpop.permute.xlu0 %1691
    %1695 = vrot.lane.b32.xlu0 %v1550, 112
    %v1696 = vpop.permute.xlu0 %1695
    %v1698 = vsel %vm254, %v1692, %v1696
    %v1700 = vsel %vm214, %v1698, 0
    %1702 = vmatpush.msra.mxu0 0.0
    %1703 = vmatpush.msra.mxu0 0.0
    %1704 = vmatpush.msra.mxu0 0.0
    %1705 = vmatpush.msra.mxu0 0.0
    %1706 = vmatpush.msra.mxu0 0.0
    %1707 = vmatpush.msra.mxu0 0.0
    %1708 = vmatpush.msra.mxu0 0.0
    %1709 = vmatpush.msra.mxu0 0.0
    %1710 = vmatpush.msra.mxu0 0.0
    %1711 = vmatpush.msra.mxu0 0.0
    %1712 = vmatpush.msra.mxu0 0.0
    %1713 = vmatpush.msra.mxu0 0.0
    %1714 = vmatpush.msra.mxu0 %v294
    %1715 = vmatpush.msra.mxu0 %v293
    %1716 = vmatpush.msra.mxu0 %v292
    %1717 = vmatpush.msra.mxu0 %v291
    %1718 = vmatmul.f32.gmra.mxu0 %v1700
    %v1719 = vpop.f32.mrf.mxu0
    %v1720 = vadd.f32 %v456, %v1719
    %1721 = vdwg.mxu0
    %v1722 = vxor.u32 %v1720, 2147483648
    %v1723 = vmul.f32 %v1722, 1.442695
    %v1724 = vpow.pop %v1723
    %v1725 = vadd.f32 %v1724, 1.0
    %v1726 = vrcp.pop %v1725
    %v1727 = vmul.f32 %v1725, %v1726
    %v1728 = vsub.f32 1.0, %v1727
    %v1729 = vmul.f32 %v1726, %v1728
    %v1730 = vadd.f32 %v1726, %v1729
    %vm1731 = vweird.f32 %v1725
    %vm1732 = vweird.f32 %v1726
    %vm1733 = vmor %vm1731, %vm1732
    %v1734 = vsel %vm1733, %v1726, %v1730
    %v1735 = vand.u32 2147483647, %v1725
    %vm1736 = vcmp.eq.f32.partialorder %v1735, 8.507059e+37
    %v1737 = vand.u32 %v1725, 2147483648
    %v1738 = vor.u32 1.1754944e-38, %v1737
    %v1739 = vsel %vm1736, %v1738, %v1734
    %v1740 = vmul.f32 1.0, %v1739
    %v1741 = vtanh.pop %v1720
    %v1742 = vmul.f32 %v1740, %v1544
    %1744 = vrot.lane.b32.xlu0 %v1741, 80
    %v1745 = vpop.permute.xlu0 %1744
    %v1747 = vmul.f32 %v1740, %v1745
    %1749 = vrot.lane.b32.xlu0 %v1747, 16
    %v1750 = vpop.permute.xlu0 %1749
    %v1752 = vadd.f32 %v1742, %v1750
    %v1753 = vtanh.pop %v1752
    %1755 = vrot.lane.b32.xlu0 %v1753, 16
    %v1756 = vpop.permute.xlu0 %1755
    %v1758 = vmul.f32 %v1740, %v1756
    %v1759 = vrot.slane %v1619, 4
    %1760 = vrot.lane.b32.xlu0 %v1759, 96
    %v1761 = vpop.permute.xlu0 %1760
    %v1762 = vsel %vm254, %v1761, 0
    %1764 = vmatpush.msra.mxu0 0.0
    %1765 = vmatpush.msra.mxu0 0.0
    %1766 = vmatpush.msra.mxu0 0.0
    %1767 = vmatpush.msra.mxu0 0.0
    %1768 = vmatpush.msra.mxu0 0.0
    %1769 = vmatpush.msra.mxu0 0.0
    %1770 = vmatpush.msra.mxu0 0.0
    %1771 = vmatpush.msra.mxu0 0.0
    %1772 = vmatpush.msra.mxu0 0.0
    %1773 = vmatpush.msra.mxu0 0.0
    %1774 = vmatpush.msra.mxu0 0.0
    %1775 = vmatpush.msra.mxu0 0.0
    %1776 = vmatpush.msra.mxu0 0.0
    %1777 = vmatpush.msra.mxu0 0.0
    %1778 = vmatpush.msra.mxu0 %v285
    %1779 = vmatpush.msra.mxu0 %v284
    %1780 = vmatmul.f32.gmra.mxu0 %v1762
    %v1781 = vpop.f32.mrf.mxu0
    %v1782 = vadd.f32 0.0, %v1781
    %1783 = vdwg.mxu0
    %v1785 = vrot.slane %v1782, 2
    %v1787 = vadd.f32 %v282, %v1785
    %v1788 = vxor.u32 %v1787, 2147483648
    %v1789 = vmul.f32 %v1788, 1.442695
    %v1790 = vpow.pop %v1789
    %v1791 = vadd.f32 %v1790, 1.0
    %v1792 = vrcp.pop %v1791
    %v1793 = vmul.f32 %v1791, %v1792
    %v1794 = vsub.f32 1.0, %v1793
    %v1795 = vmul.f32 %v1792, %v1794
    %v1796 = vadd.f32 %v1792, %v1795
    %vm1797 = vweird.f32 %v1791
    %vm1798 = vweird.f32 %v1792
    %vm1799 = vmor %vm1797, %vm1798
    %v1800 = vsel %vm1799, %v1792, %v1796
    %v1801 = vand.u32 2147483647, %v1791
    %vm1802 = vcmp.eq.f32.partialorder %v1801, 8.507059e+37
    %v1803 = vand.u32 %v1791, 2147483648
    %v1804 = vor.u32 1.1754944e-38, %v1803
    %v1805 = vsel %vm1802, %v1804, %v1800
    %v1806 = vmul.f32 1.0, %v1805
    %v1807 = vtanh.pop %v1787
    %v1809 = vrot.slane %v1613, 6
    %v1811 = vmul.f32 %v1806, %v1809
    %1813 = vrot.lane.b32.xlu0 %v1807, 80
    %v1814 = vpop.permute.xlu0 %1813
    %v1816 = vmul.f32 %v1806, %v1814
    %1818 = vrot.lane.b32.xlu0 %v1816, 16
    %v1819 = vpop.permute.xlu0 %1818
    %v1821 = vadd.f32 %v1811, %v1819
    %v1822 = vtanh.pop %v1821
    %1824 = vrot.lane.b32.xlu0 %v1822, 16
    %v1825 = vpop.permute.xlu0 %1824
    %v1827 = vmul.f32 %v1806, %v1825
    %1829 = vrot.lane.b32.xlu0 %v1827, 96
    %v1830 = vpop.permute.xlu0 %1829
    %v1832 = vrot.slane %v1689, 2
    %1833 = vrot.lane.b32.xlu0 %v1832, 112
    %v1834 = vpop.permute.xlu0 %1833
    %v1836 = vsel %vm254, %v1830, %v1834
    %v1838 = vrot.slane %v1836, 6
    %v1839 = vsel %vm214, %v1838, 0
    %1841 = vmatpush.msra.mxu0 0.0
    %1842 = vmatpush.msra.mxu0 0.0
    %1843 = vmatpush.msra.mxu0 0.0
    %1844 = vmatpush.msra.mxu0 0.0
    %1845 = vmatpush.msra.mxu0 0.0
    %1846 = vmatpush.msra.mxu0 0.0
    %1847 = vmatpush.msra.mxu0 0.0
    %1848 = vmatpush.msra.mxu0 0.0
    %1849 = vmatpush.msra.mxu0 0.0
    %1850 = vmatpush.msra.mxu0 0.0
    %1851 = vmatpush.msra.mxu0 0.0
    %1852 = vmatpush.msra.mxu0 0.0
    %1853 = vmatpush.msra.mxu0 %v289
    %1854 = vmatpush.msra.mxu0 %v288
    %1855 = vmatpush.msra.mxu0 %v287
    %1856 = vmatpush.msra.mxu0 %v286
    %1857 = vmatmul.f32.gmra.mxu0 %v1839
    %v1858 = vpop.f32.mrf.mxu0
    %v1859 = vadd.f32 %v380, %v1858
    %1860 = vdwg.mxu0
    %v1861 = vxor.u32 %v1859, 2147483648
    %v1862 = vmul.f32 %v1861, 1.442695
    %v1863 = vpow.pop %v1862
    %v1864 = vadd.f32 %v1863, 1.0
    %v1865 = vrcp.pop %v1864
    %v1866 = vmul.f32 %v1864, %v1865
    %v1867 = vsub.f32 1.0, %v1866
    %v1868 = vmul.f32 %v1865, %v1867
    %v1869 = vadd.f32 %v1865, %v1868
    %vm1870 = vweird.f32 %v1864
    %vm1871 = vweird.f32 %v1865
    %vm1872 = vmor %vm1870, %vm1871
    %v1873 = vsel %vm1872, %v1865, %v1869
    %v1874 = vand.u32 2147483647, %v1864
    %vm1875 = vcmp.eq.f32.partialorder %v1874, 8.507059e+37
    %v1876 = vand.u32 %v1864, 2147483648
    %v1877 = vor.u32 1.1754944e-38, %v1876
    %v1878 = vsel %vm1875, %v1877, %v1873
    %v1879 = vmul.f32 1.0, %v1878
    %v1880 = vtanh.pop %v1859
    %v1881 = vmul.f32 %v1879, %v1683
    %1883 = vrot.lane.b32.xlu0 %v1880, 80
    %v1884 = vpop.permute.xlu0 %1883
    %v1886 = vmul.f32 %v1879, %v1884
    %1888 = vrot.lane.b32.xlu0 %v1886, 16
    %v1889 = vpop.permute.xlu0 %1888
    %v1891 = vadd.f32 %v1881, %v1889
    %v1892 = vtanh.pop %v1891
    %1894 = vrot.lane.b32.xlu0 %v1892, 16
    %v1895 = vpop.permute.xlu0 %1894
    %v1897 = vmul.f32 %v1879, %v1895
    %1899 = vrot.lane.b32.xlu0 %v1897, 96
    %v1900 = vpop.permute.xlu0 %1899
    %1903 = vrot.lane.b32.xlu0 %v1758, 112
    %v1904 = vpop.permute.xlu0 %1903
    %v1906 = vsel %vm254, %v1900, %v1904
    %v1908 = vsel %vm214, %v1906, 0
    %1910 = vmatpush.msra.mxu0 0.0
    %1911 = vmatpush.msra.mxu0 0.0
    %1912 = vmatpush.msra.mxu0 0.0
    %1913 = vmatpush.msra.mxu0 0.0
    %1914 = vmatpush.msra.mxu0 0.0
    %1915 = vmatpush.msra.mxu0 0.0
    %1916 = vmatpush.msra.mxu0 0.0
    %1917 = vmatpush.msra.mxu0 0.0
    %1918 = vmatpush.msra.mxu0 0.0
    %1919 = vmatpush.msra.mxu0 0.0
    %1920 = vmatpush.msra.mxu0 0.0
    %1921 = vmatpush.msra.mxu0 0.0
    %1922 = vmatpush.msra.mxu0 %v294
    %1923 = vmatpush.msra.mxu0 %v293
    %1924 = vmatpush.msra.mxu0 %v292
    %1925 = vmatpush.msra.mxu0 %v291
    %1926 = vmatmul.f32.gmra.mxu0 %v1908
    %v1927 = vpop.f32.mrf.mxu0
    %v1928 = vadd.f32 %v456, %v1927
    %1929 = vdwg.mxu0
    %v1930 = vxor.u32 %v1928, 2147483648
    %v1931 = vmul.f32 %v1930, 1.442695
    %v1932 = vpow.pop %v1931
    %v1933 = vadd.f32 %v1932, 1.0
    %v1934 = vrcp.pop %v1933
    %v1935 = vmul.f32 %v1933, %v1934
    %v1936 = vsub.f32 1.0, %v1935
    %v1937 = vmul.f32 %v1934, %v1936
    %v1938 = vadd.f32 %v1934, %v1937
    %vm1939 = vweird.f32 %v1933
    %vm1940 = vweird.f32 %v1934
    %vm1941 = vmor %vm1939, %vm1940
    %v1942 = vsel %vm1941, %v1934, %v1938
    %v1943 = vand.u32 2147483647, %v1933
    %vm1944 = vcmp.eq.f32.partialorder %v1943, 8.507059e+37
    %v1945 = vand.u32 %v1933, 2147483648
    %v1946 = vor.u32 1.1754944e-38, %v1945
    %v1947 = vsel %vm1944, %v1946, %v1942
    %v1948 = vmul.f32 1.0, %v1947
    %v1949 = vtanh.pop %v1928
    %v1950 = vmul.f32 %v1948, %v1752
    %1952 = vrot.lane.b32.xlu0 %v1949, 80
    %v1953 = vpop.permute.xlu0 %1952
    %v1955 = vmul.f32 %v1948, %v1953
    %1957 = vrot.lane.b32.xlu0 %v1955, 16
    %v1958 = vpop.permute.xlu0 %1957
    %v1960 = vadd.f32 %v1950, %v1958
    %v1961 = vtanh.pop %v1960
    %1963 = vrot.lane.b32.xlu0 %v1961, 16
    %v1964 = vpop.permute.xlu0 %1963
    %v1966 = vmul.f32 %v1948, %v1964
    %v1967 = vrot.slane %v726, 7
    %v1969 = vrot.slane %v934, 6
    %v1971 = vrot.slane %v1142, 5
    %v1973 = vrot.slane %v1345, 4
    %v1975 = vrot.slane %v1550, 3
    %v1977 = vrot.slane %v1758, 2
    %v1980 = vrot.slane %v1966, 1
    %v1982 = vrot.slane %v521, 1
    %v1984 = vrot.slane %v934, 7
    %v1986 = vrot.slane %v1142, 6
    %v1988 = vrot.slane %v1345, 5
    %v1990 = vrot.slane %v1550, 4
    %v1992 = vrot.slane %v1758, 3
    %v1994 = vrot.slane %v1966, 2
    %v1996 = vsel %vm189, %v521, %v1967
    %v1997 = vsel %vm191, %v1996, %v1969
    %v1998 = vsel %vm193, %v1997, %v1971
    %v1999 = vsel %vm195, %v1998, %v1973
    %v2000 = vsel %vm197, %v1999, %v1975
    %v2001 = vsel %vm199, %v2000, %v1977
    %v2002 = vsel %vm201, %v2001, %v1980
    %v2003 = vsel %vm189, %v1982, %v726
    %v2004 = vsel %vm191, %v2003, %v1984
    %v2005 = vsel %vm193, %v2004, %v1986
    %v2006 = vsel %vm195, %v2005, %v1988
    %v2007 = vsel %vm197, %v2006, %v1990
    %v2008 = vsel %vm199, %v2007, %v1992
    %v2009 = vsel %vm201, %v2008, %v1994
    %v2010 = vld [vmem:[%s6] sm:$0xff]
    %v2011 = vld [vmem:[%s6 + $0x8] sm:$0xff]
    %v2012 = vld [vmem:[#allocation9] sm:$0x1]
    %v2014 = vperm.slane %v2012, 0
    %2018 = vrot.lane.b32.xlu0 %v2002, 96
    %v2019 = vpop.permute.xlu0 %2018
    %2020 = vrot.lane.b32.xlu0 %v2009, 96
    %v2021 = vpop.permute.xlu0 %2020
    %v2022 = vsel %vm254, %v2019, 0
    %v2024 = vsel %vm254, %v2021, 0
    %2026 = vmatpush.msra.mxu0 0.0
    %2027 = vmatpush.msra.mxu0 0.0
    %2028 = vmatpush.msra.mxu0 0.0
    %2029 = vmatpush.msra.mxu0 0.0
    %2030 = vmatpush.msra.mxu0 0.0
    %2031 = vmatpush.msra.mxu0 0.0
    %2032 = vmatpush.msra.mxu0 0.0
    %2033 = vmatpush.msra.mxu0 0.0
    %2034 = vmatpush.msra.mxu0 0.0
    %2035 = vmatpush.msra.mxu0 0.0
    %2036 = vmatpush.msra.mxu0 0.0
    %2037 = vmatpush.msra.mxu0 0.0
    %2038 = vmatpush.msra.mxu0 0.0
    %2039 = vmatpush.msra.mxu0 0.0
    %2040 = vmatpush.msra.mxu0 %v2011
    %2041 = vmatpush.msra.mxu0 %v2010
    %2042 = vmatmul.f32.gmra.mxu0 %v2022
    %v2043 = vpop.f32.mrf.mxu0
    %v2044 = vadd.f32 %v2014, %v2043
    %2045 = vmatmul.f32.gmra.mxu0 %v2024
    %v2046 = vpop.f32.mrf.mxu0
    %v2047 = vadd.f32 %v2014, %v2046
    %2048 = vdwg.mxu0
    %2049 = vst.msk [vmem:[#allocation12] sm:$0xff] %vm214, %v2044
    %2050 = vst.msk [vmem:[#allocation12 + $0x8] sm:$0xff] %vm214, %v2047
    %vm2051 = vcmask 130054
    %2052 = vst.msk [vmem:[#allocation13 - $0x6] sm:$0xc0] %vm2051, %v1830
    %2054 = vrot.lane.b32.xlu0 %v1821, 112
    %v2055 = vpop.permute.xlu0 %2054
    %2057 = vst.msk [vmem:[#allocation15 - $0x6] sm:$0xc0] %vm2051, %v2055
    %s2058 = scalar_lea.vmem [#allocation13], 2
    %vm2059 = vcmask 123904
    %2060 = vst.msk [vmem:[%s2058] sm:$0x3] %vm2059, %v1900
    %2062 = vrot.lane.b32.xlu0 %v1891, 112
    %v2063 = vpop.permute.xlu0 %2062
    %s2065 = scalar_lea.vmem [#allocation15], 2
    %2066 = vst.msk [vmem:[%s2065] sm:$0x3] %vm2059, %v2063
    %2067 = vrot.lane.b32.xlu0 %v1966, 96
    %v2068 = vpop.permute.xlu0 %2067
    %s2070 = scalar_lea.vmem [#allocation13], 4
    %2071 = vst.msk [vmem:[%s2070] sm:$0x3] %vm2059, %v2068
    %2073 = vrot.lane.b32.xlu0 %v1960, 112
    %v2074 = vpop.permute.xlu0 %2073
    %s2076 = scalar_lea.vmem [#allocation15], 4
    %2077 = vst.msk [vmem:[%s2076] sm:$0x3] %vm2059, %v2074
    // Predicated region
    $region54: #{tpu_custom_call.1} parent=1 // pred_check
      _
    $region55: #{tpu_custom_call.1} parent=1 // pred_check_branch
      %2079 = sbr.rel (0) target = $region57
    $region56: #{tpu_custom_call.1} parent=1 // pred_region
      %2081 = vsyncadd [#allocation6], 0
      %s2082 = sshll.u32 [#allocation12], 4
      %s2083 = int_to_ptr.vmem [resolvable:$true] %s2082
      %s2084 = sshll.u32 %s10, 4
      %s2085 = int_to_ptr.hbm [resolvable:$true] %s2084
      %2090 = dma.vmem_to_hbm [thread:$0]  %s2083, 256, %s2085, [#allocation6], 128, 128, 8
    $region57: #{tpu_custom_call.1} parent=1 // pred_fallthru
      _
    // Predicated region
    $region58: #{tpu_custom_call.1} parent=1 // pred_check
      _
    $region59: #{tpu_custom_call.1} parent=1 // pred_check_branch
      %2092 = sbr.rel (0) target = $region61
    $region60: #{tpu_custom_call.1} parent=1 // pred_region
      %2094 = vsyncadd [#allocation14], 0
      %s2095 = sshll.u32 [#allocation13], 4
      %s2096 = int_to_ptr.vmem [resolvable:$true] %s2095
      %s2097 = sshll.u32 %s11, 4
      %s2098 = int_to_ptr.hbm [resolvable:$true] %s2097
      %2103 = dma.vmem_to_hbm [thread:$0]  %s2096, 96, %s2098, [#allocation14], 32, 32, 2
    $region61: #{tpu_custom_call.1} parent=1 // pred_fallthru
      _
    // Predicated region
    $region62: #{tpu_custom_call.1} parent=1 // pred_check
      _
    $region63: #{tpu_custom_call.1} parent=1 // pred_check_branch
      %2105 = sbr.rel (0) target = $region65
    $region64: #{tpu_custom_call.1} parent=1 // pred_region
      %2107 = vsyncadd [#allocation14], 0
      %s2108 = sshll.u32 [#allocation15], 4
      %s2109 = int_to_ptr.vmem [resolvable:$true] %s2108
      %s2110 = sshll.u32 %s12, 4
      %s2111 = int_to_ptr.hbm [resolvable:$true] %s2110
      %2116 = dma.vmem_to_hbm [thread:$0]  %s2109, 96, %s2111, [#allocation14], 32, 32, 2
    $region65: #{tpu_custom_call.1} parent=1 // pred_fallthru
      _
    // Predicated region
    $region66: #{tpu_custom_call.1} parent=1 // pred_check
      _
    $region67: #{tpu_custom_call.1} parent=1 // pred_check_branch
      %2118 = sbr.rel (0) target = $region69
    $region68: #{tpu_custom_call.1} parent=1 // pred_region
      %2120 = dma.done [#allocation6], 256
    $region69: #{tpu_custom_call.1} parent=1 // pred_fallthru
      _
    // Predicated region
    $region70: #{tpu_custom_call.1} parent=1 // pred_check
      _
    $region71: #{tpu_custom_call.1} parent=1 // pred_check_branch
      %2122 = sbr.rel (0) target = $region73
    $region72: #{tpu_custom_call.1} parent=1 // pred_region
      %2124 = dma.done [#allocation14], 96
    $region73: #{tpu_custom_call.1} parent=1 // pred_fallthru
      _
    // Predicated region
    $region74: #{tpu_custom_call.1} parent=1 // pred_check
      _
    $region75: #{tpu_custom_call.1} parent=1 // pred_check_branch
      %2126 = sbr.rel (0) target = $region77
    $region76: #{tpu_custom_call.1} parent=1 // pred_region
      %2128 = dma.done [#allocation14], 96
    $region77: #{tpu_custom_call.1} parent=1 // pred_fallthru
      _
    %2129 = vsyncpa [#allocation5], 1
    %2130 = vsyncpa [#allocation8], 1
    %2131 = vsyncpa [#allocation11], 1
    %2132 = vsyncpa [#allocation6], 1
    %2133 = vsyncpa [#allocation14], 1

</llo_original>
